<compile_context>
chip_gen: v5e
topology: v5e:2x2
jax: 0.10.0
libtpu: 0.0.40
codegen_flags: <defaults>
</compile_context>

<pallas_src>
import functools

import jax
import jax.numpy as jnp
from jax.experimental import pallas as pl
from jax.experimental.pallas import tpu as pltpu


def _resnet_block_kernel(x_ref, w1_ref, b1_ref, w2_ref, b2_ref, o_ref,
                         xpad_ref, ypad_ref, *, K, d0, d1, H, W, C, B,
                         neg_slope):
    """One grid step == B batch images, fully fused residual block.

    x_ref    : (B, C, H, W)              NCHW input tile (also the residual)
    w*_ref   : (K*K, C, C)               per-tap weights, each (Cout, Cin)
    b*_ref   : (C, 1)
    o_ref    : (B, C, H*W)               channels-on-sublane, lane-dense output
    xpad_ref : (C, H+2*p0, W+2*p0)       VMEM scratch: padded conv1 input
    ypad_ref : (C, H+2*p1, W+2*p1) f32   VMEM scratch: padded conv2 input
    """
    p0 = (K - 1) // 2 * d0
    p1 = (K - 1) // 2 * d1
    HW = H * W

    def zero_halo(pad_ref, p):
        # Zero only the halo border (tiny); the interior is overwritten below.
        if p == 0:
            return
        Hp, Wp = H + 2 * p, W + 2 * p
        zrow = jnp.zeros((C, p, Wp), pad_ref.dtype)
        pad_ref[:, :p, :] = zrow
        pad_ref[:, Hp - p:, :] = zrow
        zcol = jnp.zeros((C, H, p), pad_ref.dtype)
        pad_ref[:, p:p + H, :p] = zcol
        pad_ref[:, p:p + H, Wp - p:] = zcol

    zero_halo(xpad_ref, p0)
    zero_halo(ypad_ref, p1)

    def conv(pad_ref, w_ref, b_ref, dil):
        # Per-tap accumulation: (Cout, Cin) x (Cin, H*W) MXU matmuls into f32.
        # (For f32 inputs one could cast operands to bf16 for MXU rate once
        #  C is large enough to be MXU-bound; kept full precision here.)
        acc = None
        for kh in range(K):
            for kw in range(K):
                win = pad_ref[:, kh * dil:kh * dil + H,
                              kw * dil:kw * dil + W].reshape(C, HW)
                d = jnp.dot(w_ref[kh * K + kw], win,
                            preferred_element_type=jnp.float32)
                acc = d if acc is None else acc + d
        return acc + b_ref[...].astype(jnp.float32)          # (C, HW) f32

    for b in range(B):                                        # static unroll
        x_img = x_ref[b]                                      # (C, H, W)

        # ---- conv1 + LeakyReLU(0.1) ----
        xpad_ref[:, p0:p0 + H, p0:p0 + W] = x_img
        y = conv(xpad_ref, w1_ref, b1_ref, d0)
        y = jnp.where(y >= 0, y, neg_slope * y)

        # ---- conv2 + residual: intermediate stays in VMEM (f32) ----
        ypad_ref[:, p1:p1 + H, p1:p1 + W] = y.reshape(C, H, W)
        z = conv(ypad_ref, w2_ref, b2_ref, d1)
        z = z + x_img.reshape(C, HW).astype(jnp.float32)

        o_ref[b] = z.astype(o_ref.dtype)                      # lane-dense store


def resnet_block(x_nchw, w1, b1, w2, b2, *, kernel_size, dilation, b_tile=None):
    """Equivalent of ResnetBlock.forward.

    x_nchw : (N, C, H, W)            PyTorch layout (used directly, no transpose)
    w1, w2 : (Cout, Cin, K, K)       PyTorch OIHW conv weights (Cout == Cin == C)
    b1, b2 : (C,)
    """
    K = kernel_size
    d0, d1 = dilation
    p0 = (K - 1) // 2 * d0
    p1 = (K - 1) // 2 * d1

    N, C, H, W = x_nchw.shape
    HW = H * W

    if b_tile is None:
        # Amortize per-step pipeline overhead, but keep >= 2 grid steps when
        # N >= 2 (v7x megacore) and bound the per-step VMEM working set.
        itemsize = jnp.dtype(x_nchw.dtype).itemsize
        per_img = 4 * C * HW * itemsize + 4 * C * HW * 4
        budget = 8 * 1024 * 1024
        b_tile = max(1, min(N, budget // max(per_img, 1)))
        if N >= 2:
            b_tile = min(b_tile, max(1, N // 2))
        while N % b_tile:
            b_tile -= 1

    # OIHW -> (K, K, Cout, Cin) -> (K*K, Cout, Cin): per-tap (Cout, Cin) mats.
    wt1 = jnp.transpose(w1, (2, 3, 0, 1)).reshape(K * K, C, C)
    wt2 = jnp.transpose(w2, (2, 3, 0, 1)).reshape(K * K, C, C)

    kernel = functools.partial(
        _resnet_block_kernel,
        K=K, d0=d0, d1=d1, H=H, W=W, C=C, B=b_tile, neg_slope=0.1,
    )

    out = pl.pallas_call(
        kernel,
        out_shape=jax.ShapeDtypeStruct((N, C, HW), x_nchw.dtype),
        grid_spec=pltpu.PrefetchScalarGridSpec(
            num_scalar_prefetch=0,
            grid=(N // b_tile,),
            in_specs=[
                pl.BlockSpec((b_tile, C, H, W), lambda n: (n, 0, 0, 0)),  # x NCHW
                pl.BlockSpec((K * K, C, C), lambda n: (0, 0, 0)),         # w1 taps
                pl.BlockSpec((C, 1), lambda n: (0, 0)),                   # b1
                pl.BlockSpec((K * K, C, C), lambda n: (0, 0, 0)),         # w2 taps
                pl.BlockSpec((C, 1), lambda n: (0, 0)),                   # b2
            ],
            out_specs=pl.BlockSpec((b_tile, C, HW), lambda n: (n, 0, 0)),
            scratch_shapes=[
                pltpu.VMEM((C, H + 2 * p0, W + 2 * p0), x_nchw.dtype),
                pltpu.VMEM((C, H + 2 * p1, W + 2 * p1), jnp.float32),
            ],
        ),
        compiler_params=pltpu.CompilerParams(
            dimension_semantics=("parallel",),
            # Plenty for these shapes; can be raised to 64-96 MiB on v5e/v6e
            # for much larger H, W, C (v7x should row-tile instead).
            vmem_limit_bytes=32 * 1024 * 1024,
        ),
    )(x_nchw, wt1, b1.reshape(C, 1), wt2, b2.reshape(C, 1))

    # (N, C, H*W) -> (N, C, H, W): pure metadata reshape, already NCHW.
    return out.reshape(N, C, H, W)


def _reference_block(x, w1, b1, w2, b2, *, kernel_size, dilation):
    """Pure-JAX reference matching the PyTorch module (for validation)."""
    K = kernel_size

    def conv(inp, w, b, d):
        p = (K - 1) // 2 * d
        y = jax.lax.conv_general_dilated(
            inp, w, window_strides=(1, 1), padding=[(p, p), (p, p)],
            rhs_dilation=(d, d), dimension_numbers=("NCHW", "OIHW", "NCHW"),
        )
        return y + b[None, :, None, None]

    y = conv(x, w1, b1, dilation[0])
    y = jnp.where(y >= 0, y, 0.1 * y)  # LeakyReLU(0.1)
    y = conv(y, w2, b2, dilation[1])
    return y + x


if __name__ == "__main__":
    N, C, H, W = 2, 4, 16, 16
    K = 3
    dilation = (1, 2)

    key = jax.random.PRNGKey(0)
    k1, k2, k3, k4, k5 = jax.random.split(key, 5)
    x = jax.random.normal(k1, (N, C, H, W), jnp.float32)
    w1 = jax.random.normal(k2, (C, C, K, K), jnp.float32) * 0.1
    b1 = jax.random.normal(k3, (C,), jnp.float32) * 0.1
    w2 = jax.random.normal(k4, (C, C, K, K), jnp.float32) * 0.1
    b2 = jax.random.normal(k5, (C,), jnp.float32) * 0.1

    out = resnet_block(x, w1, b1, w2, b2, kernel_size=K, dilation=dilation)
    out = jax.block_until_ready(out)

    ref = _reference_block(x, w1, b1, w2, b2, kernel_size=K, dilation=dilation)
    assert out.shape == (N, C, H, W)
    assert jnp.allclose(out, ref, atol=1e-4, rtol=1e-4)

    print("KERNEL_OK")
</pallas_src>

<mosaic_0001>
module attributes {stable_mosaic.version = 11 : i64} {
  func.func @_resnet_block_kernel(%arg0: i32, %arg1: memref<1x4x16x16xf32, #tpu.memory_space<vmem>>, %arg2: memref<9x4x4xf32, #tpu.memory_space<vmem>>, %arg3: memref<4x1xf32, #tpu.memory_space<vmem>>, %arg4: memref<9x4x4xf32, #tpu.memory_space<vmem>>, %arg5: memref<4x1xf32, #tpu.memory_space<vmem>>, %arg6: memref<1x4x256xf32, #tpu.memory_space<vmem>>, %arg7: memref<4x18x18xf32, #tpu.memory_space<vmem>>, %arg8: memref<4x20x20xf32, #tpu.memory_space<vmem>>) attributes {dimension_semantics = [#tpu.dimension_semantics<parallel>], iteration_bounds = array<i64: 2>, scalar_prefetch = 0 : i64, scratch_operands = 2 : i64, tpu.core_type = #tpu.core_type<tc>, window_params = [{transform_indices = @transform_0, window_bounds = array<i64: 1, 4, 16, 16>}, {pipeline_mode = #tpu.pipeline_mode<synchronous>, transform_indices = @transform_1, window_bounds = array<i64: 9, 4, 4>}, {pipeline_mode = #tpu.pipeline_mode<synchronous>, transform_indices = @transform_2, window_bounds = array<i64: 4, 1>}, {pipeline_mode = #tpu.pipeline_mode<synchronous>, transform_indices = @transform_3, window_bounds = array<i64: 9, 4, 4>}, {pipeline_mode = #tpu.pipeline_mode<synchronous>, transform_indices = @transform_4, window_bounds = array<i64: 4, 1>}, {transform_indices = @transform_5, window_bounds = array<i64: 1, 4, 256>}]} {
    %cst = arith.constant 0.000000e+00 : f32
    %0 = vector.broadcast %cst : f32 to vector<4x1x18xf32>
    %c0 = arith.constant 0 : index
    %c0_0 = arith.constant 0 : index
    %c0_1 = arith.constant 0 : index
    %1 = vector.load %arg7[%c0, %c0_0, %c0_1] : memref<4x18x18xf32, #tpu.memory_space<vmem>>, vector<4x1x18xf32>
    tpu.vector_store %arg7[%c0, %c0_0, %c0_1], %0 {strides = array<i32>} : memref<4x18x18xf32, #tpu.memory_space<vmem>>, vector<4x1x18xf32>,
    %c0_2 = arith.constant 0 : index
    %c17 = arith.constant 17 : index
    %c0_3 = arith.constant 0 : index
    %2 = vector.load %arg7[%c0_2, %c17, %c0_3] : memref<4x18x18xf32, #tpu.memory_space<vmem>>, vector<4x1x18xf32>
    tpu.vector_store %arg7[%c0_2, %c17, %c0_3], %0 {strides = array<i32>} : memref<4x18x18xf32, #tpu.memory_space<vmem>>, vector<4x1x18xf32>,
    %cst_4 = arith.constant 0.000000e+00 : f32
    %3 = vector.broadcast %cst_4 : f32 to vector<4x16x1xf32>
    %c0_5 = arith.constant 0 : index
    %c1 = arith.constant 1 : index
    %c0_6 = arith.constant 0 : index
    %4 = vector.load %arg7[%c0_5, %c1, %c0_6] : memref<4x18x18xf32, #tpu.memory_space<vmem>>, vector<4x16x1xf32>
    tpu.vector_store %arg7[%c0_5, %c1, %c0_6], %3 {strides = array<i32>} : memref<4x18x18xf32, #tpu.memory_space<vmem>>, vector<4x16x1xf32>,
    %c0_7 = arith.constant 0 : index
    %c1_8 = arith.constant 1 : index
    %c17_9 = arith.constant 17 : index
    %5 = vector.load %arg7[%c0_7, %c1_8, %c17_9] : memref<4x18x18xf32, #tpu.memory_space<vmem>>, vector<4x16x1xf32>
    tpu.vector_store %arg7[%c0_7, %c1_8, %c17_9], %3 {strides = array<i32>} : memref<4x18x18xf32, #tpu.memory_space<vmem>>, vector<4x16x1xf32>,
    %cst_10 = arith.constant 0.000000e+00 : f32
    %6 = vector.broadcast %cst_10 : f32 to vector<4x2x20xf32>
    %c0_11 = arith.constant 0 : index
    %c0_12 = arith.constant 0 : index
    %c0_13 = arith.constant 0 : index
    %7 = vector.load %arg8[%c0_11, %c0_12, %c0_13] : memref<4x20x20xf32, #tpu.memory_space<vmem>>, vector<4x2x20xf32>
    tpu.vector_store %arg8[%c0_11, %c0_12, %c0_13], %6 {strides = array<i32>} : memref<4x20x20xf32, #tpu.memory_space<vmem>>, vector<4x2x20xf32>,
    %c0_14 = arith.constant 0 : index
    %c18 = arith.constant 18 : index
    %c0_15 = arith.constant 0 : index
    %8 = vector.load %arg8[%c0_14, %c18, %c0_15] : memref<4x20x20xf32, #tpu.memory_space<vmem>>, vector<4x2x20xf32>
    tpu.vector_store %arg8[%c0_14, %c18, %c0_15], %6 {strides = array<i32>} : memref<4x20x20xf32, #tpu.memory_space<vmem>>, vector<4x2x20xf32>,
    %cst_16 = arith.constant 0.000000e+00 : f32
    %9 = vector.broadcast %cst_16 : f32 to vector<4x16x2xf32>
    %c0_17 = arith.constant 0 : index
    %c2 = arith.constant 2 : index
    %c0_18 = arith.constant 0 : index
    %10 = vector.load %arg8[%c0_17, %c2, %c0_18] : memref<4x20x20xf32, #tpu.memory_space<vmem>>, vector<4x16x2xf32>
    tpu.vector_store %arg8[%c0_17, %c2, %c0_18], %9 {strides = array<i32>} : memref<4x20x20xf32, #tpu.memory_space<vmem>>, vector<4x16x2xf32>,
    %c0_19 = arith.constant 0 : index
    %c2_20 = arith.constant 2 : index
    %c18_21 = arith.constant 18 : index
    %11 = vector.load %arg8[%c0_19, %c2_20, %c18_21] : memref<4x20x20xf32, #tpu.memory_space<vmem>>, vector<4x16x2xf32>
    tpu.vector_store %arg8[%c0_19, %c2_20, %c18_21], %9 {strides = array<i32>} : memref<4x20x20xf32, #tpu.memory_space<vmem>>, vector<4x16x2xf32>,
    %c0_22 = arith.constant 0 : index
    %c0_23 = arith.constant 0 : index
    %c0_24 = arith.constant 0 : index
    %c0_25 = arith.constant 0 : index
    %12 = vector.load %arg1[%c0_22, %c0_23, %c0_24, %c0_25] : memref<1x4x16x16xf32, #tpu.memory_space<vmem>>, vector<1x4x16x16xf32>
    %13 = vector.shape_cast %12 : vector<1x4x16x16xf32> to vector<4x16x16xf32>
    %c0_26 = arith.constant 0 : index
    %c1_27 = arith.constant 1 : index
    %c1_28 = arith.constant 1 : index
    %14 = vector.load %arg7[%c0_26, %c1_27, %c1_28] : memref<4x18x18xf32, #tpu.memory_space<vmem>>, vector<4x16x16xf32>
    tpu.vector_store %arg7[%c0_26, %c1_27, %c1_28], %13 {strides = array<i32>} : memref<4x18x18xf32, #tpu.memory_space<vmem>>, vector<4x16x16xf32>,
    %c0_29 = arith.constant 0 : index
    %c0_30 = arith.constant 0 : index
    %c0_31 = arith.constant 0 : index
    %15 = vector.load %arg7[%c0_29, %c0_30, %c0_31] : memref<4x18x18xf32, #tpu.memory_space<vmem>>, vector<4x16x16xf32>
    %16 = vector.shape_cast %15 : vector<4x16x16xf32> to vector<4x256xf32>
    %c0_32 = arith.constant 0 : index
    %c0_33 = arith.constant 0 : index
    %c0_34 = arith.constant 0 : index
    %17 = vector.load %arg2[%c0_32, %c0_33, %c0_34] : memref<9x4x4xf32, #tpu.memory_space<vmem>>, vector<1x4x4xf32>
    %18 = vector.shape_cast %17 : vector<1x4x4xf32> to vector<4x4xf32>
    %cst_35 = arith.constant dense<0.000000e+00> : vector<4x256xf32>
    %19 = tpu.matmul %18, %16, %cst_35 {dimension_numbers = #tpu.dot_dimension_numbers<[1], [0], [0], [1], [0, 0, 1, 1], [], []>} : vector<4x4xf32>, vector<4x256xf32>, vector<4x256xf32> -> vector<4x256xf32>
    %c0_36 = arith.constant 0 : index
    %c0_37 = arith.constant 0 : index
    %c1_38 = arith.constant 1 : index
    %20 = vector.load %arg7[%c0_36, %c0_37, %c1_38] : memref<4x18x18xf32, #tpu.memory_space<vmem>>, vector<4x16x16xf32>
    %21 = vector.shape_cast %20 : vector<4x16x16xf32> to vector<4x256xf32>
    %c1_39 = arith.constant 1 : index
    %c0_40 = arith.constant 0 : index
    %c0_41 = arith.constant 0 : index
    %22 = vector.load %arg2[%c1_39, %c0_40, %c0_41] : memref<9x4x4xf32, #tpu.memory_space<vmem>>, vector<1x4x4xf32>
    %23 = vector.shape_cast %22 : vector<1x4x4xf32> to vector<4x4xf32>
    %cst_42 = arith.constant dense<0.000000e+00> : vector<4x256xf32>
    %24 = tpu.matmul %23, %21, %cst_42 {dimension_numbers = #tpu.dot_dimension_numbers<[1], [0], [0], [1], [0, 0, 1, 1], [], []>} : vector<4x4xf32>, vector<4x256xf32>, vector<4x256xf32> -> vector<4x256xf32>
    %25 = arith.addf %19, %24 : vector<4x256xf32>
    %c0_43 = arith.constant 0 : index
    %c0_44 = arith.constant 0 : index
    %c2_45 = arith.constant 2 : index
    %26 = vector.load %arg7[%c0_43, %c0_44, %c2_45] : memref<4x18x18xf32, #tpu.memory_space<vmem>>, vector<4x16x16xf32>
    %27 = vector.shape_cast %26 : vector<4x16x16xf32> to vector<4x256xf32>
    %c2_46 = arith.constant 2 : index
    %c0_47 = arith.constant 0 : index
    %c0_48 = arith.constant 0 : index
    %28 = vector.load %arg2[%c2_46, %c0_47, %c0_48] : memref<9x4x4xf32, #tpu.memory_space<vmem>>, vector<1x4x4xf32>
    %29 = vector.shape_cast %28 : vector<1x4x4xf32> to vector<4x4xf32>
    %cst_49 = arith.constant dense<0.000000e+00> : vector<4x256xf32>
    %30 = tpu.matmul %29, %27, %cst_49 {dimension_numbers = #tpu.dot_dimension_numbers<[1], [0], [0], [1], [0, 0, 1, 1], [], []>} : vector<4x4xf32>, vector<4x256xf32>, vector<4x256xf32> -> vector<4x256xf32>
    %31 = arith.addf %25, %30 : vector<4x256xf32>
    %c0_50 = arith.constant 0 : index
    %c1_51 = arith.constant 1 : index
    %c0_52 = arith.constant 0 : index
    %32 = vector.load %arg7[%c0_50, %c1_51, %c0_52] : memref<4x18x18xf32, #tpu.memory_space<vmem>>, vector<4x16x16xf32>
    %33 = vector.shape_cast %32 : vector<4x16x16xf32> to vector<4x256xf32>
    %c3 = arith.constant 3 : index
    %c0_53 = arith.constant 0 : index
    %c0_54 = arith.constant 0 : index
    %34 = vector.load %arg2[%c3, %c0_53, %c0_54] : memref<9x4x4xf32, #tpu.memory_space<vmem>>, vector<1x4x4xf32>
    %35 = vector.shape_cast %34 : vector<1x4x4xf32> to vector<4x4xf32>
    %cst_55 = arith.constant dense<0.000000e+00> : vector<4x256xf32>
    %36 = tpu.matmul %35, %33, %cst_55 {dimension_numbers = #tpu.dot_dimension_numbers<[1], [0], [0], [1], [0, 0, 1, 1], [], []>} : vector<4x4xf32>, vector<4x256xf32>, vector<4x256xf32> -> vector<4x256xf32>
    %37 = arith.addf %31, %36 : vector<4x256xf32>
    %c0_56 = arith.constant 0 : index
    %c1_57 = arith.constant 1 : index
    %c1_58 = arith.constant 1 : index
    %38 = vector.load %arg7[%c0_56, %c1_57, %c1_58] : memref<4x18x18xf32, #tpu.memory_space<vmem>>, vector<4x16x16xf32>
    %39 = vector.shape_cast %38 : vector<4x16x16xf32> to vector<4x256xf32>
    %c4 = arith.constant 4 : index
    %c0_59 = arith.constant 0 : index
    %c0_60 = arith.constant 0 : index
    %40 = vector.load %arg2[%c4, %c0_59, %c0_60] : memref<9x4x4xf32, #tpu.memory_space<vmem>>, vector<1x4x4xf32>
    %41 = vector.shape_cast %40 : vector<1x4x4xf32> to vector<4x4xf32>
    %cst_61 = arith.constant dense<0.000000e+00> : vector<4x256xf32>
    %42 = tpu.matmul %41, %39, %cst_61 {dimension_numbers = #tpu.dot_dimension_numbers<[1], [0], [0], [1], [0, 0, 1, 1], [], []>} : vector<4x4xf32>, vector<4x256xf32>, vector<4x256xf32> -> vector<4x256xf32>
    %43 = arith.addf %37, %42 : vector<4x256xf32>
    %c0_62 = arith.constant 0 : index
    %c1_63 = arith.constant 1 : index
    %c2_64 = arith.constant 2 : index
    %44 = vector.load %arg7[%c0_62, %c1_63, %c2_64] : memref<4x18x18xf32, #tpu.memory_space<vmem>>, vector<4x16x16xf32>
    %45 = vector.shape_cast %44 : vector<4x16x16xf32> to vector<4x256xf32>
    %c5 = arith.constant 5 : index
    %c0_65 = arith.constant 0 : index
    %c0_66 = arith.constant 0 : index
    %46 = vector.load %arg2[%c5, %c0_65, %c0_66] : memref<9x4x4xf32, #tpu.memory_space<vmem>>, vector<1x4x4xf32>
    %47 = vector.shape_cast %46 : vector<1x4x4xf32> to vector<4x4xf32>
    %cst_67 = arith.constant dense<0.000000e+00> : vector<4x256xf32>
    %48 = tpu.matmul %47, %45, %cst_67 {dimension_numbers = #tpu.dot_dimension_numbers<[1], [0], [0], [1], [0, 0, 1, 1], [], []>} : vector<4x4xf32>, vector<4x256xf32>, vector<4x256xf32> -> vector<4x256xf32>
    %49 = arith.addf %43, %48 : vector<4x256xf32>
    %c0_68 = arith.constant 0 : index
    %c2_69 = arith.constant 2 : index
    %c0_70 = arith.constant 0 : index
    %50 = vector.load %arg7[%c0_68, %c2_69, %c0_70] : memref<4x18x18xf32, #tpu.memory_space<vmem>>, vector<4x16x16xf32>
    %51 = vector.shape_cast %50 : vector<4x16x16xf32> to vector<4x256xf32>
    %c6 = arith.constant 6 : index
    %c0_71 = arith.constant 0 : index
    %c0_72 = arith.constant 0 : index
    %52 = vector.load %arg2[%c6, %c0_71, %c0_72] : memref<9x4x4xf32, #tpu.memory_space<vmem>>, vector<1x4x4xf32>
    %53 = vector.shape_cast %52 : vector<1x4x4xf32> to vector<4x4xf32>
    %cst_73 = arith.constant dense<0.000000e+00> : vector<4x256xf32>
    %54 = tpu.matmul %53, %51, %cst_73 {dimension_numbers = #tpu.dot_dimension_numbers<[1], [0], [0], [1], [0, 0, 1, 1], [], []>} : vector<4x4xf32>, vector<4x256xf32>, vector<4x256xf32> -> vector<4x256xf32>
    %55 = arith.addf %49, %54 : vector<4x256xf32>
    %c0_74 = arith.constant 0 : index
    %c2_75 = arith.constant 2 : index
    %c1_76 = arith.constant 1 : index
    %56 = vector.load %arg7[%c0_74, %c2_75, %c1_76] : memref<4x18x18xf32, #tpu.memory_space<vmem>>, vector<4x16x16xf32>
    %57 = vector.shape_cast %56 : vector<4x16x16xf32> to vector<4x256xf32>
    %c7 = arith.constant 7 : index
    %c0_77 = arith.constant 0 : index
    %c0_78 = arith.constant 0 : index
    %58 = vector.load %arg2[%c7, %c0_77, %c0_78] : memref<9x4x4xf32, #tpu.memory_space<vmem>>, vector<1x4x4xf32>
    %59 = vector.shape_cast %58 : vector<1x4x4xf32> to vector<4x4xf32>
    %cst_79 = arith.constant dense<0.000000e+00> : vector<4x256xf32>
    %60 = tpu.matmul %59, %57, %cst_79 {dimension_numbers = #tpu.dot_dimension_numbers<[1], [0], [0], [1], [0, 0, 1, 1], [], []>} : vector<4x4xf32>, vector<4x256xf32>, vector<4x256xf32> -> vector<4x256xf32>
    %61 = arith.addf %55, %60 : vector<4x256xf32>
    %c0_80 = arith.constant 0 : index
    %c2_81 = arith.constant 2 : index
    %c2_82 = arith.constant 2 : index
    %62 = vector.load %arg7[%c0_80, %c2_81, %c2_82] : memref<4x18x18xf32, #tpu.memory_space<vmem>>, vector<4x16x16xf32>
    %63 = vector.shape_cast %62 : vector<4x16x16xf32> to vector<4x256xf32>
    %c8 = arith.constant 8 : index
    %c0_83 = arith.constant 0 : index
    %c0_84 = arith.constant 0 : index
    %64 = vector.load %arg2[%c8, %c0_83, %c0_84] : memref<9x4x4xf32, #tpu.memory_space<vmem>>, vector<1x4x4xf32>
    %65 = vector.shape_cast %64 : vector<1x4x4xf32> to vector<4x4xf32>
    %cst_85 = arith.constant dense<0.000000e+00> : vector<4x256xf32>
    %66 = tpu.matmul %65, %63, %cst_85 {dimension_numbers = #tpu.dot_dimension_numbers<[1], [0], [0], [1], [0, 0, 1, 1], [], []>} : vector<4x4xf32>, vector<4x256xf32>, vector<4x256xf32> -> vector<4x256xf32>
    %67 = arith.addf %61, %66 : vector<4x256xf32>
    %c0_86 = arith.constant 0 : index
    %c0_87 = arith.constant 0 : index
    %68 = vector.load %arg3[%c0_86, %c0_87] : memref<4x1xf32, #tpu.memory_space<vmem>>, vector<4x1xf32>
    %69 = vector.broadcast %68 : vector<4x1xf32> to vector<4x256xf32>
    %70 = arith.addf %67, %69 : vector<4x256xf32>
    %cst_88 = arith.constant 0.000000e+00 : f32
    %71 = vector.broadcast %cst_88 : f32 to vector<4x256xf32>
    %72 = arith.cmpf oge, %70, %71 : vector<4x256xf32>
    %cst_89 = arith.constant 1.000000e-01 : f32
    %73 = vector.broadcast %cst_89 : f32 to vector<4x256xf32>
    %74 = arith.mulf %73, %70 : vector<4x256xf32>
    %75 = arith.select %72, %70, %74 : vector<4x256xi1>, vector<4x256xf32>
    %76 = vector.shape_cast %75 : vector<4x256xf32> to vector<4x16x16xf32>
    %c0_90 = arith.constant 0 : index
    %c2_91 = arith.constant 2 : index
    %c2_92 = arith.constant 2 : index
    %77 = vector.load %arg8[%c0_90, %c2_91, %c2_92] : memref<4x20x20xf32, #tpu.memory_space<vmem>>, vector<4x16x16xf32>
    tpu.vector_store %arg8[%c0_90, %c2_91, %c2_92], %76 {strides = array<i32>} : memref<4x20x20xf32, #tpu.memory_space<vmem>>, vector<4x16x16xf32>,
    %c0_93 = arith.constant 0 : index
    %c0_94 = arith.constant 0 : index
    %c0_95 = arith.constant 0 : index
    %78 = vector.load %arg8[%c0_93, %c0_94, %c0_95] : memref<4x20x20xf32, #tpu.memory_space<vmem>>, vector<4x16x16xf32>
    %79 = vector.shape_cast %78 : vector<4x16x16xf32> to vector<4x256xf32>
    %c0_96 = arith.constant 0 : index
    %c0_97 = arith.constant 0 : index
    %c0_98 = arith.constant 0 : index
    %80 = vector.load %arg4[%c0_96, %c0_97, %c0_98] : memref<9x4x4xf32, #tpu.memory_space<vmem>>, vector<1x4x4xf32>
    %81 = vector.shape_cast %80 : vector<1x4x4xf32> to vector<4x4xf32>
    %cst_99 = arith.constant dense<0.000000e+00> : vector<4x256xf32>
    %82 = tpu.matmul %81, %79, %cst_99 {dimension_numbers = #tpu.dot_dimension_numbers<[1], [0], [0], [1], [0, 0, 1, 1], [], []>} : vector<4x4xf32>, vector<4x256xf32>, vector<4x256xf32> -> vector<4x256xf32>
    %c0_100 = arith.constant 0 : index
    %c0_101 = arith.constant 0 : index
    %c2_102 = arith.constant 2 : index
    %83 = vector.load %arg8[%c0_100, %c0_101, %c2_102] : memref<4x20x20xf32, #tpu.memory_space<vmem>>, vector<4x16x16xf32>
    %84 = vector.shape_cast %83 : vector<4x16x16xf32> to vector<4x256xf32>
    %c1_103 = arith.constant 1 : index
    %c0_104 = arith.constant 0 : index
    %c0_105 = arith.constant 0 : index
    %85 = vector.load %arg4[%c1_103, %c0_104, %c0_105] : memref<9x4x4xf32, #tpu.memory_space<vmem>>, vector<1x4x4xf32>
    %86 = vector.shape_cast %85 : vector<1x4x4xf32> to vector<4x4xf32>
    %cst_106 = arith.constant dense<0.000000e+00> : vector<4x256xf32>
    %87 = tpu.matmul %86, %84, %cst_106 {dimension_numbers = #tpu.dot_dimension_numbers<[1], [0], [0], [1], [0, 0, 1, 1], [], []>} : vector<4x4xf32>, vector<4x256xf32>, vector<4x256xf32> -> vector<4x256xf32>
    %88 = arith.addf %82, %87 : vector<4x256xf32>
    %c0_107 = arith.constant 0 : index
    %c0_108 = arith.constant 0 : index
    %c4_109 = arith.constant 4 : index
    %89 = vector.load %arg8[%c0_107, %c0_108, %c4_109] : memref<4x20x20xf32, #tpu.memory_space<vmem>>, vector<4x16x16xf32>
    %90 = vector.shape_cast %89 : vector<4x16x16xf32> to vector<4x256xf32>
    %c2_110 = arith.constant 2 : index
    %c0_111 = arith.constant 0 : index
    %c0_112 = arith.constant 0 : index
    %91 = vector.load %arg4[%c2_110, %c0_111, %c0_112] : memref<9x4x4xf32, #tpu.memory_space<vmem>>, vector<1x4x4xf32>
    %92 = vector.shape_cast %91 : vector<1x4x4xf32> to vector<4x4xf32>
    %cst_113 = arith.constant dense<0.000000e+00> : vector<4x256xf32>
    %93 = tpu.matmul %92, %90, %cst_113 {dimension_numbers = #tpu.dot_dimension_numbers<[1], [0], [0], [1], [0, 0, 1, 1], [], []>} : vector<4x4xf32>, vector<4x256xf32>, vector<4x256xf32> -> vector<4x256xf32>
    %94 = arith.addf %88, %93 : vector<4x256xf32>
    %c0_114 = arith.constant 0 : index
    %c2_115 = arith.constant 2 : index
    %c0_116 = arith.constant 0 : index
    %95 = vector.load %arg8[%c0_114, %c2_115, %c0_116] : memref<4x20x20xf32, #tpu.memory_space<vmem>>, vector<4x16x16xf32>
    %96 = vector.shape_cast %95 : vector<4x16x16xf32> to vector<4x256xf32>
    %c3_117 = arith.constant 3 : index
    %c0_118 = arith.constant 0 : index
    %c0_119 = arith.constant 0 : index
    %97 = vector.load %arg4[%c3_117, %c0_118, %c0_119] : memref<9x4x4xf32, #tpu.memory_space<vmem>>, vector<1x4x4xf32>
    %98 = vector.shape_cast %97 : vector<1x4x4xf32> to vector<4x4xf32>
    %cst_120 = arith.constant dense<0.000000e+00> : vector<4x256xf32>
    %99 = tpu.matmul %98, %96, %cst_120 {dimension_numbers = #tpu.dot_dimension_numbers<[1], [0], [0], [1], [0, 0, 1, 1], [], []>} : vector<4x4xf32>, vector<4x256xf32>, vector<4x256xf32> -> vector<4x256xf32>
    %100 = arith.addf %94, %99 : vector<4x256xf32>
    %c0_121 = arith.constant 0 : index
    %c2_122 = arith.constant 2 : index
    %c2_123 = arith.constant 2 : index
    %101 = vector.load %arg8[%c0_121, %c2_122, %c2_123] : memref<4x20x20xf32, #tpu.memory_space<vmem>>, vector<4x16x16xf32>
    %102 = vector.shape_cast %101 : vector<4x16x16xf32> to vector<4x256xf32>
    %c4_124 = arith.constant 4 : index
    %c0_125 = arith.constant 0 : index
    %c0_126 = arith.constant 0 : index
    %103 = vector.load %arg4[%c4_124, %c0_125, %c0_126] : memref<9x4x4xf32, #tpu.memory_space<vmem>>, vector<1x4x4xf32>
    %104 = vector.shape_cast %103 : vector<1x4x4xf32> to vector<4x4xf32>
    %cst_127 = arith.constant dense<0.000000e+00> : vector<4x256xf32>
    %105 = tpu.matmul %104, %102, %cst_127 {dimension_numbers = #tpu.dot_dimension_numbers<[1], [0], [0], [1], [0, 0, 1, 1], [], []>} : vector<4x4xf32>, vector<4x256xf32>, vector<4x256xf32> -> vector<4x256xf32>
    %106 = arith.addf %100, %105 : vector<4x256xf32>
    %c0_128 = arith.constant 0 : index
    %c2_129 = arith.constant 2 : index
    %c4_130 = arith.constant 4 : index
    %107 = vector.load %arg8[%c0_128, %c2_129, %c4_130] : memref<4x20x20xf32, #tpu.memory_space<vmem>>, vector<4x16x16xf32>
    %108 = vector.shape_cast %107 : vector<4x16x16xf32> to vector<4x256xf32>
    %c5_131 = arith.constant 5 : index
    %c0_132 = arith.constant 0 : index
    %c0_133 = arith.constant 0 : index
    %109 = vector.load %arg4[%c5_131, %c0_132, %c0_133] : memref<9x4x4xf32, #tpu.memory_space<vmem>>, vector<1x4x4xf32>
    %110 = vector.shape_cast %109 : vector<1x4x4xf32> to vector<4x4xf32>
    %cst_134 = arith.constant dense<0.000000e+00> : vector<4x256xf32>
    %111 = tpu.matmul %110, %108, %cst_134 {dimension_numbers = #tpu.dot_dimension_numbers<[1], [0], [0], [1], [0, 0, 1, 1], [], []>} : vector<4x4xf32>, vector<4x256xf32>, vector<4x256xf32> -> vector<4x256xf32>
    %112 = arith.addf %106, %111 : vector<4x256xf32>
    %c0_135 = arith.constant 0 : index
    %c4_136 = arith.constant 4 : index
    %c0_137 = arith.constant 0 : index
    %113 = vector.load %arg8[%c0_135, %c4_136, %c0_137] : memref<4x20x20xf32, #tpu.memory_space<vmem>>, vector<4x16x16xf32>
    %114 = vector.shape_cast %113 : vector<4x16x16xf32> to vector<4x256xf32>
    %c6_138 = arith.constant 6 : index
    %c0_139 = arith.constant 0 : index
    %c0_140 = arith.constant 0 : index
    %115 = vector.load %arg4[%c6_138, %c0_139, %c0_140] : memref<9x4x4xf32, #tpu.memory_space<vmem>>, vector<1x4x4xf32>
    %116 = vector.shape_cast %115 : vector<1x4x4xf32> to vector<4x4xf32>
    %cst_141 = arith.constant dense<0.000000e+00> : vector<4x256xf32>
    %117 = tpu.matmul %116, %114, %cst_141 {dimension_numbers = #tpu.dot_dimension_numbers<[1], [0], [0], [1], [0, 0, 1, 1], [], []>} : vector<4x4xf32>, vector<4x256xf32>, vector<4x256xf32> -> vector<4x256xf32>
    %118 = arith.addf %112, %117 : vector<4x256xf32>
    %c0_142 = arith.constant 0 : index
    %c4_143 = arith.constant 4 : index
    %c2_144 = arith.constant 2 : index
    %119 = vector.load %arg8[%c0_142, %c4_143, %c2_144] : memref<4x20x20xf32, #tpu.memory_space<vmem>>, vector<4x16x16xf32>
    %120 = vector.shape_cast %119 : vector<4x16x16xf32> to vector<4x256xf32>
    %c7_145 = arith.constant 7 : index
    %c0_146 = arith.constant 0 : index
    %c0_147 = arith.constant 0 : index
    %121 = vector.load %arg4[%c7_145, %c0_146, %c0_147] : memref<9x4x4xf32, #tpu.memory_space<vmem>>, vector<1x4x4xf32>
    %122 = vector.shape_cast %121 : vector<1x4x4xf32> to vector<4x4xf32>
    %cst_148 = arith.constant dense<0.000000e+00> : vector<4x256xf32>
    %123 = tpu.matmul %122, %120, %cst_148 {dimension_numbers = #tpu.dot_dimension_numbers<[1], [0], [0], [1], [0, 0, 1, 1], [], []>} : vector<4x4xf32>, vector<4x256xf32>, vector<4x256xf32> -> vector<4x256xf32>
    %124 = arith.addf %118, %123 : vector<4x256xf32>
    %c0_149 = arith.constant 0 : index
    %c4_150 = arith.constant 4 : index
    %c4_151 = arith.constant 4 : index
    %125 = vector.load %arg8[%c0_149, %c4_150, %c4_151] : memref<4x20x20xf32, #tpu.memory_space<vmem>>, vector<4x16x16xf32>
    %126 = vector.shape_cast %125 : vector<4x16x16xf32> to vector<4x256xf32>
    %c8_152 = arith.constant 8 : index
    %c0_153 = arith.constant 0 : index
    %c0_154 = arith.constant 0 : index
    %127 = vector.load %arg4[%c8_152, %c0_153, %c0_154] : memref<9x4x4xf32, #tpu.memory_space<vmem>>, vector<1x4x4xf32>
    %128 = vector.shape_cast %127 : vector<1x4x4xf32> to vector<4x4xf32>
    %cst_155 = arith.constant dense<0.000000e+00> : vector<4x256xf32>
    %129 = tpu.matmul %128, %126, %cst_155 {dimension_numbers = #tpu.dot_dimension_numbers<[1], [0], [0], [1], [0, 0, 1, 1], [], []>} : vector<4x4xf32>, vector<4x256xf32>, vector<4x256xf32> -> vector<4x256xf32>
    %130 = arith.addf %124, %129 : vector<4x256xf32>
    %c0_156 = arith.constant 0 : index
    %c0_157 = arith.constant 0 : index
    %131 = vector.load %arg5[%c0_156, %c0_157] : memref<4x1xf32, #tpu.memory_space<vmem>>, vector<4x1xf32>
    %132 = vector.broadcast %131 : vector<4x1xf32> to vector<4x256xf32>
    %133 = arith.addf %130, %132 : vector<4x256xf32>
    %134 = vector.shape_cast %13 : vector<4x16x16xf32> to vector<4x256xf32>
    %135 = arith.addf %133, %134 : vector<4x256xf32>
    %c0_158 = arith.constant 0 : index
    %c0_159 = arith.constant 0 : index
    %c0_160 = arith.constant 0 : index
    %136 = vector.load %arg6[%c0_158, %c0_159, %c0_160] : memref<1x4x256xf32, #tpu.memory_space<vmem>>, vector<1x4x256xf32>
    %137 = vector.shape_cast %136 : vector<1x4x256xf32> to vector<4x256xf32>
    %138 = vector.shape_cast %135 : vector<4x256xf32> to vector<1x4x256xf32>
    tpu.vector_store %arg6[%c0_158, %c0_159, %c0_160], %138 {strides = array<i32>} : memref<1x4x256xf32, #tpu.memory_space<vmem>>, vector<1x4x256xf32>,
    return
  }
  func.func @transform_0(%arg0: i32) -> (i32, i32, i32, i32) {
    %c0_i32 = arith.constant 0 : i32
    %c0_i32_0 = arith.constant 0 : i32
    %c0_i32_1 = arith.constant 0 : i32
    %c0_i32_2 = arith.constant 0 : i32
    return %arg0, %c0_i32, %c0_i32_0, %c0_i32_1 : i32, i32, i32, i32
  }
  func.func @transform_1(%arg0: i32) -> (i32, i32, i32) {
    %c0_i32 = arith.constant 0 : i32
    %c0_i32_0 = arith.constant 0 : i32
    %c0_i32_1 = arith.constant 0 : i32
    %c0_i32_2 = arith.constant 0 : i32
    return %c0_i32, %c0_i32_0, %c0_i32_1 : i32, i32, i32
  }
  func.func @transform_2(%arg0: i32) -> (i32, i32) {
    %c0_i32 = arith.constant 0 : i32
    %c0_i32_0 = arith.constant 0 : i32
    %c0_i32_1 = arith.constant 0 : i32
    return %c0_i32, %c0_i32_0 : i32, i32
  }
  func.func @transform_3(%arg0: i32) -> (i32, i32, i32) {
    %c0_i32 = arith.constant 0 : i32
    %c0_i32_0 = arith.constant 0 : i32
    %c0_i32_1 = arith.constant 0 : i32
    %c0_i32_2 = arith.constant 0 : i32
    return %c0_i32, %c0_i32_0, %c0_i32_1 : i32, i32, i32
  }
  func.func @transform_4(%arg0: i32) -> (i32, i32) {
    %c0_i32 = arith.constant 0 : i32
    %c0_i32_0 = arith.constant 0 : i32
    %c0_i32_1 = arith.constant 0 : i32
    return %c0_i32, %c0_i32_0 : i32, i32
  }
  func.func @transform_5(%arg0: i32) -> (i32, i32, i32) {
    %c0_i32 = arith.constant 0 : i32
    %c0_i32_0 = arith.constant 0 : i32
    %c0_i32_1 = arith.constant 0 : i32
    return %arg0, %c0_i32, %c0_i32_0 : i32, i32, i32
  }
}

</mosaic_0001>

<llo_original>
// kernel: tpu_custom_call.1
$region0: #{tpu_custom_call.1}
  #allocation0 [shape = 'u32[]', space=smem, size = 0x4, offset = 0x4, fixed_abs, tag = 'smem constant byte address 0x4 - core index']
  #allocation1 [shape = 'u32[72,128]{1,0:T(1,128)}', space=vmem, size = 0x9000, scoped, tag = 'internal scratch']
  #allocation2 [shape = 'f32[4,18,18]{2,1,0:T(8,128)}', space=vmem, size = 0xc000, scoped, tag = 'scratch operand']
  #allocation3 [shape = 'f32[4,20,20]{2,1,0:T(8,128)}', space=vmem, size = 0xc000, scoped, tag = 'scratch operand']
  %s0 = inlined_call_operand.hbm [shape: f32[2,4,16,16], index: 0, kind: input, shape index: {}]
  %s1 = inlined_call_operand.vmem [shape: f32[9,4,4], index: 1, kind: input, shape index: {}]
  %s2 = inlined_call_operand.vmem [shape: f32[4,1], index: 2, kind: input, shape index: {}]
  %s3 = inlined_call_operand.vmem [shape: f32[9,4,4], index: 3, kind: input, shape index: {}]
  %s4 = inlined_call_operand.vmem [shape: f32[4,1], index: 4, kind: input, shape index: {}]
  %s5 = inlined_call_operand.hbm [shape: f32[2,4,256], index: 5, kind: output, shape index: {}]
  %s6 = sld [smem:[#allocation0]]
  $region57: #{tpu_custom_call.1} parent=0
    _
  %s8 = ssub.s32 1, %s6
  %s9 = scalar_select 0, %s8, %s6
  $region1: #{tpu_custom_call.1} parent=0
    #allocation4 [shape = 'u8[65536]{0}', space=vmem, size = 0x10000, scoped, tag = 'input window, operand 0']
    #allocation5 [shape = 's32[2]{0}', space=sflag, size = 0x8, scoped, tag = 'scoped memory for tpu_custom_call.1']
    #allocation6 [shape = 's32[2]{0}', space=sflag, size = 0x8, scoped, tag = 'scoped memory for tpu_custom_call.1']
    #allocation7 [shape = 'u8[8192]{0}', space=vmem, size = 0x2000, scoped, tag = 'output window, operand 0']
    %10 = vsyncpa [#allocation5], 0
    %s11 = scalar_lea.sflag [#allocation5], 1
    %12 = vsyncpa %s11, 0
    %13 = vsyncpa [#allocation6], 0
    %s14 = scalar_lea.sflag [#allocation6], 1
    %15 = vsyncpa %s14, 0
    loop: start=0, step=1, limit=4
    $region2: #{tpu_custom_call.1} parent=1 // loop_pre_header
      _
    $region3: #{tpu_custom_call.1} parent=1 // loop_header
      %s17 = sphi 0, %s21
      %p18 = scmp.ge.s32.totalorder %s17, 4
      %s27 = sphi 0, %s29
      %s30 = sphi 0, %s27
      %s31 = sphi 0, %s30
      %s47 = sphi 0, %s31
      %s51 = sphi 0, %s51
      %s53 = sphi 0, %s51
      %s54 = sphi 0, %s53
      %s68 = sphi 0, %s54
      %s72 = sphi 0, %s72
      %s74 = sphi 0, %s72
      %s75 = sphi 0, %s74
      %s89 = sphi 0, %s75
      %s93 = sphi 0, %s93
      %s95 = sphi 0, %s93
      %s96 = sphi 0, %s95
      %s110 = sphi 0, %s96
      %s114 = sphi 0, %s114
      %s116 = sphi 0, %s114
      %s117 = sphi 0, %s116
      %s131 = sphi 0, %s117
      %s137 = sphi 0, %s139
      %s140 = sphi 0, %s137
      %s141 = sphi 0, %s140
      %s157 = sphi 0, %s141
    $region4: #{tpu_custom_call.1} parent=1 // loop_header_branch
      %20 = sbr.rel (%p18) target = $region8
    $region5: #{tpu_custom_call.1} parent=1 // loop_body
      %s22 = ssub.s32 %s17, 1
      %s23 = ssub.s32 %s17, 2
      %s24 = sadd.s32 %s17, 1
      %s25 = ssub.s32 %s17, %s24
      %p26 = scmp.eq.s32.totalorder %s25, 0
      %s28 = sadd.s32 %s27, 1
      %s29 = scalar_select %p26, %s27, %s28
      %p32 = pneg %p26
      %p33 = scmp.eq.s32.totalorder %s17, 1
      %p34 = por %p32, %p33
      %p35 = scmp.ne.s32.totalorder %s27, %s30
      %p36 = scmp.eq.s32.totalorder %s17, 0
      %p37 = por %p35, %p36
      %p38 = scmp.ne.s32.totalorder %s27, %s30
      %p39 = scmp.eq.s32.totalorder %s22, 1
      %p40 = por %p38, %p39
      %p41 = scmp.ne.s32.totalorder %s30, %s31
      %p42 = scmp.eq.s32.totalorder %s22, 0
      %p43 = por %p41, %p42
      %p44 = scmp.ne.s32.totalorder %s30, %s31
      %p45 = scmp.eq.s32.totalorder %s23, 1
      %p46 = por %p44, %p45
      %p48 = scmp.ne.s32.totalorder %s31, %s47
      %p49 = scmp.eq.s32.totalorder %s23, 0
      %p50 = por %p48, %p49
      %s52 = sadd.s32 %s51, 1
      %p55 = scmp.eq.s32.totalorder %s17, 1
      %p56 = scmp.ne.s32.totalorder %s51, %s53
      %p57 = scmp.eq.s32.totalorder %s17, 0
      %p58 = por %p56, %p57
      %p59 = scmp.ne.s32.totalorder %s51, %s53
      %p60 = scmp.eq.s32.totalorder %s22, 1
      %p61 = por %p59, %p60
      %p62 = scmp.ne.s32.totalorder %s53, %s54
      %p63 = scmp.eq.s32.totalorder %s22, 0
      %p64 = por %p62, %p63
      %p65 = scmp.ne.s32.totalorder %s53, %s54
      %p66 = scmp.eq.s32.totalorder %s23, 1
      %p67 = por %p65, %p66
      %p69 = scmp.ne.s32.totalorder %s54, %s68
      %p70 = scmp.eq.s32.totalorder %s23, 0
      %p71 = por %p69, %p70
      %s73 = sadd.s32 %s72, 1
      %p76 = scmp.eq.s32.totalorder %s17, 1
      %p77 = scmp.ne.s32.totalorder %s72, %s74
      %p78 = scmp.eq.s32.totalorder %s17, 0
      %p79 = por %p77, %p78
      %p80 = scmp.ne.s32.totalorder %s72, %s74
      %p81 = scmp.eq.s32.totalorder %s22, 1
      %p82 = por %p80, %p81
      %p83 = scmp.ne.s32.totalorder %s74, %s75
      %p84 = scmp.eq.s32.totalorder %s22, 0
      %p85 = por %p83, %p84
      %p86 = scmp.ne.s32.totalorder %s74, %s75
      %p87 = scmp.eq.s32.totalorder %s23, 1
      %p88 = por %p86, %p87
      %p90 = scmp.ne.s32.totalorder %s75, %s89
      %p91 = scmp.eq.s32.totalorder %s23, 0
      %p92 = por %p90, %p91
      %s94 = sadd.s32 %s93, 1
      %p97 = scmp.eq.s32.totalorder %s17, 1
      %p98 = scmp.ne.s32.totalorder %s93, %s95
      %p99 = scmp.eq.s32.totalorder %s17, 0
      %p100 = por %p98, %p99
      %p101 = scmp.ne.s32.totalorder %s93, %s95
      %p102 = scmp.eq.s32.totalorder %s22, 1
      %p103 = por %p101, %p102
      %p104 = scmp.ne.s32.totalorder %s95, %s96
      %p105 = scmp.eq.s32.totalorder %s22, 0
      %p106 = por %p104, %p105
      %p107 = scmp.ne.s32.totalorder %s95, %s96
      %p108 = scmp.eq.s32.totalorder %s23, 1
      %p109 = por %p107, %p108
      %p111 = scmp.ne.s32.totalorder %s96, %s110
      %p112 = scmp.eq.s32.totalorder %s23, 0
      %p113 = por %p111, %p112
      %s115 = sadd.s32 %s114, 1
      %p118 = scmp.eq.s32.totalorder %s17, 1
      %p119 = scmp.ne.s32.totalorder %s114, %s116
      %p120 = scmp.eq.s32.totalorder %s17, 0
      %p121 = por %p119, %p120
      %p122 = scmp.ne.s32.totalorder %s114, %s116
      %p123 = scmp.eq.s32.totalorder %s22, 1
      %p124 = por %p122, %p123
      %p125 = scmp.ne.s32.totalorder %s116, %s117
      %p126 = scmp.eq.s32.totalorder %s22, 0
      %p127 = por %p125, %p126
      %p128 = scmp.ne.s32.totalorder %s116, %s117
      %p129 = scmp.eq.s32.totalorder %s23, 1
      %p130 = por %p128, %p129
      %p132 = scmp.ne.s32.totalorder %s117, %s131
      %p133 = scmp.eq.s32.totalorder %s23, 0
      %p134 = por %p132, %p133
      %s135 = ssub.s32 %s17, %s24
      %p136 = scmp.eq.s32.totalorder %s135, 0
      %s138 = sadd.s32 %s137, 1
      %s139 = scalar_select %p136, %s137, %s138
      %p142 = pneg %p136
      %p143 = scmp.eq.s32.totalorder %s17, 1
      %p144 = por %p142, %p143
      %p145 = scmp.ne.s32.totalorder %s137, %s140
      %p146 = scmp.eq.s32.totalorder %s17, 0
      %p147 = por %p145, %p146
      %p148 = scmp.ne.s32.totalorder %s137, %s140
      %p149 = scmp.eq.s32.totalorder %s22, 1
      %p150 = por %p148, %p149
      %p151 = scmp.ne.s32.totalorder %s140, %s141
      %p152 = scmp.eq.s32.totalorder %s22, 0
      %p153 = por %p151, %p152
      %p154 = scmp.ne.s32.totalorder %s140, %s141
      %p155 = scmp.eq.s32.totalorder %s23, 1
      %p156 = por %p154, %p155
      %p158 = scmp.ne.s32.totalorder %s141, %s157
      %p159 = scmp.eq.s32.totalorder %s23, 0
      %p160 = por %p158, %p159
      %p161 = scmp.le.s32.totalorder 1, %s17
      %p162 = scmp.lt.s32.totalorder %s17, 3
      %p163 = pnand %p161, %p162
      %p164 = pneg %p163
      // Predicated region
      $region9: #{tpu_custom_call.1} parent=5 // pred_check
        _
      $region10: #{tpu_custom_call.1} parent=5 // pred_check_branch
        %166 = sbr.rel (%p163) target = $region12
      $region11: #{tpu_custom_call.1} parent=5 // pred_region
        %s167 = ssub.s32 %s17, 1
        // Predicated region
        $region13: #{tpu_custom_call.1} parent=11 // pred_check
          %p168 = pneg %p64
        $region14: #{tpu_custom_call.1} parent=11 // pred_check_branch
          %170 = sbr.rel (%p168) target = $region16
        $region15: #{tpu_custom_call.1} parent=11 // pred_region
          _
        $region16: #{tpu_custom_call.1} parent=11 // pred_fallthru
          _
        // Predicated region
        $region17: #{tpu_custom_call.1} parent=11 // pred_check
          %p171 = pneg %p85
        $region18: #{tpu_custom_call.1} parent=11 // pred_check_branch
          %173 = sbr.rel (%p171) target = $region20
        $region19: #{tpu_custom_call.1} parent=11 // pred_region
          _
        $region20: #{tpu_custom_call.1} parent=11 // pred_fallthru
          _
        // Predicated region
        $region21: #{tpu_custom_call.1} parent=11 // pred_check
          %p174 = pneg %p106
        $region22: #{tpu_custom_call.1} parent=11 // pred_check_branch
          %176 = sbr.rel (%p174) target = $region24
        $region23: #{tpu_custom_call.1} parent=11 // pred_region
          _
        $region24: #{tpu_custom_call.1} parent=11 // pred_fallthru
          _
        // Predicated region
        $region25: #{tpu_custom_call.1} parent=11 // pred_check
          %p177 = pneg %p127
        $region26: #{tpu_custom_call.1} parent=11 // pred_check_branch
          %179 = sbr.rel (%p177) target = $region28
        $region27: #{tpu_custom_call.1} parent=11 // pred_region
          _
        $region28: #{tpu_custom_call.1} parent=11 // pred_fallthru
          _
      $region12: #{tpu_custom_call.1} parent=5 // pred_fallthru
        _
      %p180 = scmp.lt.s32.totalorder %s17, 2
      // Predicated region
      $region29: #{tpu_custom_call.1} parent=5 // pred_check
        %p181 = pneg %p180
      $region30: #{tpu_custom_call.1} parent=5 // pred_check_branch
        %183 = sbr.rel (%p181) target = $region32
      $region31: #{tpu_custom_call.1} parent=5 // pred_region
        // Predicated region
        $region33: #{tpu_custom_call.1} parent=31 // pred_check
          %p184 = pneg %p37
        $region34: #{tpu_custom_call.1} parent=31 // pred_check_branch
          %186 = sbr.rel (%p184) target = $region36
        $region35: #{tpu_custom_call.1} parent=31 // pred_region
          %s187 = sand.u32 %s27, 1
          %s188 = scalar_lea.sflag [#allocation5], %s187
          %s189 = sand.u32 %s27, 1
          %s190 = smul.addr %s189, 64
          %s191 = scalar_lea.vmem [#allocation4], %s190
          %193 = vsyncadd %s188, 0
          %s194 = smul.addr %s17, 8
          %s195 = smul.addr %s194, 8
          %s196 = scalar_lea.hbm %s0, %s195
          %s197 = sshll.u32 %s196, 4
          %s198 = int_to_ptr.hbm [resolvable:$true] %s197
          %s199 = sshll.u32 %s191, 4
          %s200 = int_to_ptr.vmem [resolvable:$true] %s199
          %205 = dma.hbm_to_vmem [thread:$0]  %s198, 1024, %s200, %s188, 128, 128, 8
        $region36: #{tpu_custom_call.1} parent=31 // pred_fallthru
          _
      $region32: #{tpu_custom_call.1} parent=5 // pred_fallthru
        _
      %p206 = scmp.le.s32.totalorder 1, %s17
      %p207 = scmp.lt.s32.totalorder %s17, 3
      %p208 = pnand %p206, %p207
      %p209 = pneg %p208
      // Predicated region
      $region37: #{tpu_custom_call.1} parent=5 // pred_check
        _
      $region38: #{tpu_custom_call.1} parent=5 // pred_check_branch
        %211 = sbr.rel (%p208) target = $region40
      $region39: #{tpu_custom_call.1} parent=5 // pred_region
        %s212 = ssub.s32 %s17, 1
        %s213 = sand.u32 %s30, 1
        %s214 = scalar_lea.sflag [#allocation5], %s213
        %s215 = sand.u32 %s30, 1
        %s216 = smul.addr %s215, 64
        %s217 = scalar_lea.vmem [#allocation4], %s216
        // Predicated region
        $region41: #{tpu_custom_call.1} parent=39 // pred_check
          %p218 = pneg %p43
        $region42: #{tpu_custom_call.1} parent=39 // pred_check_branch
          %220 = sbr.rel (%p218) target = $region44
        $region43: #{tpu_custom_call.1} parent=39 // pred_region
          %222 = dma.done %s214, 1024
        $region44: #{tpu_custom_call.1} parent=39 // pred_fallthru
          _
        %s223 = sand.u32 %s30, 1
        %s224 = scalar_lea.sflag [#allocation5], %s223
        %s225 = sand.u32 %s30, 1
        %s226 = smul.addr %s225, 64
        %s227 = scalar_lea.vmem [#allocation4], %s226
        %p228 = pneg %p43
        %p229 = pneg %p40
        %p230 = pneg %p64
        %p231 = pneg %p61
        %p232 = pneg %p85
        %p233 = pneg %p82
        %p234 = pneg %p106
        %p235 = pneg %p103
        %p236 = pneg %p127
        %p237 = pneg %p124
        %p238 = pneg %p153
        %p239 = pneg %p150
        %s240 = sand.u32 %s140, 1
        %s241 = scalar_lea.sflag [#allocation6], %s240
        %s242 = sand.u32 %s140, 1
        %s243 = smul.addr %s242, 8
        %s244 = scalar_lea.vmem [#allocation7], %s243
        %vm245 = vcmask 139264
        %246 = vst.msk [vmem:[#allocation2] sm:$0x1] %vm245, 0.0
        %247 = vst.msk [vmem:[#allocation2 + $0x18] sm:$0x1] %vm245, 0.0
        %248 = vst.msk [vmem:[#allocation2 + $0x30] sm:$0x1] %vm245, 0.0
        %249 = vst.msk [vmem:[#allocation2 + $0x48] sm:$0x1] %vm245, 0.0
        %250 = vst.msk [vmem:[#allocation2 + $0x11] sm:$0x1] %vm245, 0.0
        %251 = vst.msk [vmem:[#allocation2 + $0x29] sm:$0x1] %vm245, 0.0
        %252 = vst.msk [vmem:[#allocation2 + $0x41] sm:$0x1] %vm245, 0.0
        %253 = vst.msk [vmem:[#allocation2 + $0x59] sm:$0x1] %vm245, 0.0
        %vm254 = vcmask 7168
        %255 = vst.msk [vmem:[#allocation2 + $0x1] sm:$0xff] %vm254, 0.0
        %256 = vst.msk [vmem:[#allocation2 + $0x9] sm:$0xff] %vm254, 0.0
        %257 = vst.msk [vmem:[#allocation2 + $0x19] sm:$0xff] %vm254, 0.0
        %258 = vst.msk [vmem:[#allocation2 + $0x21] sm:$0xff] %vm254, 0.0
        %259 = vst.msk [vmem:[#allocation2 + $0x31] sm:$0xff] %vm254, 0.0
        %260 = vst.msk [vmem:[#allocation2 + $0x39] sm:$0xff] %vm254, 0.0
        %261 = vst.msk [vmem:[#allocation2 + $0x49] sm:$0xff] %vm254, 0.0
        %262 = vst.msk [vmem:[#allocation2 + $0x51] sm:$0xff] %vm254, 0.0
        %vm263 = vcmask 146568
        %264 = vst.msk [vmem:[#allocation2 + $0x1] sm:$0xff] %vm263, 0.0
        %265 = vst.msk [vmem:[#allocation2 + $0x9] sm:$0xff] %vm263, 0.0
        %266 = vst.msk [vmem:[#allocation2 + $0x19] sm:$0xff] %vm263, 0.0
        %267 = vst.msk [vmem:[#allocation2 + $0x21] sm:$0xff] %vm263, 0.0
        %268 = vst.msk [vmem:[#allocation2 + $0x31] sm:$0xff] %vm263, 0.0
        %269 = vst.msk [vmem:[#allocation2 + $0x39] sm:$0xff] %vm263, 0.0
        %270 = vst.msk [vmem:[#allocation2 + $0x49] sm:$0xff] %vm263, 0.0
        %271 = vst.msk [vmem:[#allocation2 + $0x51] sm:$0xff] %vm263, 0.0
        %vm272 = vcmask 156672
        %273 = vst.msk [vmem:[#allocation3] sm:$0x3] %vm272, 0.0
        %274 = vst.msk [vmem:[#allocation3 + $0x18] sm:$0x3] %vm272, 0.0
        %275 = vst.msk [vmem:[#allocation3 + $0x30] sm:$0x3] %vm272, 0.0
        %276 = vst.msk [vmem:[#allocation3 + $0x48] sm:$0x3] %vm272, 0.0
        %277 = vst.msk [vmem:[#allocation3 + $0x12] sm:$0x3] %vm272, 0.0
        %278 = vst.msk [vmem:[#allocation3 + $0x2a] sm:$0x3] %vm272, 0.0
        %279 = vst.msk [vmem:[#allocation3 + $0x42] sm:$0x3] %vm272, 0.0
        %280 = vst.msk [vmem:[#allocation3 + $0x5a] sm:$0x3] %vm272, 0.0
        %vm281 = vcmask 15360
        %282 = vst.msk [vmem:[#allocation3 + $0x2] sm:$0xff] %vm281, 0.0
        %283 = vst.msk [vmem:[#allocation3 + $0xa] sm:$0xff] %vm281, 0.0
        %284 = vst.msk [vmem:[#allocation3 + $0x1a] sm:$0xff] %vm281, 0.0
        %285 = vst.msk [vmem:[#allocation3 + $0x22] sm:$0xff] %vm281, 0.0
        %286 = vst.msk [vmem:[#allocation3 + $0x32] sm:$0xff] %vm281, 0.0
        %287 = vst.msk [vmem:[#allocation3 + $0x3a] sm:$0xff] %vm281, 0.0
        %288 = vst.msk [vmem:[#allocation3 + $0x4a] sm:$0xff] %vm281, 0.0
        %289 = vst.msk [vmem:[#allocation3 + $0x52] sm:$0xff] %vm281, 0.0
        %vm290 = vcmask 162960
        %291 = vst.msk [vmem:[#allocation3 + $0x2] sm:$0xff] %vm290, 0.0
        %292 = vst.msk [vmem:[#allocation3 + $0xa] sm:$0xff] %vm290, 0.0
        %293 = vst.msk [vmem:[#allocation3 + $0x1a] sm:$0xff] %vm290, 0.0
        %294 = vst.msk [vmem:[#allocation3 + $0x22] sm:$0xff] %vm290, 0.0
        %295 = vst.msk [vmem:[#allocation3 + $0x32] sm:$0xff] %vm290, 0.0
        %296 = vst.msk [vmem:[#allocation3 + $0x3a] sm:$0xff] %vm290, 0.0
        %297 = vst.msk [vmem:[#allocation3 + $0x4a] sm:$0xff] %vm290, 0.0
        %298 = vst.msk [vmem:[#allocation3 + $0x52] sm:$0xff] %vm290, 0.0
        %v299 = vld [vmem:[%s217] sm:$0xff]
        %v300 = vld [vmem:[%s217 + $0x8] sm:$0xff]
        %v301 = vld [vmem:[%s217 + $0x10] sm:$0xff]
        %v302 = vld [vmem:[%s217 + $0x18] sm:$0xff]
        %v303 = vld [vmem:[%s217 + $0x20] sm:$0xff]
        %v304 = vld [vmem:[%s217 + $0x28] sm:$0xff]
        %v305 = vld [vmem:[%s217 + $0x30] sm:$0xff]
        %v306 = vld [vmem:[%s217 + $0x38] sm:$0xff]
        %315 = vrot.lane.b32.xlu0 %v299, 1
        %v316 = vpop.permute.xlu0 %315
        %317 = vrot.lane.b32.xlu0 %v300, 1
        %v318 = vpop.permute.xlu0 %317
        %319 = vrot.lane.b32.xlu0 %v301, 1
        %v320 = vpop.permute.xlu0 %319
        %321 = vrot.lane.b32.xlu0 %v302, 1
        %v322 = vpop.permute.xlu0 %321
        %323 = vrot.lane.b32.xlu0 %v303, 1
        %v324 = vpop.permute.xlu0 %323
        %325 = vrot.lane.b32.xlu0 %v304, 1
        %v326 = vpop.permute.xlu0 %325
        %327 = vrot.lane.b32.xlu0 %v305, 1
        %v328 = vpop.permute.xlu0 %327
        %329 = vrot.lane.b32.xlu0 %v306, 1
        %v330 = vpop.permute.xlu0 %329
        %vm339 = vcmask 138248
        %340 = vst.msk [vmem:[#allocation2 + $0x1] sm:$0xff] %vm339, %v316
        %341 = vst.msk [vmem:[#allocation2 + $0x9] sm:$0xff] %vm339, %v318
        %342 = vst.msk [vmem:[#allocation2 + $0x19] sm:$0xff] %vm339, %v320
        %343 = vst.msk [vmem:[#allocation2 + $0x21] sm:$0xff] %vm339, %v322
        %344 = vst.msk [vmem:[#allocation2 + $0x31] sm:$0xff] %vm339, %v324
        %345 = vst.msk [vmem:[#allocation2 + $0x39] sm:$0xff] %vm339, %v326
        %346 = vst.msk [vmem:[#allocation2 + $0x49] sm:$0xff] %vm339, %v328
        %347 = vst.msk [vmem:[#allocation2 + $0x51] sm:$0xff] %vm339, %v330
        %v348 = vld [vmem:[#allocation2] sm:$0xff]
        %v349 = vld [vmem:[#allocation2 + $0x8] sm:$0xff]
        %v350 = vld [vmem:[#allocation2 + $0x18] sm:$0xff]
        %v351 = vld [vmem:[#allocation2 + $0x20] sm:$0xff]
        %v352 = vld [vmem:[#allocation2 + $0x30] sm:$0xff]
        %v353 = vld [vmem:[#allocation2 + $0x38] sm:$0xff]
        %v354 = vld [vmem:[#allocation2 + $0x48] sm:$0xff]
        %v355 = vld [vmem:[#allocation2 + $0x50] sm:$0xff]
        %v356 = vrot.slane %v352, 4
        %vm357 = vcmask 1047556
        %v358 = vsel %vm357, %v356, %v348
        %v359 = vrot.slane %v348, 4
        %v360 = vsel %vm357, %v352, %v359
        %v362 = vunpack.c.l.s4 1983009808
        %v363 = vunpack.c.0.s8 %v362
        %v364 = vperm.slane %v358, %v363
        %v366 = vunpack.c.l.s4 1983009808
        %v367 = vunpack.c.0.s8 %v366
        %v368 = vperm.slane %v360, %v367
        %v369 = vrot.slane %v354, 4
        %v370 = vsel %vm357, %v369, %v350
        %v371 = vrot.slane %v350, 4
        %v372 = vsel %vm357, %v354, %v371
        %v374 = vunpack.c.l.s4 1983009808
        %v375 = vunpack.c.0.s8 %v374
        %v376 = vperm.slane %v370, %v375
        %v378 = vunpack.c.l.s4 1983009808
        %v379 = vunpack.c.0.s8 %v378
        %v380 = vperm.slane %v372, %v379
        %v381 = vrot.slane %v376, 4
        %v382 = vsel %vm357, %v381, %v364
        %v383 = vrot.slane %v364, 4
        %v384 = vsel %vm357, %v376, %v383
        %v386 = vunpack.c.l.s4 1934713408
        %v387 = vunpack.c.0.s8 %v386
        %v388 = vperm.slane %v382, %v387
        %v390 = vunpack.c.l.s4 1934713408
        %v391 = vunpack.c.0.s8 %v390
        %v392 = vperm.slane %v384, %v391
        %v393 = vrot.slane %v380, 4
        %v394 = vsel %vm357, %v393, %v368
        %v395 = vrot.slane %v368, 4
        %v396 = vsel %vm357, %v380, %v395
        %v398 = vunpack.c.l.s4 1934713408
        %v399 = vunpack.c.0.s8 %v398
        %v400 = vperm.slane %v394, %v399
        %v402 = vunpack.c.l.s4 1934713408
        %v403 = vunpack.c.0.s8 %v402
        %v404 = vperm.slane %v396, %v403
        %v405 = vrot.slane %v388, 4
        %v406 = vsel %vm357, 0.0, %v405
        %v407 = vrot.slane %v392, 4
        %v408 = vsel %vm357, 0.0, %v407
        %v409 = vrot.slane %v400, 4
        %v410 = vsel %vm357, 0.0, %v409
        %v411 = vrot.slane %v404, 4
        %v412 = vsel %vm357, 0.0, %v411
        %v413 = vrot.slane %v353, 4
        %v414 = vsel %vm357, %v413, %v349
        %v415 = vrot.slane %v349, 4
        %v416 = vsel %vm357, %v353, %v415
        %v418 = vunpack.c.l.s4 1983009808
        %v419 = vunpack.c.0.s8 %v418
        %v420 = vperm.slane %v414, %v419
        %v422 = vunpack.c.l.s4 1983009808
        %v423 = vunpack.c.0.s8 %v422
        %v424 = vperm.slane %v416, %v423
        %v425 = vrot.slane %v355, 4
        %v426 = vsel %vm357, %v425, %v351
        %v427 = vrot.slane %v351, 4
        %v428 = vsel %vm357, %v355, %v427
        %v430 = vunpack.c.l.s4 1983009808
        %v431 = vunpack.c.0.s8 %v430
        %v432 = vperm.slane %v426, %v431
        %v434 = vunpack.c.l.s4 1983009808
        %v435 = vunpack.c.0.s8 %v434
        %v436 = vperm.slane %v428, %v435
        %v437 = vrot.slane %v432, 4
        %v438 = vsel %vm357, %v437, %v420
        %v439 = vrot.slane %v420, 4
        %v440 = vsel %vm357, %v432, %v439
        %v442 = vunpack.c.l.s4 1934713408
        %v443 = vunpack.c.0.s8 %v442
        %v444 = vperm.slane %v438, %v443
        %v446 = vunpack.c.l.s4 1934713408
        %v447 = vunpack.c.0.s8 %v446
        %v448 = vperm.slane %v440, %v447
        %v449 = vrot.slane %v436, 4
        %v450 = vsel %vm357, %v449, %v424
        %v451 = vrot.slane %v424, 4
        %v452 = vsel %vm357, %v436, %v451
        %v454 = vunpack.c.l.s4 1934713408
        %v455 = vunpack.c.0.s8 %v454
        %v456 = vperm.slane %v450, %v455
        %v458 = vunpack.c.l.s4 1934713408
        %v459 = vunpack.c.0.s8 %v458
        %v460 = vperm.slane %v452, %v459
        %v461 = vrot.slane %v444, 4
        %v462 = vsel %vm357, 0.0, %v461
        %v463 = vrot.slane %v448, 4
        %v464 = vsel %vm357, 0.0, %v463
        %v465 = vrot.slane %v456, 4
        %v466 = vsel %vm357, 0.0, %v465
        %v467 = vrot.slane %v460, 4
        %v468 = vsel %vm357, 0.0, %v467
        %470 = vrot.lane.b32.xlu0 %v406, 16
        %v471 = vpop.permute.xlu0 %470
        %474 = vrot.lane.b32.xlu0 %v392, 32
        %v475 = vpop.permute.xlu0 %474
        %478 = vrot.lane.b32.xlu0 %v408, 48
        %v479 = vpop.permute.xlu0 %478
        %482 = vrot.lane.b32.xlu0 %v400, 64
        %v483 = vpop.permute.xlu0 %482
        %486 = vrot.lane.b32.xlu0 %v410, 80
        %v487 = vpop.permute.xlu0 %486
        %490 = vrot.lane.b32.xlu0 %v404, 96
        %v491 = vpop.permute.xlu0 %490
        %494 = vrot.lane.b32.xlu0 %v412, 112
        %v495 = vpop.permute.xlu0 %494
        %498 = vrot.lane.b32.xlu0 %v462, 16
        %v499 = vpop.permute.xlu0 %498
        %502 = vrot.lane.b32.xlu0 %v448, 32
        %v503 = vpop.permute.xlu0 %502
        %506 = vrot.lane.b32.xlu0 %v464, 48
        %v507 = vpop.permute.xlu0 %506
        %510 = vrot.lane.b32.xlu0 %v456, 64
        %v511 = vpop.permute.xlu0 %510
        %514 = vrot.lane.b32.xlu0 %v466, 80
        %v515 = vpop.permute.xlu0 %514
        %518 = vrot.lane.b32.xlu0 %v460, 96
        %v519 = vpop.permute.xlu0 %518
        %522 = vrot.lane.b32.xlu0 %v468, 112
        %v523 = vpop.permute.xlu0 %522
        %vm525 = vcmask 130048
        %v526 = vsel %vm525, %v388, %v471
        %vm527 = vcmask 261120
        %v528 = vsel %vm527, %v526, %v475
        %vm529 = vcmask 392192
        %v530 = vsel %vm529, %v528, %v479
        %vm531 = vcmask 523264
        %v532 = vsel %vm531, %v530, %v483
        %vm533 = vcmask 654336
        %v534 = vsel %vm533, %v532, %v487
        %vm535 = vcmask 785408
        %v536 = vsel %vm535, %v534, %v491
        %vm537 = vcmask 916480
        %v538 = vsel %vm537, %v536, %v495
        %v539 = vsel %vm525, %v444, %v499
        %v540 = vsel %vm527, %v539, %v503
        %v541 = vsel %vm529, %v540, %v507
        %v542 = vsel %vm531, %v541, %v511
        %v543 = vsel %vm533, %v542, %v515
        %v544 = vsel %vm535, %v543, %v519
        %v545 = vsel %vm537, %v544, %v523
        %v546 = vld [vmem:[%s1] sm:$0xf]
        %555 = vrot.lane.b32.xlu0 %v348, 127
        %v556 = vpop.permute.xlu0 %555
        %557 = vrot.lane.b32.xlu0 %v349, 127
        %v558 = vpop.permute.xlu0 %557
        %559 = vrot.lane.b32.xlu0 %v350, 127
        %v560 = vpop.permute.xlu0 %559
        %561 = vrot.lane.b32.xlu0 %v351, 127
        %v562 = vpop.permute.xlu0 %561
        %563 = vrot.lane.b32.xlu0 %v352, 127
        %v564 = vpop.permute.xlu0 %563
        %565 = vrot.lane.b32.xlu0 %v353, 127
        %v566 = vpop.permute.xlu0 %565
        %567 = vrot.lane.b32.xlu0 %v354, 127
        %v568 = vpop.permute.xlu0 %567
        %569 = vrot.lane.b32.xlu0 %v355, 127
        %v570 = vpop.permute.xlu0 %569
        %v579 = vrot.slane %v564, 4
        %v580 = vsel %vm357, %v579, %v556
        %v581 = vrot.slane %v556, 4
        %v582 = vsel %vm357, %v564, %v581
        %v584 = vunpack.c.l.s4 1983009808
        %v585 = vunpack.c.0.s8 %v584
        %v586 = vperm.slane %v580, %v585
        %v588 = vunpack.c.l.s4 1983009808
        %v589 = vunpack.c.0.s8 %v588
        %v590 = vperm.slane %v582, %v589
        %v591 = vrot.slane %v568, 4
        %v592 = vsel %vm357, %v591, %v560
        %v593 = vrot.slane %v560, 4
        %v594 = vsel %vm357, %v568, %v593
        %v596 = vunpack.c.l.s4 1983009808
        %v597 = vunpack.c.0.s8 %v596
        %v598 = vperm.slane %v592, %v597
        %v600 = vunpack.c.l.s4 1983009808
        %v601 = vunpack.c.0.s8 %v600
        %v602 = vperm.slane %v594, %v601
        %v603 = vrot.slane %v598, 4
        %v604 = vsel %vm357, %v603, %v586
        %v605 = vrot.slane %v586, 4
        %v606 = vsel %vm357, %v598, %v605
        %v608 = vunpack.c.l.s4 1934713408
        %v609 = vunpack.c.0.s8 %v608
        %v610 = vperm.slane %v604, %v609
        %v612 = vunpack.c.l.s4 1934713408
        %v613 = vunpack.c.0.s8 %v612
        %v614 = vperm.slane %v606, %v613
        %v615 = vrot.slane %v602, 4
        %v616 = vsel %vm357, %v615, %v590
        %v617 = vrot.slane %v590, 4
        %v618 = vsel %vm357, %v602, %v617
        %v620 = vunpack.c.l.s4 1934713408
        %v621 = vunpack.c.0.s8 %v620
        %v622 = vperm.slane %v616, %v621
        %v624 = vunpack.c.l.s4 1934713408
        %v625 = vunpack.c.0.s8 %v624
        %v626 = vperm.slane %v618, %v625
        %v627 = vrot.slane %v610, 4
        %v628 = vsel %vm357, 0.0, %v627
        %v629 = vrot.slane %v614, 4
        %v630 = vsel %vm357, 0.0, %v629
        %v631 = vrot.slane %v622, 4
        %v632 = vsel %vm357, 0.0, %v631
        %v633 = vrot.slane %v626, 4
        %v634 = vsel %vm357, 0.0, %v633
        %v635 = vrot.slane %v566, 4
        %v636 = vsel %vm357, %v635, %v558
        %v637 = vrot.slane %v558, 4
        %v638 = vsel %vm357, %v566, %v637
        %v640 = vunpack.c.l.s4 1983009808
        %v641 = vunpack.c.0.s8 %v640
        %v642 = vperm.slane %v636, %v641
        %v644 = vunpack.c.l.s4 1983009808
        %v645 = vunpack.c.0.s8 %v644
        %v646 = vperm.slane %v638, %v645
        %v647 = vrot.slane %v570, 4
        %v648 = vsel %vm357, %v647, %v562
        %v649 = vrot.slane %v562, 4
        %v650 = vsel %vm357, %v570, %v649
        %v652 = vunpack.c.l.s4 1983009808
        %v653 = vunpack.c.0.s8 %v652
        %v654 = vperm.slane %v648, %v653
        %v656 = vunpack.c.l.s4 1983009808
        %v657 = vunpack.c.0.s8 %v656
        %v658 = vperm.slane %v650, %v657
        %v659 = vrot.slane %v654, 4
        %v660 = vsel %vm357, %v659, %v642
        %v661 = vrot.slane %v642, 4
        %v662 = vsel %vm357, %v654, %v661
        %v664 = vunpack.c.l.s4 1934713408
        %v665 = vunpack.c.0.s8 %v664
        %v666 = vperm.slane %v660, %v665
        %v668 = vunpack.c.l.s4 1934713408
        %v669 = vunpack.c.0.s8 %v668
        %v670 = vperm.slane %v662, %v669
        %v671 = vrot.slane %v658, 4
        %v672 = vsel %vm357, %v671, %v646
        %v673 = vrot.slane %v646, 4
        %v674 = vsel %vm357, %v658, %v673
        %v676 = vunpack.c.l.s4 1934713408
        %v677 = vunpack.c.0.s8 %v676
        %v678 = vperm.slane %v672, %v677
        %v680 = vunpack.c.l.s4 1934713408
        %v681 = vunpack.c.0.s8 %v680
        %v682 = vperm.slane %v674, %v681
        %v683 = vrot.slane %v666, 4
        %v684 = vsel %vm357, 0.0, %v683
        %v685 = vrot.slane %v670, 4
        %v686 = vsel %vm357, 0.0, %v685
        %v687 = vrot.slane %v678, 4
        %v688 = vsel %vm357, 0.0, %v687
        %v689 = vrot.slane %v682, 4
        %v690 = vsel %vm357, 0.0, %v689
        %692 = vrot.lane.b32.xlu0 %v628, 16
        %v693 = vpop.permute.xlu0 %692
        %696 = vrot.lane.b32.xlu0 %v614, 32
        %v697 = vpop.permute.xlu0 %696
        %700 = vrot.lane.b32.xlu0 %v630, 48
        %v701 = vpop.permute.xlu0 %700
        %704 = vrot.lane.b32.xlu0 %v622, 64
        %v705 = vpop.permute.xlu0 %704
        %708 = vrot.lane.b32.xlu0 %v632, 80
        %v709 = vpop.permute.xlu0 %708
        %712 = vrot.lane.b32.xlu0 %v626, 96
        %v713 = vpop.permute.xlu0 %712
        %716 = vrot.lane.b32.xlu0 %v634, 112
        %v717 = vpop.permute.xlu0 %716
        %720 = vrot.lane.b32.xlu0 %v684, 16
        %v721 = vpop.permute.xlu0 %720
        %724 = vrot.lane.b32.xlu0 %v670, 32
        %v725 = vpop.permute.xlu0 %724
        %728 = vrot.lane.b32.xlu0 %v686, 48
        %v729 = vpop.permute.xlu0 %728
        %732 = vrot.lane.b32.xlu0 %v678, 64
        %v733 = vpop.permute.xlu0 %732
        %736 = vrot.lane.b32.xlu0 %v688, 80
        %v737 = vpop.permute.xlu0 %736
        %740 = vrot.lane.b32.xlu0 %v682, 96
        %v741 = vpop.permute.xlu0 %740
        %744 = vrot.lane.b32.xlu0 %v690, 112
        %v745 = vpop.permute.xlu0 %744
        %v747 = vsel %vm525, %v610, %v693
        %v748 = vsel %vm527, %v747, %v697
        %v749 = vsel %vm529, %v748, %v701
        %v750 = vsel %vm531, %v749, %v705
        %v751 = vsel %vm533, %v750, %v709
        %v752 = vsel %vm535, %v751, %v713
        %v753 = vsel %vm537, %v752, %v717
        %v754 = vsel %vm525, %v666, %v721
        %v755 = vsel %vm527, %v754, %v725
        %v756 = vsel %vm529, %v755, %v729
        %v757 = vsel %vm531, %v756, %v733
        %v758 = vsel %vm533, %v757, %v737
        %v759 = vsel %vm535, %v758, %v741
        %v760 = vsel %vm537, %v759, %v745
        %s761 = scalar_lea.vmem %s1, 4
        %v762 = vld [vmem:[%s761] sm:$0xf]
        %vm763 = vcmask 31744
        %v765 = vsel %vm763, %v762, 0
        %vm767 = vcmask 1043456
        %v769 = vsel %vm767, %v753, 0
        %v772 = vsel %vm767, %v760, 0
        %774 = vmatpush.msra.mxu0 0.0
        %775 = vmatpush.msra.mxu0 0.0
        %776 = vmatpush.msra.mxu0 0.0
        %777 = vmatpush.msra.mxu0 0.0
        %778 = vmatpush.msra.mxu0 0.0
        %779 = vmatpush.msra.mxu0 0.0
        %780 = vmatpush.msra.mxu0 0.0
        %781 = vmatpush.msra.mxu0 0.0
        %782 = vmatpush.msra.mxu0 0.0
        %783 = vmatpush.msra.mxu0 0.0
        %784 = vmatpush.msra.mxu0 0.0
        %785 = vmatpush.msra.mxu0 0.0
        %786 = vmatpush.msra.mxu0 0.0
        %787 = vmatpush.msra.mxu0 0.0
        %788 = vmatpush.msra.mxu0 0.0
        %789 = vmatpush.msra.mxu0 %v769
        %790 = vmatmul.f32.gmra.mxu0 %v765
        %v791 = vpop.f32.mrf.mxu0
        %v792 = vadd.f32 0.0, %v791
        %793 = vdwg.mxu0
        %794 = vmatpush.msra.mxu0 0.0
        %795 = vmatpush.msra.mxu0 0.0
        %796 = vmatpush.msra.mxu0 0.0
        %797 = vmatpush.msra.mxu0 0.0
        %798 = vmatpush.msra.mxu0 0.0
        %799 = vmatpush.msra.mxu0 0.0
        %800 = vmatpush.msra.mxu0 0.0
        %801 = vmatpush.msra.mxu0 0.0
        %802 = vmatpush.msra.mxu0 0.0
        %803 = vmatpush.msra.mxu0 0.0
        %804 = vmatpush.msra.mxu0 0.0
        %805 = vmatpush.msra.mxu0 0.0
        %806 = vmatpush.msra.mxu0 0.0
        %807 = vmatpush.msra.mxu0 0.0
        %808 = vmatpush.msra.mxu0 0.0
        %809 = vmatpush.msra.mxu0 %v772
        %810 = vmatmul.f32.gmra.mxu0 %v765
        %v811 = vpop.f32.mrf.mxu0
        %v812 = vadd.f32 0.0, %v811
        %813 = vdwg.mxu0
        %v815 = vsel %vm763, %v546, 0
        %v818 = vsel %vm767, %v538, 0
        %v821 = vsel %vm767, %v545, 0
        %823 = vmatpush.msra.mxu0 0.0
        %824 = vmatpush.msra.mxu0 0.0
        %825 = vmatpush.msra.mxu0 0.0
        %826 = vmatpush.msra.mxu0 0.0
        %827 = vmatpush.msra.mxu0 0.0
        %828 = vmatpush.msra.mxu0 0.0
        %829 = vmatpush.msra.mxu0 0.0
        %830 = vmatpush.msra.mxu0 0.0
        %831 = vmatpush.msra.mxu0 0.0
        %832 = vmatpush.msra.mxu0 0.0
        %833 = vmatpush.msra.mxu0 0.0
        %834 = vmatpush.msra.mxu0 0.0
        %835 = vmatpush.msra.mxu0 0.0
        %836 = vmatpush.msra.mxu0 0.0
        %837 = vmatpush.msra.mxu0 0.0
        %838 = vmatpush.msra.mxu0 %v818
        %839 = vmatmul.f32.gmra.mxu0 %v815
        %v840 = vpop.f32.mrf.mxu0
        %v841 = vadd.f32 %v792, %v840
        %842 = vdwg.mxu0
        %843 = vmatpush.msra.mxu0 0.0
        %844 = vmatpush.msra.mxu0 0.0
        %845 = vmatpush.msra.mxu0 0.0
        %846 = vmatpush.msra.mxu0 0.0
        %847 = vmatpush.msra.mxu0 0.0
        %848 = vmatpush.msra.mxu0 0.0
        %849 = vmatpush.msra.mxu0 0.0
        %850 = vmatpush.msra.mxu0 0.0
        %851 = vmatpush.msra.mxu0 0.0
        %852 = vmatpush.msra.mxu0 0.0
        %853 = vmatpush.msra.mxu0 0.0
        %854 = vmatpush.msra.mxu0 0.0
        %855 = vmatpush.msra.mxu0 0.0
        %856 = vmatpush.msra.mxu0 0.0
        %857 = vmatpush.msra.mxu0 0.0
        %858 = vmatpush.msra.mxu0 %v821
        %859 = vmatmul.f32.gmra.mxu0 %v815
        %v860 = vpop.f32.mrf.mxu0
        %v861 = vadd.f32 %v812, %v860
        %862 = vdwg.mxu0
        %v863 = vld [vmem:[#allocation2] sm:$0xff]
        %v864 = vld [vmem:[#allocation2 + $0x8] sm:$0xff]
        %v865 = vld [vmem:[#allocation2 + $0x18] sm:$0xff]
        %v866 = vld [vmem:[#allocation2 + $0x20] sm:$0xff]
        %v867 = vld [vmem:[#allocation2 + $0x30] sm:$0xff]
        %v868 = vld [vmem:[#allocation2 + $0x38] sm:$0xff]
        %v869 = vld [vmem:[#allocation2 + $0x48] sm:$0xff]
        %v870 = vld [vmem:[#allocation2 + $0x50] sm:$0xff]
        %879 = vrot.lane.b32.xlu0 %v863, 126
        %v880 = vpop.permute.xlu0 %879
        %881 = vrot.lane.b32.xlu0 %v864, 126
        %v882 = vpop.permute.xlu0 %881
        %883 = vrot.lane.b32.xlu0 %v865, 126
        %v884 = vpop.permute.xlu0 %883
        %885 = vrot.lane.b32.xlu0 %v866, 126
        %v886 = vpop.permute.xlu0 %885
        %887 = vrot.lane.b32.xlu0 %v867, 126
        %v888 = vpop.permute.xlu0 %887
        %889 = vrot.lane.b32.xlu0 %v868, 126
        %v890 = vpop.permute.xlu0 %889
        %891 = vrot.lane.b32.xlu0 %v869, 126
        %v892 = vpop.permute.xlu0 %891
        %893 = vrot.lane.b32.xlu0 %v870, 126
        %v894 = vpop.permute.xlu0 %893
        %v903 = vrot.slane %v888, 4
        %v904 = vsel %vm357, %v903, %v880
        %v905 = vrot.slane %v880, 4
        %v906 = vsel %vm357, %v888, %v905
        %v908 = vunpack.c.l.s4 1983009808
        %v909 = vunpack.c.0.s8 %v908
        %v910 = vperm.slane %v904, %v909
        %v912 = vunpack.c.l.s4 1983009808
        %v913 = vunpack.c.0.s8 %v912
        %v914 = vperm.slane %v906, %v913
        %v915 = vrot.slane %v892, 4
        %v916 = vsel %vm357, %v915, %v884
        %v917 = vrot.slane %v884, 4
        %v918 = vsel %vm357, %v892, %v917
        %v920 = vunpack.c.l.s4 1983009808
        %v921 = vunpack.c.0.s8 %v920
        %v922 = vperm.slane %v916, %v921
        %v924 = vunpack.c.l.s4 1983009808
        %v925 = vunpack.c.0.s8 %v924
        %v926 = vperm.slane %v918, %v925
        %v927 = vrot.slane %v922, 4
        %v928 = vsel %vm357, %v927, %v910
        %v929 = vrot.slane %v910, 4
        %v930 = vsel %vm357, %v922, %v929
        %v932 = vunpack.c.l.s4 1934713408
        %v933 = vunpack.c.0.s8 %v932
        %v934 = vperm.slane %v928, %v933
        %v936 = vunpack.c.l.s4 1934713408
        %v937 = vunpack.c.0.s8 %v936
        %v938 = vperm.slane %v930, %v937
        %v939 = vrot.slane %v926, 4
        %v940 = vsel %vm357, %v939, %v914
        %v941 = vrot.slane %v914, 4
        %v942 = vsel %vm357, %v926, %v941
        %v944 = vunpack.c.l.s4 1934713408
        %v945 = vunpack.c.0.s8 %v944
        %v946 = vperm.slane %v940, %v945
        %v948 = vunpack.c.l.s4 1934713408
        %v949 = vunpack.c.0.s8 %v948
        %v950 = vperm.slane %v942, %v949
        %v951 = vrot.slane %v934, 4
        %v952 = vsel %vm357, 0.0, %v951
        %v953 = vrot.slane %v938, 4
        %v954 = vsel %vm357, 0.0, %v953
        %v955 = vrot.slane %v946, 4
        %v956 = vsel %vm357, 0.0, %v955
        %v957 = vrot.slane %v950, 4
        %v958 = vsel %vm357, 0.0, %v957
        %v959 = vrot.slane %v890, 4
        %v960 = vsel %vm357, %v959, %v882
        %v961 = vrot.slane %v882, 4
        %v962 = vsel %vm357, %v890, %v961
        %v964 = vunpack.c.l.s4 1983009808
        %v965 = vunpack.c.0.s8 %v964
        %v966 = vperm.slane %v960, %v965
        %v968 = vunpack.c.l.s4 1983009808
        %v969 = vunpack.c.0.s8 %v968
        %v970 = vperm.slane %v962, %v969
        %v971 = vrot.slane %v894, 4
        %v972 = vsel %vm357, %v971, %v886
        %v973 = vrot.slane %v886, 4
        %v974 = vsel %vm357, %v894, %v973
        %v976 = vunpack.c.l.s4 1983009808
        %v977 = vunpack.c.0.s8 %v976
        %v978 = vperm.slane %v972, %v977
        %v980 = vunpack.c.l.s4 1983009808
        %v981 = vunpack.c.0.s8 %v980
        %v982 = vperm.slane %v974, %v981
        %v983 = vrot.slane %v978, 4
        %v984 = vsel %vm357, %v983, %v966
        %v985 = vrot.slane %v966, 4
        %v986 = vsel %vm357, %v978, %v985
        %v988 = vunpack.c.l.s4 1934713408
        %v989 = vunpack.c.0.s8 %v988
        %v990 = vperm.slane %v984, %v989
        %v992 = vunpack.c.l.s4 1934713408
        %v993 = vunpack.c.0.s8 %v992
        %v994 = vperm.slane %v986, %v993
        %v995 = vrot.slane %v982, 4
        %v996 = vsel %vm357, %v995, %v970
        %v997 = vrot.slane %v970, 4
        %v998 = vsel %vm357, %v982, %v997
        %v1000 = vunpack.c.l.s4 1934713408
        %v1001 = vunpack.c.0.s8 %v1000
        %v1002 = vperm.slane %v996, %v1001
        %v1004 = vunpack.c.l.s4 1934713408
        %v1005 = vunpack.c.0.s8 %v1004
        %v1006 = vperm.slane %v998, %v1005
        %v1007 = vrot.slane %v990, 4
        %v1008 = vsel %vm357, 0.0, %v1007
        %v1009 = vrot.slane %v994, 4
        %v1010 = vsel %vm357, 0.0, %v1009
        %v1011 = vrot.slane %v1002, 4
        %v1012 = vsel %vm357, 0.0, %v1011
        %v1013 = vrot.slane %v1006, 4
        %v1014 = vsel %vm357, 0.0, %v1013
        %1016 = vrot.lane.b32.xlu0 %v952, 16
        %v1017 = vpop.permute.xlu0 %1016
        %1020 = vrot.lane.b32.xlu0 %v938, 32
        %v1021 = vpop.permute.xlu0 %1020
        %1024 = vrot.lane.b32.xlu0 %v954, 48
        %v1025 = vpop.permute.xlu0 %1024
        %1028 = vrot.lane.b32.xlu0 %v946, 64
        %v1029 = vpop.permute.xlu0 %1028
        %1032 = vrot.lane.b32.xlu0 %v956, 80
        %v1033 = vpop.permute.xlu0 %1032
        %1036 = vrot.lane.b32.xlu0 %v950, 96
        %v1037 = vpop.permute.xlu0 %1036
        %1040 = vrot.lane.b32.xlu0 %v958, 112
        %v1041 = vpop.permute.xlu0 %1040
        %1044 = vrot.lane.b32.xlu0 %v1008, 16
        %v1045 = vpop.permute.xlu0 %1044
        %1048 = vrot.lane.b32.xlu0 %v994, 32
        %v1049 = vpop.permute.xlu0 %1048
        %1052 = vrot.lane.b32.xlu0 %v1010, 48
        %v1053 = vpop.permute.xlu0 %1052
        %1056 = vrot.lane.b32.xlu0 %v1002, 64
        %v1057 = vpop.permute.xlu0 %1056
        %1060 = vrot.lane.b32.xlu0 %v1012, 80
        %v1061 = vpop.permute.xlu0 %1060
        %1064 = vrot.lane.b32.xlu0 %v1006, 96
        %v1065 = vpop.permute.xlu0 %1064
        %1068 = vrot.lane.b32.xlu0 %v1014, 112
        %v1069 = vpop.permute.xlu0 %1068
        %v1071 = vsel %vm525, %v934, %v1017
        %v1072 = vsel %vm527, %v1071, %v1021
        %v1073 = vsel %vm529, %v1072, %v1025
        %v1074 = vsel %vm531, %v1073, %v1029
        %v1075 = vsel %vm533, %v1074, %v1033
        %v1076 = vsel %vm535, %v1075, %v1037
        %v1077 = vsel %vm537, %v1076, %v1041
        %v1078 = vsel %vm525, %v990, %v1045
        %v1079 = vsel %vm527, %v1078, %v1049
        %v1080 = vsel %vm529, %v1079, %v1053
        %v1081 = vsel %vm531, %v1080, %v1057
        %v1082 = vsel %vm533, %v1081, %v1061
        %v1083 = vsel %vm535, %v1082, %v1065
        %v1084 = vsel %vm537, %v1083, %v1069
        %s1085 = scalar_lea.vmem %s1, 8
        %v1086 = vld [vmem:[%s1085] sm:$0xf]
        %v1088 = vsel %vm763, %v1086, 0
        %v1091 = vsel %vm767, %v1077, 0
        %v1094 = vsel %vm767, %v1084, 0
        %1096 = vmatpush.msra.mxu0 0.0
        %1097 = vmatpush.msra.mxu0 0.0
        %1098 = vmatpush.msra.mxu0 0.0
        %1099 = vmatpush.msra.mxu0 0.0
        %1100 = vmatpush.msra.mxu0 0.0
        %1101 = vmatpush.msra.mxu0 0.0
        %1102 = vmatpush.msra.mxu0 0.0
        %1103 = vmatpush.msra.mxu0 0.0
        %1104 = vmatpush.msra.mxu0 0.0
        %1105 = vmatpush.msra.mxu0 0.0
        %1106 = vmatpush.msra.mxu0 0.0
        %1107 = vmatpush.msra.mxu0 0.0
        %1108 = vmatpush.msra.mxu0 0.0
        %1109 = vmatpush.msra.mxu0 0.0
        %1110 = vmatpush.msra.mxu0 0.0
        %1111 = vmatpush.msra.mxu0 %v1091
        %1112 = vmatmul.f32.gmra.mxu0 %v1088
        %v1113 = vpop.f32.mrf.mxu0
        %v1114 = vadd.f32 0.0, %v1113
        %1115 = vdwg.mxu0
        %1116 = vmatpush.msra.mxu0 0.0
        %1117 = vmatpush.msra.mxu0 0.0
        %1118 = vmatpush.msra.mxu0 0.0
        %1119 = vmatpush.msra.mxu0 0.0
        %1120 = vmatpush.msra.mxu0 0.0
        %1121 = vmatpush.msra.mxu0 0.0
        %1122 = vmatpush.msra.mxu0 0.0
        %1123 = vmatpush.msra.mxu0 0.0
        %1124 = vmatpush.msra.mxu0 0.0
        %1125 = vmatpush.msra.mxu0 0.0
        %1126 = vmatpush.msra.mxu0 0.0
        %1127 = vmatpush.msra.mxu0 0.0
        %1128 = vmatpush.msra.mxu0 0.0
        %1129 = vmatpush.msra.mxu0 0.0
        %1130 = vmatpush.msra.mxu0 0.0
        %1131 = vmatpush.msra.mxu0 %v1094
        %1132 = vmatmul.f32.gmra.mxu0 %v1088
        %v1133 = vpop.f32.mrf.mxu0
        %v1134 = vadd.f32 0.0, %v1133
        %1135 = vdwg.mxu0
        %v1136 = vadd.f32 %v841, %v1114
        %v1137 = vadd.f32 %v861, %v1134
        %v1138 = vld [vmem:[#allocation2 + $0x1] sm:$0xff]
        %v1139 = vld [vmem:[#allocation2 + $0x9] sm:$0xff]
        %v1140 = vld [vmem:[#allocation2 + $0x19] sm:$0xff]
        %v1141 = vld [vmem:[#allocation2 + $0x21] sm:$0xff]
        %v1142 = vld [vmem:[#allocation2 + $0x31] sm:$0xff]
        %v1143 = vld [vmem:[#allocation2 + $0x39] sm:$0xff]
        %v1144 = vld [vmem:[#allocation2 + $0x49] sm:$0xff]
        %v1145 = vld [vmem:[#allocation2 + $0x51] sm:$0xff]
        %v1146 = vrot.slane %v1142, 4
        %v1147 = vsel %vm357, %v1146, %v1138
        %v1148 = vrot.slane %v1138, 4
        %v1149 = vsel %vm357, %v1142, %v1148
        %v1151 = vunpack.c.l.s4 1983009808
        %v1152 = vunpack.c.0.s8 %v1151
        %v1153 = vperm.slane %v1147, %v1152
        %v1155 = vunpack.c.l.s4 1983009808
        %v1156 = vunpack.c.0.s8 %v1155
        %v1157 = vperm.slane %v1149, %v1156
        %v1158 = vrot.slane %v1144, 4
        %v1159 = vsel %vm357, %v1158, %v1140
        %v1160 = vrot.slane %v1140, 4
        %v1161 = vsel %vm357, %v1144, %v1160
        %v1163 = vunpack.c.l.s4 1983009808
        %v1164 = vunpack.c.0.s8 %v1163
        %v1165 = vperm.slane %v1159, %v1164
        %v1167 = vunpack.c.l.s4 1983009808
        %v1168 = vunpack.c.0.s8 %v1167
        %v1169 = vperm.slane %v1161, %v1168
        %v1170 = vrot.slane %v1165, 4
        %v1171 = vsel %vm357, %v1170, %v1153
        %v1172 = vrot.slane %v1153, 4
        %v1173 = vsel %vm357, %v1165, %v1172
        %v1175 = vunpack.c.l.s4 1934713408
        %v1176 = vunpack.c.0.s8 %v1175
        %v1177 = vperm.slane %v1171, %v1176
        %v1179 = vunpack.c.l.s4 1934713408
        %v1180 = vunpack.c.0.s8 %v1179
        %v1181 = vperm.slane %v1173, %v1180
        %v1182 = vrot.slane %v1169, 4
        %v1183 = vsel %vm357, %v1182, %v1157
        %v1184 = vrot.slane %v1157, 4
        %v1185 = vsel %vm357, %v1169, %v1184
        %v1187 = vunpack.c.l.s4 1934713408
        %v1188 = vunpack.c.0.s8 %v1187
        %v1189 = vperm.slane %v1183, %v1188
        %v1191 = vunpack.c.l.s4 1934713408
        %v1192 = vunpack.c.0.s8 %v1191
        %v1193 = vperm.slane %v1185, %v1192
        %v1194 = vrot.slane %v1177, 4
        %v1195 = vsel %vm357, 0.0, %v1194
        %v1196 = vrot.slane %v1181, 4
        %v1197 = vsel %vm357, 0.0, %v1196
        %v1198 = vrot.slane %v1189, 4
        %v1199 = vsel %vm357, 0.0, %v1198
        %v1200 = vrot.slane %v1193, 4
        %v1201 = vsel %vm357, 0.0, %v1200
        %v1202 = vrot.slane %v1143, 4
        %v1203 = vsel %vm357, %v1202, %v1139
        %v1204 = vrot.slane %v1139, 4
        %v1205 = vsel %vm357, %v1143, %v1204
        %v1207 = vunpack.c.l.s4 1983009808
        %v1208 = vunpack.c.0.s8 %v1207
        %v1209 = vperm.slane %v1203, %v1208
        %v1211 = vunpack.c.l.s4 1983009808
        %v1212 = vunpack.c.0.s8 %v1211
        %v1213 = vperm.slane %v1205, %v1212
        %v1214 = vrot.slane %v1145, 4
        %v1215 = vsel %vm357, %v1214, %v1141
        %v1216 = vrot.slane %v1141, 4
        %v1217 = vsel %vm357, %v1145, %v1216
        %v1219 = vunpack.c.l.s4 1983009808
        %v1220 = vunpack.c.0.s8 %v1219
        %v1221 = vperm.slane %v1215, %v1220
        %v1223 = vunpack.c.l.s4 1983009808
        %v1224 = vunpack.c.0.s8 %v1223
        %v1225 = vperm.slane %v1217, %v1224
        %v1226 = vrot.slane %v1221, 4
        %v1227 = vsel %vm357, %v1226, %v1209
        %v1228 = vrot.slane %v1209, 4
        %v1229 = vsel %vm357, %v1221, %v1228
        %v1231 = vunpack.c.l.s4 1934713408
        %v1232 = vunpack.c.0.s8 %v1231
        %v1233 = vperm.slane %v1227, %v1232
        %v1235 = vunpack.c.l.s4 1934713408
        %v1236 = vunpack.c.0.s8 %v1235
        %v1237 = vperm.slane %v1229, %v1236
        %v1238 = vrot.slane %v1225, 4
        %v1239 = vsel %vm357, %v1238, %v1213
        %v1240 = vrot.slane %v1213, 4
        %v1241 = vsel %vm357, %v1225, %v1240
        %v1243 = vunpack.c.l.s4 1934713408
        %v1244 = vunpack.c.0.s8 %v1243
        %v1245 = vperm.slane %v1239, %v1244
        %v1247 = vunpack.c.l.s4 1934713408
        %v1248 = vunpack.c.0.s8 %v1247
        %v1249 = vperm.slane %v1241, %v1248
        %v1250 = vrot.slane %v1233, 4
        %v1251 = vsel %vm357, 0.0, %v1250
        %v1252 = vrot.slane %v1237, 4
        %v1253 = vsel %vm357, 0.0, %v1252
        %v1254 = vrot.slane %v1245, 4
        %v1255 = vsel %vm357, 0.0, %v1254
        %v1256 = vrot.slane %v1249, 4
        %v1257 = vsel %vm357, 0.0, %v1256
        %1259 = vrot.lane.b32.xlu0 %v1195, 16
        %v1260 = vpop.permute.xlu0 %1259
        %1263 = vrot.lane.b32.xlu0 %v1181, 32
        %v1264 = vpop.permute.xlu0 %1263
        %1267 = vrot.lane.b32.xlu0 %v1197, 48
        %v1268 = vpop.permute.xlu0 %1267
        %1271 = vrot.lane.b32.xlu0 %v1189, 64
        %v1272 = vpop.permute.xlu0 %1271
        %1275 = vrot.lane.b32.xlu0 %v1199, 80
        %v1276 = vpop.permute.xlu0 %1275
        %1279 = vrot.lane.b32.xlu0 %v1193, 96
        %v1280 = vpop.permute.xlu0 %1279
        %1283 = vrot.lane.b32.xlu0 %v1201, 112
        %v1284 = vpop.permute.xlu0 %1283
        %1287 = vrot.lane.b32.xlu0 %v1251, 16
        %v1288 = vpop.permute.xlu0 %1287
        %1291 = vrot.lane.b32.xlu0 %v1237, 32
        %v1292 = vpop.permute.xlu0 %1291
        %1295 = vrot.lane.b32.xlu0 %v1253, 48
        %v1296 = vpop.permute.xlu0 %1295
        %1299 = vrot.lane.b32.xlu0 %v1245, 64
        %v1300 = vpop.permute.xlu0 %1299
        %1303 = vrot.lane.b32.xlu0 %v1255, 80
        %v1304 = vpop.permute.xlu0 %1303
        %1307 = vrot.lane.b32.xlu0 %v1249, 96
        %v1308 = vpop.permute.xlu0 %1307
        %1311 = vrot.lane.b32.xlu0 %v1257, 112
        %v1312 = vpop.permute.xlu0 %1311
        %v1314 = vsel %vm525, %v1177, %v1260
        %v1315 = vsel %vm527, %v1314, %v1264
        %v1316 = vsel %vm529, %v1315, %v1268
        %v1317 = vsel %vm531, %v1316, %v1272
        %v1318 = vsel %vm533, %v1317, %v1276
        %v1319 = vsel %vm535, %v1318, %v1280
        %v1320 = vsel %vm537, %v1319, %v1284
        %v1321 = vsel %vm525, %v1233, %v1288
        %v1322 = vsel %vm527, %v1321, %v1292
        %v1323 = vsel %vm529, %v1322, %v1296
        %v1324 = vsel %vm531, %v1323, %v1300
        %v1325 = vsel %vm533, %v1324, %v1304
        %v1326 = vsel %vm535, %v1325, %v1308
        %v1327 = vsel %vm537, %v1326, %v1312
        %s1328 = scalar_lea.vmem %s1, 12
        %v1329 = vld [vmem:[%s1328] sm:$0xf]
        %v1331 = vsel %vm763, %v1329, 0
        %v1334 = vsel %vm767, %v1320, 0
        %v1337 = vsel %vm767, %v1327, 0
        %1339 = vmatpush.msra.mxu0 0.0
        %1340 = vmatpush.msra.mxu0 0.0
        %1341 = vmatpush.msra.mxu0 0.0
        %1342 = vmatpush.msra.mxu0 0.0
        %1343 = vmatpush.msra.mxu0 0.0
        %1344 = vmatpush.msra.mxu0 0.0
        %1345 = vmatpush.msra.mxu0 0.0
        %1346 = vmatpush.msra.mxu0 0.0
        %1347 = vmatpush.msra.mxu0 0.0
        %1348 = vmatpush.msra.mxu0 0.0
        %1349 = vmatpush.msra.mxu0 0.0
        %1350 = vmatpush.msra.mxu0 0.0
        %1351 = vmatpush.msra.mxu0 0.0
        %1352 = vmatpush.msra.mxu0 0.0
        %1353 = vmatpush.msra.mxu0 0.0
        %1354 = vmatpush.msra.mxu0 %v1334
        %1355 = vmatmul.f32.gmra.mxu0 %v1331
        %v1356 = vpop.f32.mrf.mxu0
        %v1357 = vadd.f32 0.0, %v1356
        %1358 = vdwg.mxu0
        %1359 = vmatpush.msra.mxu0 0.0
        %1360 = vmatpush.msra.mxu0 0.0
        %1361 = vmatpush.msra.mxu0 0.0
        %1362 = vmatpush.msra.mxu0 0.0
        %1363 = vmatpush.msra.mxu0 0.0
        %1364 = vmatpush.msra.mxu0 0.0
        %1365 = vmatpush.msra.mxu0 0.0
        %1366 = vmatpush.msra.mxu0 0.0
        %1367 = vmatpush.msra.mxu0 0.0
        %1368 = vmatpush.msra.mxu0 0.0
        %1369 = vmatpush.msra.mxu0 0.0
        %1370 = vmatpush.msra.mxu0 0.0
        %1371 = vmatpush.msra.mxu0 0.0
        %1372 = vmatpush.msra.mxu0 0.0
        %1373 = vmatpush.msra.mxu0 0.0
        %1374 = vmatpush.msra.mxu0 %v1337
        %1375 = vmatmul.f32.gmra.mxu0 %v1331
        %v1376 = vpop.f32.mrf.mxu0
        %v1377 = vadd.f32 0.0, %v1376
        %1378 = vdwg.mxu0
        %v1379 = vadd.f32 %v1136, %v1357
        %v1380 = vadd.f32 %v1137, %v1377
        %v1381 = vld [vmem:[#allocation2 + $0x1] sm:$0xff]
        %v1382 = vld [vmem:[#allocation2 + $0x9] sm:$0xff]
        %v1383 = vld [vmem:[#allocation2 + $0x19] sm:$0xff]
        %v1384 = vld [vmem:[#allocation2 + $0x21] sm:$0xff]
        %v1385 = vld [vmem:[#allocation2 + $0x31] sm:$0xff]
        %v1386 = vld [vmem:[#allocation2 + $0x39] sm:$0xff]
        %v1387 = vld [vmem:[#allocation2 + $0x49] sm:$0xff]
        %v1388 = vld [vmem:[#allocation2 + $0x51] sm:$0xff]
        %1397 = vrot.lane.b32.xlu0 %v1381, 127
        %v1398 = vpop.permute.xlu0 %1397
        %1399 = vrot.lane.b32.xlu0 %v1382, 127
        %v1400 = vpop.permute.xlu0 %1399
        %1401 = vrot.lane.b32.xlu0 %v1383, 127
        %v1402 = vpop.permute.xlu0 %1401
        %1403 = vrot.lane.b32.xlu0 %v1384, 127
        %v1404 = vpop.permute.xlu0 %1403
        %1405 = vrot.lane.b32.xlu0 %v1385, 127
        %v1406 = vpop.permute.xlu0 %1405
        %1407 = vrot.lane.b32.xlu0 %v1386, 127
        %v1408 = vpop.permute.xlu0 %1407
        %1409 = vrot.lane.b32.xlu0 %v1387, 127
        %v1410 = vpop.permute.xlu0 %1409
        %1411 = vrot.lane.b32.xlu0 %v1388, 127
        %v1412 = vpop.permute.xlu0 %1411
        %v1421 = vrot.slane %v1406, 4
        %v1422 = vsel %vm357, %v1421, %v1398
        %v1423 = vrot.slane %v1398, 4
        %v1424 = vsel %vm357, %v1406, %v1423
        %v1426 = vunpack.c.l.s4 1983009808
        %v1427 = vunpack.c.0.s8 %v1426
        %v1428 = vperm.slane %v1422, %v1427
        %v1430 = vunpack.c.l.s4 1983009808
        %v1431 = vunpack.c.0.s8 %v1430
        %v1432 = vperm.slane %v1424, %v1431
        %v1433 = vrot.slane %v1410, 4
        %v1434 = vsel %vm357, %v1433, %v1402
        %v1435 = vrot.slane %v1402, 4
        %v1436 = vsel %vm357, %v1410, %v1435
        %v1438 = vunpack.c.l.s4 1983009808
        %v1439 = vunpack.c.0.s8 %v1438
        %v1440 = vperm.slane %v1434, %v1439
        %v1442 = vunpack.c.l.s4 1983009808
        %v1443 = vunpack.c.0.s8 %v1442
        %v1444 = vperm.slane %v1436, %v1443
        %v1445 = vrot.slane %v1440, 4
        %v1446 = vsel %vm357, %v1445, %v1428
        %v1447 = vrot.slane %v1428, 4
        %v1448 = vsel %vm357, %v1440, %v1447
        %v1450 = vunpack.c.l.s4 1934713408
        %v1451 = vunpack.c.0.s8 %v1450
        %v1452 = vperm.slane %v1446, %v1451
        %v1454 = vunpack.c.l.s4 1934713408
        %v1455 = vunpack.c.0.s8 %v1454
        %v1456 = vperm.slane %v1448, %v1455
        %v1457 = vrot.slane %v1444, 4
        %v1458 = vsel %vm357, %v1457, %v1432
        %v1459 = vrot.slane %v1432, 4
        %v1460 = vsel %vm357, %v1444, %v1459
        %v1462 = vunpack.c.l.s4 1934713408
        %v1463 = vunpack.c.0.s8 %v1462
        %v1464 = vperm.slane %v1458, %v1463
        %v1466 = vunpack.c.l.s4 1934713408
        %v1467 = vunpack.c.0.s8 %v1466
        %v1468 = vperm.slane %v1460, %v1467
        %v1469 = vrot.slane %v1452, 4
        %v1470 = vsel %vm357, 0.0, %v1469
        %v1471 = vrot.slane %v1456, 4
        %v1472 = vsel %vm357, 0.0, %v1471
        %v1473 = vrot.slane %v1464, 4
        %v1474 = vsel %vm357, 0.0, %v1473
        %v1475 = vrot.slane %v1468, 4
        %v1476 = vsel %vm357, 0.0, %v1475
        %v1477 = vrot.slane %v1408, 4
        %v1478 = vsel %vm357, %v1477, %v1400
        %v1479 = vrot.slane %v1400, 4
        %v1480 = vsel %vm357, %v1408, %v1479
        %v1482 = vunpack.c.l.s4 1983009808
        %v1483 = vunpack.c.0.s8 %v1482
        %v1484 = vperm.slane %v1478, %v1483
        %v1486 = vunpack.c.l.s4 1983009808
        %v1487 = vunpack.c.0.s8 %v1486
        %v1488 = vperm.slane %v1480, %v1487
        %v1489 = vrot.slane %v1412, 4
        %v1490 = vsel %vm357, %v1489, %v1404
        %v1491 = vrot.slane %v1404, 4
        %v1492 = vsel %vm357, %v1412, %v1491
        %v1494 = vunpack.c.l.s4 1983009808
        %v1495 = vunpack.c.0.s8 %v1494
        %v1496 = vperm.slane %v1490, %v1495
        %v1498 = vunpack.c.l.s4 1983009808
        %v1499 = vunpack.c.0.s8 %v1498
        %v1500 = vperm.slane %v1492, %v1499
        %v1501 = vrot.slane %v1496, 4
        %v1502 = vsel %vm357, %v1501, %v1484
        %v1503 = vrot.slane %v1484, 4
        %v1504 = vsel %vm357, %v1496, %v1503
        %v1506 = vunpack.c.l.s4 1934713408
        %v1507 = vunpack.c.0.s8 %v1506
        %v1508 = vperm.slane %v1502, %v1507
        %v1510 = vunpack.c.l.s4 1934713408
        %v1511 = vunpack.c.0.s8 %v1510
        %v1512 = vperm.slane %v1504, %v1511
        %v1513 = vrot.slane %v1500, 4
        %v1514 = vsel %vm357, %v1513, %v1488
        %v1515 = vrot.slane %v1488, 4
        %v1516 = vsel %vm357, %v1500, %v1515
        %v1518 = vunpack.c.l.s4 1934713408
        %v1519 = vunpack.c.0.s8 %v1518
        %v1520 = vperm.slane %v1514, %v1519
        %v1522 = vunpack.c.l.s4 1934713408
        %v1523 = vunpack.c.0.s8 %v1522
        %v1524 = vperm.slane %v1516, %v1523
        %v1525 = vrot.slane %v1508, 4
        %v1526 = vsel %vm357, 0.0, %v1525
        %v1527 = vrot.slane %v1512, 4
        %v1528 = vsel %vm357, 0.0, %v1527
        %v1529 = vrot.slane %v1520, 4
        %v1530 = vsel %vm357, 0.0, %v1529
        %v1531 = vrot.slane %v1524, 4
        %v1532 = vsel %vm357, 0.0, %v1531
        %1534 = vrot.lane.b32.xlu0 %v1470, 16
        %v1535 = vpop.permute.xlu0 %1534
        %1538 = vrot.lane.b32.xlu0 %v1456, 32
        %v1539 = vpop.permute.xlu0 %1538
        %1542 = vrot.lane.b32.xlu0 %v1472, 48
        %v1543 = vpop.permute.xlu0 %1542
        %1546 = vrot.lane.b32.xlu0 %v1464, 64
        %v1547 = vpop.permute.xlu0 %1546
        %1550 = vrot.lane.b32.xlu0 %v1474, 80
        %v1551 = vpop.permute.xlu0 %1550
        %1554 = vrot.lane.b32.xlu0 %v1468, 96
        %v1555 = vpop.permute.xlu0 %1554
        %1558 = vrot.lane.b32.xlu0 %v1476, 112
        %v1559 = vpop.permute.xlu0 %1558
        %1562 = vrot.lane.b32.xlu0 %v1526, 16
        %v1563 = vpop.permute.xlu0 %1562
        %1566 = vrot.lane.b32.xlu0 %v1512, 32
        %v1567 = vpop.permute.xlu0 %1566
        %1570 = vrot.lane.b32.xlu0 %v1528, 48
        %v1571 = vpop.permute.xlu0 %1570
        %1574 = vrot.lane.b32.xlu0 %v1520, 64
        %v1575 = vpop.permute.xlu0 %1574
        %1578 = vrot.lane.b32.xlu0 %v1530, 80
        %v1579 = vpop.permute.xlu0 %1578
        %1582 = vrot.lane.b32.xlu0 %v1524, 96
        %v1583 = vpop.permute.xlu0 %1582
        %1586 = vrot.lane.b32.xlu0 %v1532, 112
        %v1587 = vpop.permute.xlu0 %1586
        %v1589 = vsel %vm525, %v1452, %v1535
        %v1590 = vsel %vm527, %v1589, %v1539
        %v1591 = vsel %vm529, %v1590, %v1543
        %v1592 = vsel %vm531, %v1591, %v1547
        %v1593 = vsel %vm533, %v1592, %v1551
        %v1594 = vsel %vm535, %v1593, %v1555
        %v1595 = vsel %vm537, %v1594, %v1559
        %v1596 = vsel %vm525, %v1508, %v1563
        %v1597 = vsel %vm527, %v1596, %v1567
        %v1598 = vsel %vm529, %v1597, %v1571
        %v1599 = vsel %vm531, %v1598, %v1575
        %v1600 = vsel %vm533, %v1599, %v1579
        %v1601 = vsel %vm535, %v1600, %v1583
        %v1602 = vsel %vm537, %v1601, %v1587
        %s1603 = scalar_lea.vmem %s1, 16
        %v1604 = vld [vmem:[%s1603] sm:$0xf]
        %v1606 = vsel %vm763, %v1604, 0
        %v1609 = vsel %vm767, %v1595, 0
        %v1612 = vsel %vm767, %v1602, 0
        %1614 = vmatpush.msra.mxu0 0.0
        %1615 = vmatpush.msra.mxu0 0.0
        %1616 = vmatpush.msra.mxu0 0.0
        %1617 = vmatpush.msra.mxu0 0.0
        %1618 = vmatpush.msra.mxu0 0.0
        %1619 = vmatpush.msra.mxu0 0.0
        %1620 = vmatpush.msra.mxu0 0.0
        %1621 = vmatpush.msra.mxu0 0.0
        %1622 = vmatpush.msra.mxu0 0.0
        %1623 = vmatpush.msra.mxu0 0.0
        %1624 = vmatpush.msra.mxu0 0.0
        %1625 = vmatpush.msra.mxu0 0.0
        %1626 = vmatpush.msra.mxu0 0.0
        %1627 = vmatpush.msra.mxu0 0.0
        %1628 = vmatpush.msra.mxu0 0.0
        %1629 = vmatpush.msra.mxu0 %v1609
        %1630 = vmatmul.f32.gmra.mxu0 %v1606
        %v1631 = vpop.f32.mrf.mxu0
        %v1632 = vadd.f32 0.0, %v1631
        %1633 = vdwg.mxu0
        %1634 = vmatpush.msra.mxu0 0.0
        %1635 = vmatpush.msra.mxu0 0.0
        %1636 = vmatpush.msra.mxu0 0.0
        %1637 = vmatpush.msra.mxu0 0.0
        %1638 = vmatpush.msra.mxu0 0.0
        %1639 = vmatpush.msra.mxu0 0.0
        %1640 = vmatpush.msra.mxu0 0.0
        %1641 = vmatpush.msra.mxu0 0.0
        %1642 = vmatpush.msra.mxu0 0.0
        %1643 = vmatpush.msra.mxu0 0.0
        %1644 = vmatpush.msra.mxu0 0.0
        %1645 = vmatpush.msra.mxu0 0.0
        %1646 = vmatpush.msra.mxu0 0.0
        %1647 = vmatpush.msra.mxu0 0.0
        %1648 = vmatpush.msra.mxu0 0.0
        %1649 = vmatpush.msra.mxu0 %v1612
        %1650 = vmatmul.f32.gmra.mxu0 %v1606
        %v1651 = vpop.f32.mrf.mxu0
        %v1652 = vadd.f32 0.0, %v1651
        %1653 = vdwg.mxu0
        %v1654 = vadd.f32 %v1379, %v1632
        %v1655 = vadd.f32 %v1380, %v1652
        %v1656 = vld [vmem:[#allocation2 + $0x1] sm:$0xff]
        %v1657 = vld [vmem:[#allocation2 + $0x9] sm:$0xff]
        %v1658 = vld [vmem:[#allocation2 + $0x19] sm:$0xff]
        %v1659 = vld [vmem:[#allocation2 + $0x21] sm:$0xff]
        %v1660 = vld [vmem:[#allocation2 + $0x31] sm:$0xff]
        %v1661 = vld [vmem:[#allocation2 + $0x39] sm:$0xff]
        %v1662 = vld [vmem:[#allocation2 + $0x49] sm:$0xff]
        %v1663 = vld [vmem:[#allocation2 + $0x51] sm:$0xff]
        %1672 = vrot.lane.b32.xlu0 %v1656, 126
        %v1673 = vpop.permute.xlu0 %1672
        %1674 = vrot.lane.b32.xlu0 %v1657, 126
        %v1675 = vpop.permute.xlu0 %1674
        %1676 = vrot.lane.b32.xlu0 %v1658, 126
        %v1677 = vpop.permute.xlu0 %1676
        %1678 = vrot.lane.b32.xlu0 %v1659, 126
        %v1679 = vpop.permute.xlu0 %1678
        %1680 = vrot.lane.b32.xlu0 %v1660, 126
        %v1681 = vpop.permute.xlu0 %1680
        %1682 = vrot.lane.b32.xlu0 %v1661, 126
        %v1683 = vpop.permute.xlu0 %1682
        %1684 = vrot.lane.b32.xlu0 %v1662, 126
        %v1685 = vpop.permute.xlu0 %1684
        %1686 = vrot.lane.b32.xlu0 %v1663, 126
        %v1687 = vpop.permute.xlu0 %1686
        %v1696 = vrot.slane %v1681, 4
        %v1697 = vsel %vm357, %v1696, %v1673
        %v1698 = vrot.slane %v1673, 4
        %v1699 = vsel %vm357, %v1681, %v1698
        %v1701 = vunpack.c.l.s4 1983009808
        %v1702 = vunpack.c.0.s8 %v1701
        %v1703 = vperm.slane %v1697, %v1702
        %v1705 = vunpack.c.l.s4 1983009808
        %v1706 = vunpack.c.0.s8 %v1705
        %v1707 = vperm.slane %v1699, %v1706
        %v1708 = vrot.slane %v1685, 4
        %v1709 = vsel %vm357, %v1708, %v1677
        %v1710 = vrot.slane %v1677, 4
        %v1711 = vsel %vm357, %v1685, %v1710
        %v1713 = vunpack.c.l.s4 1983009808
        %v1714 = vunpack.c.0.s8 %v1713
        %v1715 = vperm.slane %v1709, %v1714
        %v1717 = vunpack.c.l.s4 1983009808
        %v1718 = vunpack.c.0.s8 %v1717
        %v1719 = vperm.slane %v1711, %v1718
        %v1720 = vrot.slane %v1715, 4
        %v1721 = vsel %vm357, %v1720, %v1703
        %v1722 = vrot.slane %v1703, 4
        %v1723 = vsel %vm357, %v1715, %v1722
        %v1725 = vunpack.c.l.s4 1934713408
        %v1726 = vunpack.c.0.s8 %v1725
        %v1727 = vperm.slane %v1721, %v1726
        %v1729 = vunpack.c.l.s4 1934713408
        %v1730 = vunpack.c.0.s8 %v1729
        %v1731 = vperm.slane %v1723, %v1730
        %v1732 = vrot.slane %v1719, 4
        %v1733 = vsel %vm357, %v1732, %v1707
        %v1734 = vrot.slane %v1707, 4
        %v1735 = vsel %vm357, %v1719, %v1734
        %v1737 = vunpack.c.l.s4 1934713408
        %v1738 = vunpack.c.0.s8 %v1737
        %v1739 = vperm.slane %v1733, %v1738
        %v1741 = vunpack.c.l.s4 1934713408
        %v1742 = vunpack.c.0.s8 %v1741
        %v1743 = vperm.slane %v1735, %v1742
        %v1744 = vrot.slane %v1727, 4
        %v1745 = vsel %vm357, 0.0, %v1744
        %v1746 = vrot.slane %v1731, 4
        %v1747 = vsel %vm357, 0.0, %v1746
        %v1748 = vrot.slane %v1739, 4
        %v1749 = vsel %vm357, 0.0, %v1748
        %v1750 = vrot.slane %v1743, 4
        %v1751 = vsel %vm357, 0.0, %v1750
        %v1752 = vrot.slane %v1683, 4
        %v1753 = vsel %vm357, %v1752, %v1675
        %v1754 = vrot.slane %v1675, 4
        %v1755 = vsel %vm357, %v1683, %v1754
        %v1757 = vunpack.c.l.s4 1983009808
        %v1758 = vunpack.c.0.s8 %v1757
        %v1759 = vperm.slane %v1753, %v1758
        %v1761 = vunpack.c.l.s4 1983009808
        %v1762 = vunpack.c.0.s8 %v1761
        %v1763 = vperm.slane %v1755, %v1762
        %v1764 = vrot.slane %v1687, 4
        %v1765 = vsel %vm357, %v1764, %v1679
        %v1766 = vrot.slane %v1679, 4
        %v1767 = vsel %vm357, %v1687, %v1766
        %v1769 = vunpack.c.l.s4 1983009808
        %v1770 = vunpack.c.0.s8 %v1769
        %v1771 = vperm.slane %v1765, %v1770
        %v1773 = vunpack.c.l.s4 1983009808
        %v1774 = vunpack.c.0.s8 %v1773
        %v1775 = vperm.slane %v1767, %v1774
        %v1776 = vrot.slane %v1771, 4
        %v1777 = vsel %vm357, %v1776, %v1759
        %v1778 = vrot.slane %v1759, 4
        %v1779 = vsel %vm357, %v1771, %v1778
        %v1781 = vunpack.c.l.s4 1934713408
        %v1782 = vunpack.c.0.s8 %v1781
        %v1783 = vperm.slane %v1777, %v1782
        %v1785 = vunpack.c.l.s4 1934713408
        %v1786 = vunpack.c.0.s8 %v1785
        %v1787 = vperm.slane %v1779, %v1786
        %v1788 = vrot.slane %v1775, 4
        %v1789 = vsel %vm357, %v1788, %v1763
        %v1790 = vrot.slane %v1763, 4
        %v1791 = vsel %vm357, %v1775, %v1790
        %v1793 = vunpack.c.l.s4 1934713408
        %v1794 = vunpack.c.0.s8 %v1793
        %v1795 = vperm.slane %v1789, %v1794
        %v1797 = vunpack.c.l.s4 1934713408
        %v1798 = vunpack.c.0.s8 %v1797
        %v1799 = vperm.slane %v1791, %v1798
        %v1800 = vrot.slane %v1783, 4
        %v1801 = vsel %vm357, 0.0, %v1800
        %v1802 = vrot.slane %v1787, 4
        %v1803 = vsel %vm357, 0.0, %v1802
        %v1804 = vrot.slane %v1795, 4
        %v1805 = vsel %vm357, 0.0, %v1804
        %v1806 = vrot.slane %v1799, 4
        %v1807 = vsel %vm357, 0.0, %v1806
        %1809 = vrot.lane.b32.xlu0 %v1745, 16
        %v1810 = vpop.permute.xlu0 %1809
        %1813 = vrot.lane.b32.xlu0 %v1731, 32
        %v1814 = vpop.permute.xlu0 %1813
        %1817 = vrot.lane.b32.xlu0 %v1747, 48
        %v1818 = vpop.permute.xlu0 %1817
        %1821 = vrot.lane.b32.xlu0 %v1739, 64
        %v1822 = vpop.permute.xlu0 %1821
        %1825 = vrot.lane.b32.xlu0 %v1749, 80
        %v1826 = vpop.permute.xlu0 %1825
        %1829 = vrot.lane.b32.xlu0 %v1743, 96
        %v1830 = vpop.permute.xlu0 %1829
        %1833 = vrot.lane.b32.xlu0 %v1751, 112
        %v1834 = vpop.permute.xlu0 %1833
        %1837 = vrot.lane.b32.xlu0 %v1801, 16
        %v1838 = vpop.permute.xlu0 %1837
        %1841 = vrot.lane.b32.xlu0 %v1787, 32
        %v1842 = vpop.permute.xlu0 %1841
        %1845 = vrot.lane.b32.xlu0 %v1803, 48
        %v1846 = vpop.permute.xlu0 %1845
        %1849 = vrot.lane.b32.xlu0 %v1795, 64
        %v1850 = vpop.permute.xlu0 %1849
        %1853 = vrot.lane.b32.xlu0 %v1805, 80
        %v1854 = vpop.permute.xlu0 %1853
        %1857 = vrot.lane.b32.xlu0 %v1799, 96
        %v1858 = vpop.permute.xlu0 %1857
        %1861 = vrot.lane.b32.xlu0 %v1807, 112
        %v1862 = vpop.permute.xlu0 %1861
        %v1864 = vsel %vm525, %v1727, %v1810
        %v1865 = vsel %vm527, %v1864, %v1814
        %v1866 = vsel %vm529, %v1865, %v1818
        %v1867 = vsel %vm531, %v1866, %v1822
        %v1868 = vsel %vm533, %v1867, %v1826
        %v1869 = vsel %vm535, %v1868, %v1830
        %v1870 = vsel %vm537, %v1869, %v1834
        %v1871 = vsel %vm525, %v1783, %v1838
        %v1872 = vsel %vm527, %v1871, %v1842
        %v1873 = vsel %vm529, %v1872, %v1846
        %v1874 = vsel %vm531, %v1873, %v1850
        %v1875 = vsel %vm533, %v1874, %v1854
        %v1876 = vsel %vm535, %v1875, %v1858
        %v1877 = vsel %vm537, %v1876, %v1862
        %s1878 = scalar_lea.vmem %s1, 20
        %v1879 = vld [vmem:[%s1878] sm:$0xf]
        %v1881 = vsel %vm763, %v1879, 0
        %v1884 = vsel %vm767, %v1870, 0
        %v1887 = vsel %vm767, %v1877, 0
        %1889 = vmatpush.msra.mxu0 0.0
        %1890 = vmatpush.msra.mxu0 0.0
        %1891 = vmatpush.msra.mxu0 0.0
        %1892 = vmatpush.msra.mxu0 0.0
        %1893 = vmatpush.msra.mxu0 0.0
        %1894 = vmatpush.msra.mxu0 0.0
        %1895 = vmatpush.msra.mxu0 0.0
        %1896 = vmatpush.msra.mxu0 0.0
        %1897 = vmatpush.msra.mxu0 0.0
        %1898 = vmatpush.msra.mxu0 0.0
        %1899 = vmatpush.msra.mxu0 0.0
        %1900 = vmatpush.msra.mxu0 0.0
        %1901 = vmatpush.msra.mxu0 0.0
        %1902 = vmatpush.msra.mxu0 0.0
        %1903 = vmatpush.msra.mxu0 0.0
        %1904 = vmatpush.msra.mxu0 %v1884
        %1905 = vmatmul.f32.gmra.mxu0 %v1881
        %v1906 = vpop.f32.mrf.mxu0
        %v1907 = vadd.f32 0.0, %v1906
        %1908 = vdwg.mxu0
        %1909 = vmatpush.msra.mxu0 0.0
        %1910 = vmatpush.msra.mxu0 0.0
        %1911 = vmatpush.msra.mxu0 0.0
        %1912 = vmatpush.msra.mxu0 0.0
        %1913 = vmatpush.msra.mxu0 0.0
        %1914 = vmatpush.msra.mxu0 0.0
        %1915 = vmatpush.msra.mxu0 0.0
        %1916 = vmatpush.msra.mxu0 0.0
        %1917 = vmatpush.msra.mxu0 0.0
        %1918 = vmatpush.msra.mxu0 0.0
        %1919 = vmatpush.msra.mxu0 0.0
        %1920 = vmatpush.msra.mxu0 0.0
        %1921 = vmatpush.msra.mxu0 0.0
        %1922 = vmatpush.msra.mxu0 0.0
        %1923 = vmatpush.msra.mxu0 0.0
        %1924 = vmatpush.msra.mxu0 %v1887
        %1925 = vmatmul.f32.gmra.mxu0 %v1881
        %v1926 = vpop.f32.mrf.mxu0
        %v1927 = vadd.f32 0.0, %v1926
        %1928 = vdwg.mxu0
        %v1929 = vadd.f32 %v1654, %v1907
        %v1930 = vadd.f32 %v1655, %v1927
        %v1931 = vld [vmem:[#allocation2 + $0x2] sm:$0xff]
        %v1932 = vld [vmem:[#allocation2 + $0xa] sm:$0xff]
        %v1933 = vld [vmem:[#allocation2 + $0x1a] sm:$0xff]
        %v1934 = vld [vmem:[#allocation2 + $0x22] sm:$0xff]
        %v1935 = vld [vmem:[#allocation2 + $0x32] sm:$0xff]
        %v1936 = vld [vmem:[#allocation2 + $0x3a] sm:$0xff]
        %v1937 = vld [vmem:[#allocation2 + $0x4a] sm:$0xff]
        %v1938 = vld [vmem:[#allocation2 + $0x52] sm:$0xff]
        %v1939 = vrot.slane %v1935, 4
        %v1940 = vsel %vm357, %v1939, %v1931
        %v1941 = vrot.slane %v1931, 4
        %v1942 = vsel %vm357, %v1935, %v1941
        %v1944 = vunpack.c.l.s4 1983009808
        %v1945 = vunpack.c.0.s8 %v1944
        %v1946 = vperm.slane %v1940, %v1945
        %v1948 = vunpack.c.l.s4 1983009808
        %v1949 = vunpack.c.0.s8 %v1948
        %v1950 = vperm.slane %v1942, %v1949
        %v1951 = vrot.slane %v1937, 4
        %v1952 = vsel %vm357, %v1951, %v1933
        %v1953 = vrot.slane %v1933, 4
        %v1954 = vsel %vm357, %v1937, %v1953
        %v1956 = vunpack.c.l.s4 1983009808
        %v1957 = vunpack.c.0.s8 %v1956
        %v1958 = vperm.slane %v1952, %v1957
        %v1960 = vunpack.c.l.s4 1983009808
        %v1961 = vunpack.c.0.s8 %v1960
        %v1962 = vperm.slane %v1954, %v1961
        %v1963 = vrot.slane %v1958, 4
        %v1964 = vsel %vm357, %v1963, %v1946
        %v1965 = vrot.slane %v1946, 4
        %v1966 = vsel %vm357, %v1958, %v1965
        %v1968 = vunpack.c.l.s4 1934713408
        %v1969 = vunpack.c.0.s8 %v1968
        %v1970 = vperm.slane %v1964, %v1969
        %v1972 = vunpack.c.l.s4 1934713408
        %v1973 = vunpack.c.0.s8 %v1972
        %v1974 = vperm.slane %v1966, %v1973
        %v1975 = vrot.slane %v1962, 4
        %v1976 = vsel %vm357, %v1975, %v1950
        %v1977 = vrot.slane %v1950, 4
        %v1978 = vsel %vm357, %v1962, %v1977
        %v1980 = vunpack.c.l.s4 1934713408
        %v1981 = vunpack.c.0.s8 %v1980
        %v1982 = vperm.slane %v1976, %v1981
        %v1984 = vunpack.c.l.s4 1934713408
        %v1985 = vunpack.c.0.s8 %v1984
        %v1986 = vperm.slane %v1978, %v1985
        %v1987 = vrot.slane %v1970, 4
        %v1988 = vsel %vm357, 0.0, %v1987
        %v1989 = vrot.slane %v1974, 4
        %v1990 = vsel %vm357, 0.0, %v1989
        %v1991 = vrot.slane %v1982, 4
        %v1992 = vsel %vm357, 0.0, %v1991
        %v1993 = vrot.slane %v1986, 4
        %v1994 = vsel %vm357, 0.0, %v1993
        %v1995 = vrot.slane %v1936, 4
        %v1996 = vsel %vm357, %v1995, %v1932
        %v1997 = vrot.slane %v1932, 4
        %v1998 = vsel %vm357, %v1936, %v1997
        %v2000 = vunpack.c.l.s4 1983009808
        %v2001 = vunpack.c.0.s8 %v2000
        %v2002 = vperm.slane %v1996, %v2001
        %v2004 = vunpack.c.l.s4 1983009808
        %v2005 = vunpack.c.0.s8 %v2004
        %v2006 = vperm.slane %v1998, %v2005
        %v2007 = vrot.slane %v1938, 4
        %v2008 = vsel %vm357, %v2007, %v1934
        %v2009 = vrot.slane %v1934, 4
        %v2010 = vsel %vm357, %v1938, %v2009
        %v2012 = vunpack.c.l.s4 1983009808
        %v2013 = vunpack.c.0.s8 %v2012
        %v2014 = vperm.slane %v2008, %v2013
        %v2016 = vunpack.c.l.s4 1983009808
        %v2017 = vunpack.c.0.s8 %v2016
        %v2018 = vperm.slane %v2010, %v2017
        %v2019 = vrot.slane %v2014, 4
        %v2020 = vsel %vm357, %v2019, %v2002
        %v2021 = vrot.slane %v2002, 4
        %v2022 = vsel %vm357, %v2014, %v2021
        %v2024 = vunpack.c.l.s4 1934713408
        %v2025 = vunpack.c.0.s8 %v2024
        %v2026 = vperm.slane %v2020, %v2025
        %v2028 = vunpack.c.l.s4 1934713408
        %v2029 = vunpack.c.0.s8 %v2028
        %v2030 = vperm.slane %v2022, %v2029
        %v2031 = vrot.slane %v2018, 4
        %v2032 = vsel %vm357, %v2031, %v2006
        %v2033 = vrot.slane %v2006, 4
        %v2034 = vsel %vm357, %v2018, %v2033
        %v2036 = vunpack.c.l.s4 1934713408
        %v2037 = vunpack.c.0.s8 %v2036
        %v2038 = vperm.slane %v2032, %v2037
        %v2040 = vunpack.c.l.s4 1934713408
        %v2041 = vunpack.c.0.s8 %v2040
        %v2042 = vperm.slane %v2034, %v2041
        %v2043 = vrot.slane %v2026, 4
        %v2044 = vsel %vm357, 0.0, %v2043
        %v2045 = vrot.slane %v2030, 4
        %v2046 = vsel %vm357, 0.0, %v2045
        %v2047 = vrot.slane %v2038, 4
        %v2048 = vsel %vm357, 0.0, %v2047
        %v2049 = vrot.slane %v2042, 4
        %v2050 = vsel %vm357, 0.0, %v2049
        %2052 = vrot.lane.b32.xlu0 %v1988, 16
        %v2053 = vpop.permute.xlu0 %2052
        %2056 = vrot.lane.b32.xlu0 %v1974, 32
        %v2057 = vpop.permute.xlu0 %2056
        %2060 = vrot.lane.b32.xlu0 %v1990, 48
        %v2061 = vpop.permute.xlu0 %2060
        %2064 = vrot.lane.b32.xlu0 %v1982, 64
        %v2065 = vpop.permute.xlu0 %2064
        %2068 = vrot.lane.b32.xlu0 %v1992, 80
        %v2069 = vpop.permute.xlu0 %2068
        %2072 = vrot.lane.b32.xlu0 %v1986, 96
        %v2073 = vpop.permute.xlu0 %2072
        %2076 = vrot.lane.b32.xlu0 %v1994, 112
        %v2077 = vpop.permute.xlu0 %2076
        %2080 = vrot.lane.b32.xlu0 %v2044, 16
        %v2081 = vpop.permute.xlu0 %2080
        %2084 = vrot.lane.b32.xlu0 %v2030, 32
        %v2085 = vpop.permute.xlu0 %2084
        %2088 = vrot.lane.b32.xlu0 %v2046, 48
        %v2089 = vpop.permute.xlu0 %2088
        %2092 = vrot.lane.b32.xlu0 %v2038, 64
        %v2093 = vpop.permute.xlu0 %2092
        %2096 = vrot.lane.b32.xlu0 %v2048, 80
        %v2097 = vpop.permute.xlu0 %2096
        %2100 = vrot.lane.b32.xlu0 %v2042, 96
        %v2101 = vpop.permute.xlu0 %2100
        %2104 = vrot.lane.b32.xlu0 %v2050, 112
        %v2105 = vpop.permute.xlu0 %2104
        %v2107 = vsel %vm525, %v1970, %v2053
        %v2108 = vsel %vm527, %v2107, %v2057
        %v2109 = vsel %vm529, %v2108, %v2061
        %v2110 = vsel %vm531, %v2109, %v2065
        %v2111 = vsel %vm533, %v2110, %v2069
        %v2112 = vsel %vm535, %v2111, %v2073
        %v2113 = vsel %vm537, %v2112, %v2077
        %v2114 = vsel %vm525, %v2026, %v2081
        %v2115 = vsel %vm527, %v2114, %v2085
        %v2116 = vsel %vm529, %v2115, %v2089
        %v2117 = vsel %vm531, %v2116, %v2093
        %v2118 = vsel %vm533, %v2117, %v2097
        %v2119 = vsel %vm535, %v2118, %v2101
        %v2120 = vsel %vm537, %v2119, %v2105
        %s2121 = scalar_lea.vmem %s1, 24
        %v2122 = vld [vmem:[%s2121] sm:$0xf]
        %v2124 = vsel %vm763, %v2122, 0
        %v2127 = vsel %vm767, %v2113, 0
        %v2130 = vsel %vm767, %v2120, 0
        %2132 = vmatpush.msra.mxu0 0.0
        %2133 = vmatpush.msra.mxu0 0.0
        %2134 = vmatpush.msra.mxu0 0.0
        %2135 = vmatpush.msra.mxu0 0.0
        %2136 = vmatpush.msra.mxu0 0.0
        %2137 = vmatpush.msra.mxu0 0.0
        %2138 = vmatpush.msra.mxu0 0.0
        %2139 = vmatpush.msra.mxu0 0.0
        %2140 = vmatpush.msra.mxu0 0.0
        %2141 = vmatpush.msra.mxu0 0.0
        %2142 = vmatpush.msra.mxu0 0.0
        %2143 = vmatpush.msra.mxu0 0.0
        %2144 = vmatpush.msra.mxu0 0.0
        %2145 = vmatpush.msra.mxu0 0.0
        %2146 = vmatpush.msra.mxu0 0.0
        %2147 = vmatpush.msra.mxu0 %v2127
        %2148 = vmatmul.f32.gmra.mxu0 %v2124
        %v2149 = vpop.f32.mrf.mxu0
        %v2150 = vadd.f32 0.0, %v2149
        %2151 = vdwg.mxu0
        %2152 = vmatpush.msra.mxu0 0.0
        %2153 = vmatpush.msra.mxu0 0.0
        %2154 = vmatpush.msra.mxu0 0.0
        %2155 = vmatpush.msra.mxu0 0.0
        %2156 = vmatpush.msra.mxu0 0.0
        %2157 = vmatpush.msra.mxu0 0.0
        %2158 = vmatpush.msra.mxu0 0.0
        %2159 = vmatpush.msra.mxu0 0.0
        %2160 = vmatpush.msra.mxu0 0.0
        %2161 = vmatpush.msra.mxu0 0.0
        %2162 = vmatpush.msra.mxu0 0.0
        %2163 = vmatpush.msra.mxu0 0.0
        %2164 = vmatpush.msra.mxu0 0.0
        %2165 = vmatpush.msra.mxu0 0.0
        %2166 = vmatpush.msra.mxu0 0.0
        %2167 = vmatpush.msra.mxu0 %v2130
        %2168 = vmatmul.f32.gmra.mxu0 %v2124
        %v2169 = vpop.f32.mrf.mxu0
        %v2170 = vadd.f32 0.0, %v2169
        %2171 = vdwg.mxu0
        %v2172 = vadd.f32 %v1929, %v2150
        %v2173 = vadd.f32 %v1930, %v2170
        %v2174 = vld [vmem:[#allocation2 + $0x2] sm:$0xff]
        %v2175 = vld [vmem:[#allocation2 + $0xa] sm:$0xff]
        %v2176 = vld [vmem:[#allocation2 + $0x1a] sm:$0xff]
        %v2177 = vld [vmem:[#allocation2 + $0x22] sm:$0xff]
        %v2178 = vld [vmem:[#allocation2 + $0x32] sm:$0xff]
        %v2179 = vld [vmem:[#allocation2 + $0x3a] sm:$0xff]
        %v2180 = vld [vmem:[#allocation2 + $0x4a] sm:$0xff]
        %v2181 = vld [vmem:[#allocation2 + $0x52] sm:$0xff]
        %2190 = vrot.lane.b32.xlu0 %v2174, 127
        %v2191 = vpop.permute.xlu0 %2190
        %2192 = vrot.lane.b32.xlu0 %v2175, 127
        %v2193 = vpop.permute.xlu0 %2192
        %2194 = vrot.lane.b32.xlu0 %v2176, 127
        %v2195 = vpop.permute.xlu0 %2194
        %2196 = vrot.lane.b32.xlu0 %v2177, 127
        %v2197 = vpop.permute.xlu0 %2196
        %2198 = vrot.lane.b32.xlu0 %v2178, 127
        %v2199 = vpop.permute.xlu0 %2198
        %2200 = vrot.lane.b32.xlu0 %v2179, 127
        %v2201 = vpop.permute.xlu0 %2200
        %2202 = vrot.lane.b32.xlu0 %v2180, 127
        %v2203 = vpop.permute.xlu0 %2202
        %2204 = vrot.lane.b32.xlu0 %v2181, 127
        %v2205 = vpop.permute.xlu0 %2204
        %v2214 = vrot.slane %v2199, 4
        %v2215 = vsel %vm357, %v2214, %v2191
        %v2216 = vrot.slane %v2191, 4
        %v2217 = vsel %vm357, %v2199, %v2216
        %v2219 = vunpack.c.l.s4 1983009808
        %v2220 = vunpack.c.0.s8 %v2219
        %v2221 = vperm.slane %v2215, %v2220
        %v2223 = vunpack.c.l.s4 1983009808
        %v2224 = vunpack.c.0.s8 %v2223
        %v2225 = vperm.slane %v2217, %v2224
        %v2226 = vrot.slane %v2203, 4
        %v2227 = vsel %vm357, %v2226, %v2195
        %v2228 = vrot.slane %v2195, 4
        %v2229 = vsel %vm357, %v2203, %v2228
        %v2231 = vunpack.c.l.s4 1983009808
        %v2232 = vunpack.c.0.s8 %v2231
        %v2233 = vperm.slane %v2227, %v2232
        %v2235 = vunpack.c.l.s4 1983009808
        %v2236 = vunpack.c.0.s8 %v2235
        %v2237 = vperm.slane %v2229, %v2236
        %v2238 = vrot.slane %v2233, 4
        %v2239 = vsel %vm357, %v2238, %v2221
        %v2240 = vrot.slane %v2221, 4
        %v2241 = vsel %vm357, %v2233, %v2240
        %v2243 = vunpack.c.l.s4 1934713408
        %v2244 = vunpack.c.0.s8 %v2243
        %v2245 = vperm.slane %v2239, %v2244
        %v2247 = vunpack.c.l.s4 1934713408
        %v2248 = vunpack.c.0.s8 %v2247
        %v2249 = vperm.slane %v2241, %v2248
        %v2250 = vrot.slane %v2237, 4
        %v2251 = vsel %vm357, %v2250, %v2225
        %v2252 = vrot.slane %v2225, 4
        %v2253 = vsel %vm357, %v2237, %v2252
        %v2255 = vunpack.c.l.s4 1934713408
        %v2256 = vunpack.c.0.s8 %v2255
        %v2257 = vperm.slane %v2251, %v2256
        %v2259 = vunpack.c.l.s4 1934713408
        %v2260 = vunpack.c.0.s8 %v2259
        %v2261 = vperm.slane %v2253, %v2260
        %v2262 = vrot.slane %v2245, 4
        %v2263 = vsel %vm357, 0.0, %v2262
        %v2264 = vrot.slane %v2249, 4
        %v2265 = vsel %vm357, 0.0, %v2264
        %v2266 = vrot.slane %v2257, 4
        %v2267 = vsel %vm357, 0.0, %v2266
        %v2268 = vrot.slane %v2261, 4
        %v2269 = vsel %vm357, 0.0, %v2268
        %v2270 = vrot.slane %v2201, 4
        %v2271 = vsel %vm357, %v2270, %v2193
        %v2272 = vrot.slane %v2193, 4
        %v2273 = vsel %vm357, %v2201, %v2272
        %v2275 = vunpack.c.l.s4 1983009808
        %v2276 = vunpack.c.0.s8 %v2275
        %v2277 = vperm.slane %v2271, %v2276
        %v2279 = vunpack.c.l.s4 1983009808
        %v2280 = vunpack.c.0.s8 %v2279
        %v2281 = vperm.slane %v2273, %v2280
        %v2282 = vrot.slane %v2205, 4
        %v2283 = vsel %vm357, %v2282, %v2197
        %v2284 = vrot.slane %v2197, 4
        %v2285 = vsel %vm357, %v2205, %v2284
        %v2287 = vunpack.c.l.s4 1983009808
        %v2288 = vunpack.c.0.s8 %v2287
        %v2289 = vperm.slane %v2283, %v2288
        %v2291 = vunpack.c.l.s4 1983009808
        %v2292 = vunpack.c.0.s8 %v2291
        %v2293 = vperm.slane %v2285, %v2292
        %v2294 = vrot.slane %v2289, 4
        %v2295 = vsel %vm357, %v2294, %v2277
        %v2296 = vrot.slane %v2277, 4
        %v2297 = vsel %vm357, %v2289, %v2296
        %v2299 = vunpack.c.l.s4 1934713408
        %v2300 = vunpack.c.0.s8 %v2299
        %v2301 = vperm.slane %v2295, %v2300
        %v2303 = vunpack.c.l.s4 1934713408
        %v2304 = vunpack.c.0.s8 %v2303
        %v2305 = vperm.slane %v2297, %v2304
        %v2306 = vrot.slane %v2293, 4
        %v2307 = vsel %vm357, %v2306, %v2281
        %v2308 = vrot.slane %v2281, 4
        %v2309 = vsel %vm357, %v2293, %v2308
        %v2311 = vunpack.c.l.s4 1934713408
        %v2312 = vunpack.c.0.s8 %v2311
        %v2313 = vperm.slane %v2307, %v2312
        %v2315 = vunpack.c.l.s4 1934713408
        %v2316 = vunpack.c.0.s8 %v2315
        %v2317 = vperm.slane %v2309, %v2316
        %v2318 = vrot.slane %v2301, 4
        %v2319 = vsel %vm357, 0.0, %v2318
        %v2320 = vrot.slane %v2305, 4
        %v2321 = vsel %vm357, 0.0, %v2320
        %v2322 = vrot.slane %v2313, 4
        %v2323 = vsel %vm357, 0.0, %v2322
        %v2324 = vrot.slane %v2317, 4
        %v2325 = vsel %vm357, 0.0, %v2324
        %2327 = vrot.lane.b32.xlu0 %v2263, 16
        %v2328 = vpop.permute.xlu0 %2327
        %2331 = vrot.lane.b32.xlu0 %v2249, 32
        %v2332 = vpop.permute.xlu0 %2331
        %2335 = vrot.lane.b32.xlu0 %v2265, 48
        %v2336 = vpop.permute.xlu0 %2335
        %2339 = vrot.lane.b32.xlu0 %v2257, 64
        %v2340 = vpop.permute.xlu0 %2339
        %2343 = vrot.lane.b32.xlu0 %v2267, 80
        %v2344 = vpop.permute.xlu0 %2343
        %2347 = vrot.lane.b32.xlu0 %v2261, 96
        %v2348 = vpop.permute.xlu0 %2347
        %2351 = vrot.lane.b32.xlu0 %v2269, 112
        %v2352 = vpop.permute.xlu0 %2351
        %2355 = vrot.lane.b32.xlu0 %v2319, 16
        %v2356 = vpop.permute.xlu0 %2355
        %2359 = vrot.lane.b32.xlu0 %v2305, 32
        %v2360 = vpop.permute.xlu0 %2359
        %2363 = vrot.lane.b32.xlu0 %v2321, 48
        %v2364 = vpop.permute.xlu0 %2363
        %2367 = vrot.lane.b32.xlu0 %v2313, 64
        %v2368 = vpop.permute.xlu0 %2367
        %2371 = vrot.lane.b32.xlu0 %v2323, 80
        %v2372 = vpop.permute.xlu0 %2371
        %2375 = vrot.lane.b32.xlu0 %v2317, 96
        %v2376 = vpop.permute.xlu0 %2375
        %2379 = vrot.lane.b32.xlu0 %v2325, 112
        %v2380 = vpop.permute.xlu0 %2379
        %v2382 = vsel %vm525, %v2245, %v2328
        %v2383 = vsel %vm527, %v2382, %v2332
        %v2384 = vsel %vm529, %v2383, %v2336
        %v2385 = vsel %vm531, %v2384, %v2340
        %v2386 = vsel %vm533, %v2385, %v2344
        %v2387 = vsel %vm535, %v2386, %v2348
        %v2388 = vsel %vm537, %v2387, %v2352
        %v2389 = vsel %vm525, %v2301, %v2356
        %v2390 = vsel %vm527, %v2389, %v2360
        %v2391 = vsel %vm529, %v2390, %v2364
        %v2392 = vsel %vm531, %v2391, %v2368
        %v2393 = vsel %vm533, %v2392, %v2372
        %v2394 = vsel %vm535, %v2393, %v2376
        %v2395 = vsel %vm537, %v2394, %v2380
        %s2396 = scalar_lea.vmem %s1, 28
        %v2397 = vld [vmem:[%s2396] sm:$0xf]
        %v2399 = vsel %vm763, %v2397, 0
        %v2402 = vsel %vm767, %v2388, 0
        %v2405 = vsel %vm767, %v2395, 0
        %2407 = vmatpush.msra.mxu0 0.0
        %2408 = vmatpush.msra.mxu0 0.0
        %2409 = vmatpush.msra.mxu0 0.0
        %2410 = vmatpush.msra.mxu0 0.0
        %2411 = vmatpush.msra.mxu0 0.0
        %2412 = vmatpush.msra.mxu0 0.0
        %2413 = vmatpush.msra.mxu0 0.0
        %2414 = vmatpush.msra.mxu0 0.0
        %2415 = vmatpush.msra.mxu0 0.0
        %2416 = vmatpush.msra.mxu0 0.0
        %2417 = vmatpush.msra.mxu0 0.0
        %2418 = vmatpush.msra.mxu0 0.0
        %2419 = vmatpush.msra.mxu0 0.0
        %2420 = vmatpush.msra.mxu0 0.0
        %2421 = vmatpush.msra.mxu0 0.0
        %2422 = vmatpush.msra.mxu0 %v2402
        %2423 = vmatmul.f32.gmra.mxu0 %v2399
        %v2424 = vpop.f32.mrf.mxu0
        %v2425 = vadd.f32 0.0, %v2424
        %2426 = vdwg.mxu0
        %2427 = vmatpush.msra.mxu0 0.0
        %2428 = vmatpush.msra.mxu0 0.0
        %2429 = vmatpush.msra.mxu0 0.0
        %2430 = vmatpush.msra.mxu0 0.0
        %2431 = vmatpush.msra.mxu0 0.0
        %2432 = vmatpush.msra.mxu0 0.0
        %2433 = vmatpush.msra.mxu0 0.0
        %2434 = vmatpush.msra.mxu0 0.0
        %2435 = vmatpush.msra.mxu0 0.0
        %2436 = vmatpush.msra.mxu0 0.0
        %2437 = vmatpush.msra.mxu0 0.0
        %2438 = vmatpush.msra.mxu0 0.0
        %2439 = vmatpush.msra.mxu0 0.0
        %2440 = vmatpush.msra.mxu0 0.0
        %2441 = vmatpush.msra.mxu0 0.0
        %2442 = vmatpush.msra.mxu0 %v2405
        %2443 = vmatmul.f32.gmra.mxu0 %v2399
        %v2444 = vpop.f32.mrf.mxu0
        %v2445 = vadd.f32 0.0, %v2444
        %2446 = vdwg.mxu0
        %v2447 = vadd.f32 %v2172, %v2425
        %v2448 = vadd.f32 %v2173, %v2445
        %v2449 = vld [vmem:[#allocation2 + $0x2] sm:$0xff]
        %v2450 = vld [vmem:[#allocation2 + $0xa] sm:$0xff]
        %v2451 = vld [vmem:[#allocation2 + $0x1a] sm:$0xff]
        %v2452 = vld [vmem:[#allocation2 + $0x22] sm:$0xff]
        %v2453 = vld [vmem:[#allocation2 + $0x32] sm:$0xff]
        %v2454 = vld [vmem:[#allocation2 + $0x3a] sm:$0xff]
        %v2455 = vld [vmem:[#allocation2 + $0x4a] sm:$0xff]
        %v2456 = vld [vmem:[#allocation2 + $0x52] sm:$0xff]
        %2465 = vrot.lane.b32.xlu0 %v2449, 126
        %v2466 = vpop.permute.xlu0 %2465
        %2467 = vrot.lane.b32.xlu0 %v2450, 126
        %v2468 = vpop.permute.xlu0 %2467
        %2469 = vrot.lane.b32.xlu0 %v2451, 126
        %v2470 = vpop.permute.xlu0 %2469
        %2471 = vrot.lane.b32.xlu0 %v2452, 126
        %v2472 = vpop.permute.xlu0 %2471
        %2473 = vrot.lane.b32.xlu0 %v2453, 126
        %v2474 = vpop.permute.xlu0 %2473
        %2475 = vrot.lane.b32.xlu0 %v2454, 126
        %v2476 = vpop.permute.xlu0 %2475
        %2477 = vrot.lane.b32.xlu0 %v2455, 126
        %v2478 = vpop.permute.xlu0 %2477
        %2479 = vrot.lane.b32.xlu0 %v2456, 126
        %v2480 = vpop.permute.xlu0 %2479
        %v2489 = vrot.slane %v2474, 4
        %v2490 = vsel %vm357, %v2489, %v2466
        %v2491 = vrot.slane %v2466, 4
        %v2492 = vsel %vm357, %v2474, %v2491
        %v2494 = vunpack.c.l.s4 1983009808
        %v2495 = vunpack.c.0.s8 %v2494
        %v2496 = vperm.slane %v2490, %v2495
        %v2498 = vunpack.c.l.s4 1983009808
        %v2499 = vunpack.c.0.s8 %v2498
        %v2500 = vperm.slane %v2492, %v2499
        %v2501 = vrot.slane %v2478, 4
        %v2502 = vsel %vm357, %v2501, %v2470
        %v2503 = vrot.slane %v2470, 4
        %v2504 = vsel %vm357, %v2478, %v2503
        %v2506 = vunpack.c.l.s4 1983009808
        %v2507 = vunpack.c.0.s8 %v2506
        %v2508 = vperm.slane %v2502, %v2507
        %v2510 = vunpack.c.l.s4 1983009808
        %v2511 = vunpack.c.0.s8 %v2510
        %v2512 = vperm.slane %v2504, %v2511
        %v2513 = vrot.slane %v2508, 4
        %v2514 = vsel %vm357, %v2513, %v2496
        %v2515 = vrot.slane %v2496, 4
        %v2516 = vsel %vm357, %v2508, %v2515
        %v2518 = vunpack.c.l.s4 1934713408
        %v2519 = vunpack.c.0.s8 %v2518
        %v2520 = vperm.slane %v2514, %v2519
        %v2522 = vunpack.c.l.s4 1934713408
        %v2523 = vunpack.c.0.s8 %v2522
        %v2524 = vperm.slane %v2516, %v2523
        %v2525 = vrot.slane %v2512, 4
        %v2526 = vsel %vm357, %v2525, %v2500
        %v2527 = vrot.slane %v2500, 4
        %v2528 = vsel %vm357, %v2512, %v2527
        %v2530 = vunpack.c.l.s4 1934713408
        %v2531 = vunpack.c.0.s8 %v2530
        %v2532 = vperm.slane %v2526, %v2531
        %v2534 = vunpack.c.l.s4 1934713408
        %v2535 = vunpack.c.0.s8 %v2534
        %v2536 = vperm.slane %v2528, %v2535
        %v2537 = vrot.slane %v2520, 4
        %v2538 = vsel %vm357, 0.0, %v2537
        %v2539 = vrot.slane %v2524, 4
        %v2540 = vsel %vm357, 0.0, %v2539
        %v2541 = vrot.slane %v2532, 4
        %v2542 = vsel %vm357, 0.0, %v2541
        %v2543 = vrot.slane %v2536, 4
        %v2544 = vsel %vm357, 0.0, %v2543
        %v2545 = vrot.slane %v2476, 4
        %v2546 = vsel %vm357, %v2545, %v2468
        %v2547 = vrot.slane %v2468, 4
        %v2548 = vsel %vm357, %v2476, %v2547
        %v2550 = vunpack.c.l.s4 1983009808
        %v2551 = vunpack.c.0.s8 %v2550
        %v2552 = vperm.slane %v2546, %v2551
        %v2554 = vunpack.c.l.s4 1983009808
        %v2555 = vunpack.c.0.s8 %v2554
        %v2556 = vperm.slane %v2548, %v2555
        %v2557 = vrot.slane %v2480, 4
        %v2558 = vsel %vm357, %v2557, %v2472
        %v2559 = vrot.slane %v2472, 4
        %v2560 = vsel %vm357, %v2480, %v2559
        %v2562 = vunpack.c.l.s4 1983009808
        %v2563 = vunpack.c.0.s8 %v2562
        %v2564 = vperm.slane %v2558, %v2563
        %v2566 = vunpack.c.l.s4 1983009808
        %v2567 = vunpack.c.0.s8 %v2566
        %v2568 = vperm.slane %v2560, %v2567
        %v2569 = vrot.slane %v2564, 4
        %v2570 = vsel %vm357, %v2569, %v2552
        %v2571 = vrot.slane %v2552, 4
        %v2572 = vsel %vm357, %v2564, %v2571
        %v2574 = vunpack.c.l.s4 1934713408
        %v2575 = vunpack.c.0.s8 %v2574
        %v2576 = vperm.slane %v2570, %v2575
        %v2578 = vunpack.c.l.s4 1934713408
        %v2579 = vunpack.c.0.s8 %v2578
        %v2580 = vperm.slane %v2572, %v2579
        %v2581 = vrot.slane %v2568, 4
        %v2582 = vsel %vm357, %v2581, %v2556
        %v2583 = vrot.slane %v2556, 4
        %v2584 = vsel %vm357, %v2568, %v2583
        %v2586 = vunpack.c.l.s4 1934713408
        %v2587 = vunpack.c.0.s8 %v2586
        %v2588 = vperm.slane %v2582, %v2587
        %v2590 = vunpack.c.l.s4 1934713408
        %v2591 = vunpack.c.0.s8 %v2590
        %v2592 = vperm.slane %v2584, %v2591
        %v2593 = vrot.slane %v2576, 4
        %v2594 = vsel %vm357, 0.0, %v2593
        %v2595 = vrot.slane %v2580, 4
        %v2596 = vsel %vm357, 0.0, %v2595
        %v2597 = vrot.slane %v2588, 4
        %v2598 = vsel %vm357, 0.0, %v2597
        %v2599 = vrot.slane %v2592, 4
        %v2600 = vsel %vm357, 0.0, %v2599
        %2602 = vrot.lane.b32.xlu0 %v2538, 16
        %v2603 = vpop.permute.xlu0 %2602
        %2606 = vrot.lane.b32.xlu0 %v2524, 32
        %v2607 = vpop.permute.xlu0 %2606
        %2610 = vrot.lane.b32.xlu0 %v2540, 48
        %v2611 = vpop.permute.xlu0 %2610
        %2614 = vrot.lane.b32.xlu0 %v2532, 64
        %v2615 = vpop.permute.xlu0 %2614
        %2618 = vrot.lane.b32.xlu0 %v2542, 80
        %v2619 = vpop.permute.xlu0 %2618
        %2622 = vrot.lane.b32.xlu0 %v2536, 96
        %v2623 = vpop.permute.xlu0 %2622
        %2626 = vrot.lane.b32.xlu0 %v2544, 112
        %v2627 = vpop.permute.xlu0 %2626
        %2630 = vrot.lane.b32.xlu0 %v2594, 16
        %v2631 = vpop.permute.xlu0 %2630
        %2634 = vrot.lane.b32.xlu0 %v2580, 32
        %v2635 = vpop.permute.xlu0 %2634
        %2638 = vrot.lane.b32.xlu0 %v2596, 48
        %v2639 = vpop.permute.xlu0 %2638
        %2642 = vrot.lane.b32.xlu0 %v2588, 64
        %v2643 = vpop.permute.xlu0 %2642
        %2646 = vrot.lane.b32.xlu0 %v2598, 80
        %v2647 = vpop.permute.xlu0 %2646
        %2650 = vrot.lane.b32.xlu0 %v2592, 96
        %v2651 = vpop.permute.xlu0 %2650
        %2654 = vrot.lane.b32.xlu0 %v2600, 112
        %v2655 = vpop.permute.xlu0 %2654
        %v2657 = vsel %vm525, %v2520, %v2603
        %v2658 = vsel %vm527, %v2657, %v2607
        %v2659 = vsel %vm529, %v2658, %v2611
        %v2660 = vsel %vm531, %v2659, %v2615
        %v2661 = vsel %vm533, %v2660, %v2619
        %v2662 = vsel %vm535, %v2661, %v2623
        %v2663 = vsel %vm537, %v2662, %v2627
        %v2664 = vsel %vm525, %v2576, %v2631
        %v2665 = vsel %vm527, %v2664, %v2635
        %v2666 = vsel %vm529, %v2665, %v2639
        %v2667 = vsel %vm531, %v2666, %v2643
        %v2668 = vsel %vm533, %v2667, %v2647
        %v2669 = vsel %vm535, %v2668, %v2651
        %v2670 = vsel %vm537, %v2669, %v2655
        %s2671 = scalar_lea.vmem %s1, 32
        %v2672 = vld [vmem:[%s2671] sm:$0xf]
        %v2674 = vsel %vm763, %v2672, 0
        %v2677 = vsel %vm767, %v2663, 0
        %v2680 = vsel %vm767, %v2670, 0
        %2682 = vmatpush.msra.mxu0 0.0
        %2683 = vmatpush.msra.mxu0 0.0
        %2684 = vmatpush.msra.mxu0 0.0
        %2685 = vmatpush.msra.mxu0 0.0
        %2686 = vmatpush.msra.mxu0 0.0
        %2687 = vmatpush.msra.mxu0 0.0
        %2688 = vmatpush.msra.mxu0 0.0
        %2689 = vmatpush.msra.mxu0 0.0
        %2690 = vmatpush.msra.mxu0 0.0
        %2691 = vmatpush.msra.mxu0 0.0
        %2692 = vmatpush.msra.mxu0 0.0
        %2693 = vmatpush.msra.mxu0 0.0
        %2694 = vmatpush.msra.mxu0 0.0
        %2695 = vmatpush.msra.mxu0 0.0
        %2696 = vmatpush.msra.mxu0 0.0
        %2697 = vmatpush.msra.mxu0 %v2677
        %2698 = vmatmul.f32.gmra.mxu0 %v2674
        %v2699 = vpop.f32.mrf.mxu0
        %v2700 = vadd.f32 0.0, %v2699
        %2701 = vdwg.mxu0
        %2702 = vmatpush.msra.mxu0 0.0
        %2703 = vmatpush.msra.mxu0 0.0
        %2704 = vmatpush.msra.mxu0 0.0
        %2705 = vmatpush.msra.mxu0 0.0
        %2706 = vmatpush.msra.mxu0 0.0
        %2707 = vmatpush.msra.mxu0 0.0
        %2708 = vmatpush.msra.mxu0 0.0
        %2709 = vmatpush.msra.mxu0 0.0
        %2710 = vmatpush.msra.mxu0 0.0
        %2711 = vmatpush.msra.mxu0 0.0
        %2712 = vmatpush.msra.mxu0 0.0
        %2713 = vmatpush.msra.mxu0 0.0
        %2714 = vmatpush.msra.mxu0 0.0
        %2715 = vmatpush.msra.mxu0 0.0
        %2716 = vmatpush.msra.mxu0 0.0
        %2717 = vmatpush.msra.mxu0 %v2680
        %2718 = vmatmul.f32.gmra.mxu0 %v2674
        %v2719 = vpop.f32.mrf.mxu0
        %v2720 = vadd.f32 0.0, %v2719
        %2721 = vdwg.mxu0
        %v2722 = vadd.f32 %v2447, %v2700
        %v2723 = vadd.f32 %v2448, %v2720
        %v2724 = vld [vmem:[%s2] sm:$0xf]
        %2726 = vset.pattern.permute.xlu0 0
        %2727 = vperm.xlu0 %2726, %v2724
        %v2728 = vpop.permute.xlu0 %2727
        %v2730 = vadd.f32 %v2722, %v2728
        %v2731 = vadd.f32 %v2723, %v2728
        %vm2732 = vcmp.ge.f32.partialorder %v2730, 0.0
        %vm2733 = vcmp.ge.f32.partialorder %v2731, 0.0
        %v2734 = vmul.f32 %v2730, 0.1
        %v2735 = vmul.f32 %v2731, 0.1
        %v2736 = vsel %vm2732, %v2730, %v2734
        %v2737 = vsel %vm2733, %v2731, %v2735
        %2739 = vrot.lane.b32.xlu0 %v2736, 112
        %v2740 = vpop.permute.xlu0 %2739
        %2742 = vrot.lane.b32.xlu0 %v2736, 96
        %v2743 = vpop.permute.xlu0 %2742
        %2745 = vrot.lane.b32.xlu0 %v2736, 80
        %v2746 = vpop.permute.xlu0 %2745
        %2748 = vrot.lane.b32.xlu0 %v2736, 64
        %v2749 = vpop.permute.xlu0 %2748
        %2751 = vrot.lane.b32.xlu0 %v2736, 48
        %v2752 = vpop.permute.xlu0 %2751
        %2754 = vrot.lane.b32.xlu0 %v2736, 32
        %v2755 = vpop.permute.xlu0 %2754
        %2757 = vrot.lane.b32.xlu0 %v2736, 16
        %v2758 = vpop.permute.xlu0 %2757
        %2761 = vrot.lane.b32.xlu0 %v2737, 112
        %v2762 = vpop.permute.xlu0 %2761
        %2764 = vrot.lane.b32.xlu0 %v2737, 96
        %v2765 = vpop.permute.xlu0 %2764
        %2767 = vrot.lane.b32.xlu0 %v2737, 80
        %v2768 = vpop.permute.xlu0 %2767
        %2770 = vrot.lane.b32.xlu0 %v2737, 64
        %v2771 = vpop.permute.xlu0 %2770
        %2773 = vrot.lane.b32.xlu0 %v2737, 48
        %v2774 = vpop.permute.xlu0 %2773
        %2776 = vrot.lane.b32.xlu0 %v2737, 32
        %v2777 = vpop.permute.xlu0 %2776
        %2779 = vrot.lane.b32.xlu0 %v2737, 16
        %v2780 = vpop.permute.xlu0 %2779
        %v2782 = vrot.slane %v2743, 4
        %v2783 = vsel %vm357, %v2782, %v2736
        %v2785 = vunpack.c.l.s4 1983009808
        %v2786 = vunpack.c.0.s8 %v2785
        %v2787 = vperm.slane %v2783, %v2786
        %v2788 = vrot.slane %v2746, 4
        %v2789 = vsel %vm357, %v2788, %v2740
        %v2791 = vunpack.c.l.s4 1983009808
        %v2792 = vunpack.c.0.s8 %v2791
        %v2793 = vperm.slane %v2789, %v2792
        %v2794 = vrot.slane %v2755, 4
        %v2795 = vsel %vm357, %v2794, %v2749
        %v2797 = vunpack.c.l.s4 1983009808
        %v2798 = vunpack.c.0.s8 %v2797
        %v2799 = vperm.slane %v2795, %v2798
        %v2800 = vrot.slane %v2758, 4
        %v2801 = vsel %vm357, %v2800, %v2752
        %v2803 = vunpack.c.l.s4 1983009808
        %v2804 = vunpack.c.0.s8 %v2803
        %v2805 = vperm.slane %v2801, %v2804
        %v2806 = vrot.slane %v2793, 4
        %v2807 = vsel %vm357, %v2806, %v2787
        %v2808 = vrot.slane %v2787, 4
        %v2809 = vsel %vm357, %v2793, %v2808
        %v2811 = vunpack.c.l.s4 1934713408
        %v2812 = vunpack.c.0.s8 %v2811
        %v2813 = vperm.slane %v2807, %v2812
        %v2815 = vunpack.c.l.s4 1934713408
        %v2816 = vunpack.c.0.s8 %v2815
        %v2817 = vperm.slane %v2809, %v2816
        %v2818 = vrot.slane %v2805, 4
        %v2819 = vsel %vm357, %v2818, %v2799
        %v2820 = vrot.slane %v2799, 4
        %v2821 = vsel %vm357, %v2805, %v2820
        %v2823 = vunpack.c.l.s4 1934713408
        %v2824 = vunpack.c.0.s8 %v2823
        %v2825 = vperm.slane %v2819, %v2824
        %v2827 = vunpack.c.l.s4 1934713408
        %v2828 = vunpack.c.0.s8 %v2827
        %v2829 = vperm.slane %v2821, %v2828
        %v2830 = vrot.slane %v2825, 4
        %v2831 = vsel %vm357, %v2830, %v2813
        %v2832 = vrot.slane %v2813, 4
        %v2833 = vsel %vm357, %v2825, %v2832
        %v2834 = vrot.slane %v2829, 4
        %v2835 = vsel %vm357, %v2834, %v2817
        %v2836 = vrot.slane %v2817, 4
        %v2837 = vsel %vm357, %v2829, %v2836
        %v2838 = vrot.slane %v2765, 4
        %v2839 = vsel %vm357, %v2838, %v2737
        %v2841 = vunpack.c.l.s4 1983009808
        %v2842 = vunpack.c.0.s8 %v2841
        %v2843 = vperm.slane %v2839, %v2842
        %v2844 = vrot.slane %v2768, 4
        %v2845 = vsel %vm357, %v2844, %v2762
        %v2847 = vunpack.c.l.s4 1983009808
        %v2848 = vunpack.c.0.s8 %v2847
        %v2849 = vperm.slane %v2845, %v2848
        %v2850 = vrot.slane %v2777, 4
        %v2851 = vsel %vm357, %v2850, %v2771
        %v2853 = vunpack.c.l.s4 1983009808
        %v2854 = vunpack.c.0.s8 %v2853
        %v2855 = vperm.slane %v2851, %v2854
        %v2856 = vrot.slane %v2780, 4
        %v2857 = vsel %vm357, %v2856, %v2774
        %v2859 = vunpack.c.l.s4 1983009808
        %v2860 = vunpack.c.0.s8 %v2859
        %v2861 = vperm.slane %v2857, %v2860
        %v2862 = vrot.slane %v2849, 4
        %v2863 = vsel %vm357, %v2862, %v2843
        %v2864 = vrot.slane %v2843, 4
        %v2865 = vsel %vm357, %v2849, %v2864
        %v2867 = vunpack.c.l.s4 1934713408
        %v2868 = vunpack.c.0.s8 %v2867
        %v2869 = vperm.slane %v2863, %v2868
        %v2871 = vunpack.c.l.s4 1934713408
        %v2872 = vunpack.c.0.s8 %v2871
        %v2873 = vperm.slane %v2865, %v2872
        %v2874 = vrot.slane %v2861, 4
        %v2875 = vsel %vm357, %v2874, %v2855
        %v2876 = vrot.slane %v2855, 4
        %v2877 = vsel %vm357, %v2861, %v2876
        %v2879 = vunpack.c.l.s4 1934713408
        %v2880 = vunpack.c.0.s8 %v2879
        %v2881 = vperm.slane %v2875, %v2880
        %v2883 = vunpack.c.l.s4 1934713408
        %v2884 = vunpack.c.0.s8 %v2883
        %v2885 = vperm.slane %v2877, %v2884
        %v2886 = vrot.slane %v2881, 4
        %v2887 = vsel %vm357, %v2886, %v2869
        %v2888 = vrot.slane %v2869, 4
        %v2889 = vsel %vm357, %v2881, %v2888
        %v2890 = vrot.slane %v2885, 4
        %v2891 = vsel %vm357, %v2890, %v2873
        %v2892 = vrot.slane %v2873, 4
        %v2893 = vsel %vm357, %v2885, %v2892
        %2902 = vrot.lane.b32.xlu0 %v2831, 2
        %v2903 = vpop.permute.xlu0 %2902
        %2904 = vrot.lane.b32.xlu0 %v2887, 2
        %v2905 = vpop.permute.xlu0 %2904
        %2906 = vrot.lane.b32.xlu0 %v2833, 2
        %v2907 = vpop.permute.xlu0 %2906
        %2908 = vrot.lane.b32.xlu0 %v2889, 2
        %v2909 = vpop.permute.xlu0 %2908
        %2910 = vrot.lane.b32.xlu0 %v2835, 2
        %v2911 = vpop.permute.xlu0 %2910
        %2912 = vrot.lane.b32.xlu0 %v2891, 2
        %v2913 = vpop.permute.xlu0 %2912
        %2914 = vrot.lane.b32.xlu0 %v2837, 2
        %v2915 = vpop.permute.xlu0 %2914
        %2916 = vrot.lane.b32.xlu0 %v2893, 2
        %v2917 = vpop.permute.xlu0 %2916
        %vm2926 = vcmask 146448
        %2927 = vst.msk [vmem:[#allocation3 + $0x2] sm:$0xff] %vm2926, %v2903
        %2928 = vst.msk [vmem:[#allocation3 + $0xa] sm:$0xff] %vm2926, %v2905
        %2929 = vst.msk [vmem:[#allocation3 + $0x1a] sm:$0xff] %vm2926, %v2907
        %2930 = vst.msk [vmem:[#allocation3 + $0x22] sm:$0xff] %vm2926, %v2909
        %2931 = vst.msk [vmem:[#allocation3 + $0x32] sm:$0xff] %vm2926, %v2911
        %2932 = vst.msk [vmem:[#allocation3 + $0x3a] sm:$0xff] %vm2926, %v2913
        %2933 = vst.msk [vmem:[#allocation3 + $0x4a] sm:$0xff] %vm2926, %v2915
        %2934 = vst.msk [vmem:[#allocation3 + $0x52] sm:$0xff] %vm2926, %v2917
        %v2935 = vld [vmem:[#allocation3] sm:$0xff]
        %v2936 = vld [vmem:[#allocation3 + $0x8] sm:$0xff]
        %v2937 = vld [vmem:[#allocation3 + $0x18] sm:$0xff]
        %v2938 = vld [vmem:[#allocation3 + $0x20] sm:$0xff]
        %v2939 = vld [vmem:[#allocation3 + $0x30] sm:$0xff]
        %v2940 = vld [vmem:[#allocation3 + $0x38] sm:$0xff]
        %v2941 = vld [vmem:[#allocation3 + $0x48] sm:$0xff]
        %v2942 = vld [vmem:[#allocation3 + $0x50] sm:$0xff]
        %v2943 = vrot.slane %v2939, 4
        %v2944 = vsel %vm357, %v2943, %v2935
        %v2945 = vrot.slane %v2935, 4
        %v2946 = vsel %vm357, %v2939, %v2945
        %v2948 = vunpack.c.l.s4 1983009808
        %v2949 = vunpack.c.0.s8 %v2948
        %v2950 = vperm.slane %v2944, %v2949
        %v2952 = vunpack.c.l.s4 1983009808
        %v2953 = vunpack.c.0.s8 %v2952
        %v2954 = vperm.slane %v2946, %v2953
        %v2955 = vrot.slane %v2941, 4
        %v2956 = vsel %vm357, %v2955, %v2937
        %v2957 = vrot.slane %v2937, 4
        %v2958 = vsel %vm357, %v2941, %v2957
        %v2960 = vunpack.c.l.s4 1983009808
        %v2961 = vunpack.c.0.s8 %v2960
        %v2962 = vperm.slane %v2956, %v2961
        %v2964 = vunpack.c.l.s4 1983009808
        %v2965 = vunpack.c.0.s8 %v2964
        %v2966 = vperm.slane %v2958, %v2965
        %v2967 = vrot.slane %v2962, 4
        %v2968 = vsel %vm357, %v2967, %v2950
        %v2969 = vrot.slane %v2950, 4
        %v2970 = vsel %vm357, %v2962, %v2969
        %v2972 = vunpack.c.l.s4 1934713408
        %v2973 = vunpack.c.0.s8 %v2972
        %v2974 = vperm.slane %v2968, %v2973
        %v2976 = vunpack.c.l.s4 1934713408
        %v2977 = vunpack.c.0.s8 %v2976
        %v2978 = vperm.slane %v2970, %v2977
        %v2979 = vrot.slane %v2966, 4
        %v2980 = vsel %vm357, %v2979, %v2954
        %v2981 = vrot.slane %v2954, 4
        %v2982 = vsel %vm357, %v2966, %v2981
        %v2984 = vunpack.c.l.s4 1934713408
        %v2985 = vunpack.c.0.s8 %v2984
        %v2986 = vperm.slane %v2980, %v2985
        %v2988 = vunpack.c.l.s4 1934713408
        %v2989 = vunpack.c.0.s8 %v2988
        %v2990 = vperm.slane %v2982, %v2989
        %v2991 = vrot.slane %v2974, 4
        %v2992 = vsel %vm357, 0.0, %v2991
        %v2993 = vrot.slane %v2978, 4
        %v2994 = vsel %vm357, 0.0, %v2993
        %v2995 = vrot.slane %v2986, 4
        %v2996 = vsel %vm357, 0.0, %v2995
        %v2997 = vrot.slane %v2990, 4
        %v2998 = vsel %vm357, 0.0, %v2997
        %v2999 = vrot.slane %v2940, 4
        %v3000 = vsel %vm357, %v2999, %v2936
        %v3001 = vrot.slane %v2936, 4
        %v3002 = vsel %vm357, %v2940, %v3001
        %v3004 = vunpack.c.l.s4 1983009808
        %v3005 = vunpack.c.0.s8 %v3004
        %v3006 = vperm.slane %v3000, %v3005
        %v3008 = vunpack.c.l.s4 1983009808
        %v3009 = vunpack.c.0.s8 %v3008
        %v3010 = vperm.slane %v3002, %v3009
        %v3011 = vrot.slane %v2942, 4
        %v3012 = vsel %vm357, %v3011, %v2938
        %v3013 = vrot.slane %v2938, 4
        %v3014 = vsel %vm357, %v2942, %v3013
        %v3016 = vunpack.c.l.s4 1983009808
        %v3017 = vunpack.c.0.s8 %v3016
        %v3018 = vperm.slane %v3012, %v3017
        %v3020 = vunpack.c.l.s4 1983009808
        %v3021 = vunpack.c.0.s8 %v3020
        %v3022 = vperm.slane %v3014, %v3021
        %v3023 = vrot.slane %v3018, 4
        %v3024 = vsel %vm357, %v3023, %v3006
        %v3025 = vrot.slane %v3006, 4
        %v3026 = vsel %vm357, %v3018, %v3025
        %v3028 = vunpack.c.l.s4 1934713408
        %v3029 = vunpack.c.0.s8 %v3028
        %v3030 = vperm.slane %v3024, %v3029
        %v3032 = vunpack.c.l.s4 1934713408
        %v3033 = vunpack.c.0.s8 %v3032
        %v3034 = vperm.slane %v3026, %v3033
        %v3035 = vrot.slane %v3022, 4
        %v3036 = vsel %vm357, %v3035, %v3010
        %v3037 = vrot.slane %v3010, 4
        %v3038 = vsel %vm357, %v3022, %v3037
        %v3040 = vunpack.c.l.s4 1934713408
        %v3041 = vunpack.c.0.s8 %v3040
        %v3042 = vperm.slane %v3036, %v3041
        %v3044 = vunpack.c.l.s4 1934713408
        %v3045 = vunpack.c.0.s8 %v3044
        %v3046 = vperm.slane %v3038, %v3045
        %v3047 = vrot.slane %v3030, 4
        %v3048 = vsel %vm357, 0.0, %v3047
        %v3049 = vrot.slane %v3034, 4
        %v3050 = vsel %vm357, 0.0, %v3049
        %v3051 = vrot.slane %v3042, 4
        %v3052 = vsel %vm357, 0.0, %v3051
        %v3053 = vrot.slane %v3046, 4
        %v3054 = vsel %vm357, 0.0, %v3053
        %3056 = vrot.lane.b32.xlu0 %v2992, 16
        %v3057 = vpop.permute.xlu0 %3056
        %3060 = vrot.lane.b32.xlu0 %v2978, 32
        %v3061 = vpop.permute.xlu0 %3060
        %3064 = vrot.lane.b32.xlu0 %v2994, 48
        %v3065 = vpop.permute.xlu0 %3064
        %3068 = vrot.lane.b32.xlu0 %v2986, 64
        %v3069 = vpop.permute.xlu0 %3068
        %3072 = vrot.lane.b32.xlu0 %v2996, 80
        %v3073 = vpop.permute.xlu0 %3072
        %3076 = vrot.lane.b32.xlu0 %v2990, 96
        %v3077 = vpop.permute.xlu0 %3076
        %3080 = vrot.lane.b32.xlu0 %v2998, 112
        %v3081 = vpop.permute.xlu0 %3080
        %3084 = vrot.lane.b32.xlu0 %v3048, 16
        %v3085 = vpop.permute.xlu0 %3084
        %3088 = vrot.lane.b32.xlu0 %v3034, 32
        %v3089 = vpop.permute.xlu0 %3088
        %3092 = vrot.lane.b32.xlu0 %v3050, 48
        %v3093 = vpop.permute.xlu0 %3092
        %3096 = vrot.lane.b32.xlu0 %v3042, 64
        %v3097 = vpop.permute.xlu0 %3096
        %3100 = vrot.lane.b32.xlu0 %v3052, 80
        %v3101 = vpop.permute.xlu0 %3100
        %3104 = vrot.lane.b32.xlu0 %v3046, 96
        %v3105 = vpop.permute.xlu0 %3104
        %3108 = vrot.lane.b32.xlu0 %v3054, 112
        %v3109 = vpop.permute.xlu0 %3108
        %v3111 = vsel %vm525, %v2974, %v3057
        %v3112 = vsel %vm527, %v3111, %v3061
        %v3113 = vsel %vm529, %v3112, %v3065
        %v3114 = vsel %vm531, %v3113, %v3069
        %v3115 = vsel %vm533, %v3114, %v3073
        %v3116 = vsel %vm535, %v3115, %v3077
        %v3117 = vsel %vm537, %v3116, %v3081
        %v3118 = vsel %vm525, %v3030, %v3085
        %v3119 = vsel %vm527, %v3118, %v3089
        %v3120 = vsel %vm529, %v3119, %v3093
        %v3121 = vsel %vm531, %v3120, %v3097
        %v3122 = vsel %vm533, %v3121, %v3101
        %v3123 = vsel %vm535, %v3122, %v3105
        %v3124 = vsel %vm537, %v3123, %v3109
        %v3125 = vld [vmem:[%s3] sm:$0xf]
        %3134 = vrot.lane.b32.xlu0 %v2935, 126
        %v3135 = vpop.permute.xlu0 %3134
        %3136 = vrot.lane.b32.xlu0 %v2936, 126
        %v3137 = vpop.permute.xlu0 %3136
        %3138 = vrot.lane.b32.xlu0 %v2937, 126
        %v3139 = vpop.permute.xlu0 %3138
        %3140 = vrot.lane.b32.xlu0 %v2938, 126
        %v3141 = vpop.permute.xlu0 %3140
        %3142 = vrot.lane.b32.xlu0 %v2939, 126
        %v3143 = vpop.permute.xlu0 %3142
        %3144 = vrot.lane.b32.xlu0 %v2940, 126
        %v3145 = vpop.permute.xlu0 %3144
        %3146 = vrot.lane.b32.xlu0 %v2941, 126
        %v3147 = vpop.permute.xlu0 %3146
        %3148 = vrot.lane.b32.xlu0 %v2942, 126
        %v3149 = vpop.permute.xlu0 %3148
        %v3158 = vrot.slane %v3143, 4
        %v3159 = vsel %vm357, %v3158, %v3135
        %v3160 = vrot.slane %v3135, 4
        %v3161 = vsel %vm357, %v3143, %v3160
        %v3163 = vunpack.c.l.s4 1983009808
        %v3164 = vunpack.c.0.s8 %v3163
        %v3165 = vperm.slane %v3159, %v3164
        %v3167 = vunpack.c.l.s4 1983009808
        %v3168 = vunpack.c.0.s8 %v3167
        %v3169 = vperm.slane %v3161, %v3168
        %v3170 = vrot.slane %v3147, 4
        %v3171 = vsel %vm357, %v3170, %v3139
        %v3172 = vrot.slane %v3139, 4
        %v3173 = vsel %vm357, %v3147, %v3172
        %v3175 = vunpack.c.l.s4 1983009808
        %v3176 = vunpack.c.0.s8 %v3175
        %v3177 = vperm.slane %v3171, %v3176
        %v3179 = vunpack.c.l.s4 1983009808
        %v3180 = vunpack.c.0.s8 %v3179
        %v3181 = vperm.slane %v3173, %v3180
        %v3182 = vrot.slane %v3177, 4
        %v3183 = vsel %vm357, %v3182, %v3165
        %v3184 = vrot.slane %v3165, 4
        %v3185 = vsel %vm357, %v3177, %v3184
        %v3187 = vunpack.c.l.s4 1934713408
        %v3188 = vunpack.c.0.s8 %v3187
        %v3189 = vperm.slane %v3183, %v3188
        %v3191 = vunpack.c.l.s4 1934713408
        %v3192 = vunpack.c.0.s8 %v3191
        %v3193 = vperm.slane %v3185, %v3192
        %v3194 = vrot.slane %v3181, 4
        %v3195 = vsel %vm357, %v3194, %v3169
        %v3196 = vrot.slane %v3169, 4
        %v3197 = vsel %vm357, %v3181, %v3196
        %v3199 = vunpack.c.l.s4 1934713408
        %v3200 = vunpack.c.0.s8 %v3199
        %v3201 = vperm.slane %v3195, %v3200
        %v3203 = vunpack.c.l.s4 1934713408
        %v3204 = vunpack.c.0.s8 %v3203
        %v3205 = vperm.slane %v3197, %v3204
        %v3206 = vrot.slane %v3189, 4
        %v3207 = vsel %vm357, 0.0, %v3206
        %v3208 = vrot.slane %v3193, 4
        %v3209 = vsel %vm357, 0.0, %v3208
        %v3210 = vrot.slane %v3201, 4
        %v3211 = vsel %vm357, 0.0, %v3210
        %v3212 = vrot.slane %v3205, 4
        %v3213 = vsel %vm357, 0.0, %v3212
        %v3214 = vrot.slane %v3145, 4
        %v3215 = vsel %vm357, %v3214, %v3137
        %v3216 = vrot.slane %v3137, 4
        %v3217 = vsel %vm357, %v3145, %v3216
        %v3219 = vunpack.c.l.s4 1983009808
        %v3220 = vunpack.c.0.s8 %v3219
        %v3221 = vperm.slane %v3215, %v3220
        %v3223 = vunpack.c.l.s4 1983009808
        %v3224 = vunpack.c.0.s8 %v3223
        %v3225 = vperm.slane %v3217, %v3224
        %v3226 = vrot.slane %v3149, 4
        %v3227 = vsel %vm357, %v3226, %v3141
        %v3228 = vrot.slane %v3141, 4
        %v3229 = vsel %vm357, %v3149, %v3228
        %v3231 = vunpack.c.l.s4 1983009808
        %v3232 = vunpack.c.0.s8 %v3231
        %v3233 = vperm.slane %v3227, %v3232
        %v3235 = vunpack.c.l.s4 1983009808
        %v3236 = vunpack.c.0.s8 %v3235
        %v3237 = vperm.slane %v3229, %v3236
        %v3238 = vrot.slane %v3233, 4
        %v3239 = vsel %vm357, %v3238, %v3221
        %v3240 = vrot.slane %v3221, 4
        %v3241 = vsel %vm357, %v3233, %v3240
        %v3243 = vunpack.c.l.s4 1934713408
        %v3244 = vunpack.c.0.s8 %v3243
        %v3245 = vperm.slane %v3239, %v3244
        %v3247 = vunpack.c.l.s4 1934713408
        %v3248 = vunpack.c.0.s8 %v3247
        %v3249 = vperm.slane %v3241, %v3248
        %v3250 = vrot.slane %v3237, 4
        %v3251 = vsel %vm357, %v3250, %v3225
        %v3252 = vrot.slane %v3225, 4
        %v3253 = vsel %vm357, %v3237, %v3252
        %v3255 = vunpack.c.l.s4 1934713408
        %v3256 = vunpack.c.0.s8 %v3255
        %v3257 = vperm.slane %v3251, %v3256
        %v3259 = vunpack.c.l.s4 1934713408
        %v3260 = vunpack.c.0.s8 %v3259
        %v3261 = vperm.slane %v3253, %v3260
        %v3262 = vrot.slane %v3245, 4
        %v3263 = vsel %vm357, 0.0, %v3262
        %v3264 = vrot.slane %v3249, 4
        %v3265 = vsel %vm357, 0.0, %v3264
        %v3266 = vrot.slane %v3257, 4
        %v3267 = vsel %vm357, 0.0, %v3266
        %v3268 = vrot.slane %v3261, 4
        %v3269 = vsel %vm357, 0.0, %v3268
        %3271 = vrot.lane.b32.xlu0 %v3207, 16
        %v3272 = vpop.permute.xlu0 %3271
        %3275 = vrot.lane.b32.xlu0 %v3193, 32
        %v3276 = vpop.permute.xlu0 %3275
        %3279 = vrot.lane.b32.xlu0 %v3209, 48
        %v3280 = vpop.permute.xlu0 %3279
        %3283 = vrot.lane.b32.xlu0 %v3201, 64
        %v3284 = vpop.permute.xlu0 %3283
        %3287 = vrot.lane.b32.xlu0 %v3211, 80
        %v3288 = vpop.permute.xlu0 %3287
        %3291 = vrot.lane.b32.xlu0 %v3205, 96
        %v3292 = vpop.permute.xlu0 %3291
        %3295 = vrot.lane.b32.xlu0 %v3213, 112
        %v3296 = vpop.permute.xlu0 %3295
        %3299 = vrot.lane.b32.xlu0 %v3263, 16
        %v3300 = vpop.permute.xlu0 %3299
        %3303 = vrot.lane.b32.xlu0 %v3249, 32
        %v3304 = vpop.permute.xlu0 %3303
        %3307 = vrot.lane.b32.xlu0 %v3265, 48
        %v3308 = vpop.permute.xlu0 %3307
        %3311 = vrot.lane.b32.xlu0 %v3257, 64
        %v3312 = vpop.permute.xlu0 %3311
        %3315 = vrot.lane.b32.xlu0 %v3267, 80
        %v3316 = vpop.permute.xlu0 %3315
        %3319 = vrot.lane.b32.xlu0 %v3261, 96
        %v3320 = vpop.permute.xlu0 %3319
        %3323 = vrot.lane.b32.xlu0 %v3269, 112
        %v3324 = vpop.permute.xlu0 %3323
        %v3326 = vsel %vm525, %v3189, %v3272
        %v3327 = vsel %vm527, %v3326, %v3276
        %v3328 = vsel %vm529, %v3327, %v3280
        %v3329 = vsel %vm531, %v3328, %v3284
        %v3330 = vsel %vm533, %v3329, %v3288
        %v3331 = vsel %vm535, %v3330, %v3292
        %v3332 = vsel %vm537, %v3331, %v3296
        %v3333 = vsel %vm525, %v3245, %v3300
        %v3334 = vsel %vm527, %v3333, %v3304
        %v3335 = vsel %vm529, %v3334, %v3308
        %v3336 = vsel %vm531, %v3335, %v3312
        %v3337 = vsel %vm533, %v3336, %v3316
        %v3338 = vsel %vm535, %v3337, %v3320
        %v3339 = vsel %vm537, %v3338, %v3324
        %s3340 = scalar_lea.vmem %s3, 4
        %v3341 = vld [vmem:[%s3340] sm:$0xf]
        %v3343 = vsel %vm763, %v3341, 0
        %v3346 = vsel %vm767, %v3332, 0
        %v3349 = vsel %vm767, %v3339, 0
        %3351 = vmatpush.msra.mxu0 0.0
        %3352 = vmatpush.msra.mxu0 0.0
        %3353 = vmatpush.msra.mxu0 0.0
        %3354 = vmatpush.msra.mxu0 0.0
        %3355 = vmatpush.msra.mxu0 0.0
        %3356 = vmatpush.msra.mxu0 0.0
        %3357 = vmatpush.msra.mxu0 0.0
        %3358 = vmatpush.msra.mxu0 0.0
        %3359 = vmatpush.msra.mxu0 0.0
        %3360 = vmatpush.msra.mxu0 0.0
        %3361 = vmatpush.msra.mxu0 0.0
        %3362 = vmatpush.msra.mxu0 0.0
        %3363 = vmatpush.msra.mxu0 0.0
        %3364 = vmatpush.msra.mxu0 0.0
        %3365 = vmatpush.msra.mxu0 0.0
        %3366 = vmatpush.msra.mxu0 %v3346
        %3367 = vmatmul.f32.gmra.mxu0 %v3343
        %v3368 = vpop.f32.mrf.mxu0
        %v3369 = vadd.f32 0.0, %v3368
        %3370 = vdwg.mxu0
        %3371 = vmatpush.msra.mxu0 0.0
        %3372 = vmatpush.msra.mxu0 0.0
        %3373 = vmatpush.msra.mxu0 0.0
        %3374 = vmatpush.msra.mxu0 0.0
        %3375 = vmatpush.msra.mxu0 0.0
        %3376 = vmatpush.msra.mxu0 0.0
        %3377 = vmatpush.msra.mxu0 0.0
        %3378 = vmatpush.msra.mxu0 0.0
        %3379 = vmatpush.msra.mxu0 0.0
        %3380 = vmatpush.msra.mxu0 0.0
        %3381 = vmatpush.msra.mxu0 0.0
        %3382 = vmatpush.msra.mxu0 0.0
        %3383 = vmatpush.msra.mxu0 0.0
        %3384 = vmatpush.msra.mxu0 0.0
        %3385 = vmatpush.msra.mxu0 0.0
        %3386 = vmatpush.msra.mxu0 %v3349
        %3387 = vmatmul.f32.gmra.mxu0 %v3343
        %v3388 = vpop.f32.mrf.mxu0
        %v3389 = vadd.f32 0.0, %v3388
        %3390 = vdwg.mxu0
        %v3392 = vsel %vm763, %v3125, 0
        %v3395 = vsel %vm767, %v3117, 0
        %v3398 = vsel %vm767, %v3124, 0
        %3400 = vmatpush.msra.mxu0 0.0
        %3401 = vmatpush.msra.mxu0 0.0
        %3402 = vmatpush.msra.mxu0 0.0
        %3403 = vmatpush.msra.mxu0 0.0
        %3404 = vmatpush.msra.mxu0 0.0
        %3405 = vmatpush.msra.mxu0 0.0
        %3406 = vmatpush.msra.mxu0 0.0
        %3407 = vmatpush.msra.mxu0 0.0
        %3408 = vmatpush.msra.mxu0 0.0
        %3409 = vmatpush.msra.mxu0 0.0
        %3410 = vmatpush.msra.mxu0 0.0
        %3411 = vmatpush.msra.mxu0 0.0
        %3412 = vmatpush.msra.mxu0 0.0
        %3413 = vmatpush.msra.mxu0 0.0
        %3414 = vmatpush.msra.mxu0 0.0
        %3415 = vmatpush.msra.mxu0 %v3395
        %3416 = vmatmul.f32.gmra.mxu0 %v3392
        %v3417 = vpop.f32.mrf.mxu0
        %v3418 = vadd.f32 %v3369, %v3417
        %3419 = vdwg.mxu0
        %3420 = vmatpush.msra.mxu0 0.0
        %3421 = vmatpush.msra.mxu0 0.0
        %3422 = vmatpush.msra.mxu0 0.0
        %3423 = vmatpush.msra.mxu0 0.0
        %3424 = vmatpush.msra.mxu0 0.0
        %3425 = vmatpush.msra.mxu0 0.0
        %3426 = vmatpush.msra.mxu0 0.0
        %3427 = vmatpush.msra.mxu0 0.0
        %3428 = vmatpush.msra.mxu0 0.0
        %3429 = vmatpush.msra.mxu0 0.0
        %3430 = vmatpush.msra.mxu0 0.0
        %3431 = vmatpush.msra.mxu0 0.0
        %3432 = vmatpush.msra.mxu0 0.0
        %3433 = vmatpush.msra.mxu0 0.0
        %3434 = vmatpush.msra.mxu0 0.0
        %3435 = vmatpush.msra.mxu0 %v3398
        %3436 = vmatmul.f32.gmra.mxu0 %v3392
        %v3437 = vpop.f32.mrf.mxu0
        %v3438 = vadd.f32 %v3389, %v3437
        %3439 = vdwg.mxu0
        %v3440 = vld [vmem:[#allocation3] sm:$0xff]
        %v3441 = vld [vmem:[#allocation3 + $0x8] sm:$0xff]
        %v3442 = vld [vmem:[#allocation3 + $0x18] sm:$0xff]
        %v3443 = vld [vmem:[#allocation3 + $0x20] sm:$0xff]
        %v3444 = vld [vmem:[#allocation3 + $0x30] sm:$0xff]
        %v3445 = vld [vmem:[#allocation3 + $0x38] sm:$0xff]
        %v3446 = vld [vmem:[#allocation3 + $0x48] sm:$0xff]
        %v3447 = vld [vmem:[#allocation3 + $0x50] sm:$0xff]
        %3456 = vrot.lane.b32.xlu0 %v3440, 124
        %v3457 = vpop.permute.xlu0 %3456
        %3458 = vrot.lane.b32.xlu0 %v3441, 124
        %v3459 = vpop.permute.xlu0 %3458
        %3460 = vrot.lane.b32.xlu0 %v3442, 124
        %v3461 = vpop.permute.xlu0 %3460
        %3462 = vrot.lane.b32.xlu0 %v3443, 124
        %v3463 = vpop.permute.xlu0 %3462
        %3464 = vrot.lane.b32.xlu0 %v3444, 124
        %v3465 = vpop.permute.xlu0 %3464
        %3466 = vrot.lane.b32.xlu0 %v3445, 124
        %v3467 = vpop.permute.xlu0 %3466
        %3468 = vrot.lane.b32.xlu0 %v3446, 124
        %v3469 = vpop.permute.xlu0 %3468
        %3470 = vrot.lane.b32.xlu0 %v3447, 124
        %v3471 = vpop.permute.xlu0 %3470
        %v3480 = vrot.slane %v3465, 4
        %v3481 = vsel %vm357, %v3480, %v3457
        %v3482 = vrot.slane %v3457, 4
        %v3483 = vsel %vm357, %v3465, %v3482
        %v3485 = vunpack.c.l.s4 1983009808
        %v3486 = vunpack.c.0.s8 %v3485
        %v3487 = vperm.slane %v3481, %v3486
        %v3489 = vunpack.c.l.s4 1983009808
        %v3490 = vunpack.c.0.s8 %v3489
        %v3491 = vperm.slane %v3483, %v3490
        %v3492 = vrot.slane %v3469, 4
        %v3493 = vsel %vm357, %v3492, %v3461
        %v3494 = vrot.slane %v3461, 4
        %v3495 = vsel %vm357, %v3469, %v3494
        %v3497 = vunpack.c.l.s4 1983009808
        %v3498 = vunpack.c.0.s8 %v3497
        %v3499 = vperm.slane %v3493, %v3498
        %v3501 = vunpack.c.l.s4 1983009808
        %v3502 = vunpack.c.0.s8 %v3501
        %v3503 = vperm.slane %v3495, %v3502
        %v3504 = vrot.slane %v3499, 4
        %v3505 = vsel %vm357, %v3504, %v3487
        %v3506 = vrot.slane %v3487, 4
        %v3507 = vsel %vm357, %v3499, %v3506
        %v3509 = vunpack.c.l.s4 1934713408
        %v3510 = vunpack.c.0.s8 %v3509
        %v3511 = vperm.slane %v3505, %v3510
        %v3513 = vunpack.c.l.s4 1934713408
        %v3514 = vunpack.c.0.s8 %v3513
        %v3515 = vperm.slane %v3507, %v3514
        %v3516 = vrot.slane %v3503, 4
        %v3517 = vsel %vm357, %v3516, %v3491
        %v3518 = vrot.slane %v3491, 4
        %v3519 = vsel %vm357, %v3503, %v3518
        %v3521 = vunpack.c.l.s4 1934713408
        %v3522 = vunpack.c.0.s8 %v3521
        %v3523 = vperm.slane %v3517, %v3522
        %v3525 = vunpack.c.l.s4 1934713408
        %v3526 = vunpack.c.0.s8 %v3525
        %v3527 = vperm.slane %v3519, %v3526
        %v3528 = vrot.slane %v3511, 4
        %v3529 = vsel %vm357, 0.0, %v3528
        %v3530 = vrot.slane %v3515, 4
        %v3531 = vsel %vm357, 0.0, %v3530
        %v3532 = vrot.slane %v3523, 4
        %v3533 = vsel %vm357, 0.0, %v3532
        %v3534 = vrot.slane %v3527, 4
        %v3535 = vsel %vm357, 0.0, %v3534
        %v3536 = vrot.slane %v3467, 4
        %v3537 = vsel %vm357, %v3536, %v3459
        %v3538 = vrot.slane %v3459, 4
        %v3539 = vsel %vm357, %v3467, %v3538
        %v3541 = vunpack.c.l.s4 1983009808
        %v3542 = vunpack.c.0.s8 %v3541
        %v3543 = vperm.slane %v3537, %v3542
        %v3545 = vunpack.c.l.s4 1983009808
        %v3546 = vunpack.c.0.s8 %v3545
        %v3547 = vperm.slane %v3539, %v3546
        %v3548 = vrot.slane %v3471, 4
        %v3549 = vsel %vm357, %v3548, %v3463
        %v3550 = vrot.slane %v3463, 4
        %v3551 = vsel %vm357, %v3471, %v3550
        %v3553 = vunpack.c.l.s4 1983009808
        %v3554 = vunpack.c.0.s8 %v3553
        %v3555 = vperm.slane %v3549, %v3554
        %v3557 = vunpack.c.l.s4 1983009808
        %v3558 = vunpack.c.0.s8 %v3557
        %v3559 = vperm.slane %v3551, %v3558
        %v3560 = vrot.slane %v3555, 4
        %v3561 = vsel %vm357, %v3560, %v3543
        %v3562 = vrot.slane %v3543, 4
        %v3563 = vsel %vm357, %v3555, %v3562
        %v3565 = vunpack.c.l.s4 1934713408
        %v3566 = vunpack.c.0.s8 %v3565
        %v3567 = vperm.slane %v3561, %v3566
        %v3569 = vunpack.c.l.s4 1934713408
        %v3570 = vunpack.c.0.s8 %v3569
        %v3571 = vperm.slane %v3563, %v3570
        %v3572 = vrot.slane %v3559, 4
        %v3573 = vsel %vm357, %v3572, %v3547
        %v3574 = vrot.slane %v3547, 4
        %v3575 = vsel %vm357, %v3559, %v3574
        %v3577 = vunpack.c.l.s4 1934713408
        %v3578 = vunpack.c.0.s8 %v3577
        %v3579 = vperm.slane %v3573, %v3578
        %v3581 = vunpack.c.l.s4 1934713408
        %v3582 = vunpack.c.0.s8 %v3581
        %v3583 = vperm.slane %v3575, %v3582
        %v3584 = vrot.slane %v3567, 4
        %v3585 = vsel %vm357, 0.0, %v3584
        %v3586 = vrot.slane %v3571, 4
        %v3587 = vsel %vm357, 0.0, %v3586
        %v3588 = vrot.slane %v3579, 4
        %v3589 = vsel %vm357, 0.0, %v3588
        %v3590 = vrot.slane %v3583, 4
        %v3591 = vsel %vm357, 0.0, %v3590
        %3593 = vrot.lane.b32.xlu0 %v3529, 16
        %v3594 = vpop.permute.xlu0 %3593
        %3597 = vrot.lane.b32.xlu0 %v3515, 32
        %v3598 = vpop.permute.xlu0 %3597
        %3601 = vrot.lane.b32.xlu0 %v3531, 48
        %v3602 = vpop.permute.xlu0 %3601
        %3605 = vrot.lane.b32.xlu0 %v3523, 64
        %v3606 = vpop.permute.xlu0 %3605
        %3609 = vrot.lane.b32.xlu0 %v3533, 80
        %v3610 = vpop.permute.xlu0 %3609
        %3613 = vrot.lane.b32.xlu0 %v3527, 96
        %v3614 = vpop.permute.xlu0 %3613
        %3617 = vrot.lane.b32.xlu0 %v3535, 112
        %v3618 = vpop.permute.xlu0 %3617
        %3621 = vrot.lane.b32.xlu0 %v3585, 16
        %v3622 = vpop.permute.xlu0 %3621
        %3625 = vrot.lane.b32.xlu0 %v3571, 32
        %v3626 = vpop.permute.xlu0 %3625
        %3629 = vrot.lane.b32.xlu0 %v3587, 48
        %v3630 = vpop.permute.xlu0 %3629
        %3633 = vrot.lane.b32.xlu0 %v3579, 64
        %v3634 = vpop.permute.xlu0 %3633
        %3637 = vrot.lane.b32.xlu0 %v3589, 80
        %v3638 = vpop.permute.xlu0 %3637
        %3641 = vrot.lane.b32.xlu0 %v3583, 96
        %v3642 = vpop.permute.xlu0 %3641
        %3645 = vrot.lane.b32.xlu0 %v3591, 112
        %v3646 = vpop.permute.xlu0 %3645
        %v3648 = vsel %vm525, %v3511, %v3594
        %v3649 = vsel %vm527, %v3648, %v3598
        %v3650 = vsel %vm529, %v3649, %v3602
        %v3651 = vsel %vm531, %v3650, %v3606
        %v3652 = vsel %vm533, %v3651, %v3610
        %v3653 = vsel %vm535, %v3652, %v3614
        %v3654 = vsel %vm537, %v3653, %v3618
        %v3655 = vsel %vm525, %v3567, %v3622
        %v3656 = vsel %vm527, %v3655, %v3626
        %v3657 = vsel %vm529, %v3656, %v3630
        %v3658 = vsel %vm531, %v3657, %v3634
        %v3659 = vsel %vm533, %v3658, %v3638
        %v3660 = vsel %vm535, %v3659, %v3642
        %v3661 = vsel %vm537, %v3660, %v3646
        %s3662 = scalar_lea.vmem %s3, 8
        %v3663 = vld [vmem:[%s3662] sm:$0xf]
        %v3665 = vsel %vm763, %v3663, 0
        %v3668 = vsel %vm767, %v3654, 0
        %v3671 = vsel %vm767, %v3661, 0
        %3673 = vmatpush.msra.mxu0 0.0
        %3674 = vmatpush.msra.mxu0 0.0
        %3675 = vmatpush.msra.mxu0 0.0
        %3676 = vmatpush.msra.mxu0 0.0
        %3677 = vmatpush.msra.mxu0 0.0
        %3678 = vmatpush.msra.mxu0 0.0
        %3679 = vmatpush.msra.mxu0 0.0
        %3680 = vmatpush.msra.mxu0 0.0
        %3681 = vmatpush.msra.mxu0 0.0
        %3682 = vmatpush.msra.mxu0 0.0
        %3683 = vmatpush.msra.mxu0 0.0
        %3684 = vmatpush.msra.mxu0 0.0
        %3685 = vmatpush.msra.mxu0 0.0
        %3686 = vmatpush.msra.mxu0 0.0
        %3687 = vmatpush.msra.mxu0 0.0
        %3688 = vmatpush.msra.mxu0 %v3668
        %3689 = vmatmul.f32.gmra.mxu0 %v3665
        %v3690 = vpop.f32.mrf.mxu0
        %v3691 = vadd.f32 0.0, %v3690
        %3692 = vdwg.mxu0
        %3693 = vmatpush.msra.mxu0 0.0
        %3694 = vmatpush.msra.mxu0 0.0
        %3695 = vmatpush.msra.mxu0 0.0
        %3696 = vmatpush.msra.mxu0 0.0
        %3697 = vmatpush.msra.mxu0 0.0
        %3698 = vmatpush.msra.mxu0 0.0
        %3699 = vmatpush.msra.mxu0 0.0
        %3700 = vmatpush.msra.mxu0 0.0
        %3701 = vmatpush.msra.mxu0 0.0
        %3702 = vmatpush.msra.mxu0 0.0
        %3703 = vmatpush.msra.mxu0 0.0
        %3704 = vmatpush.msra.mxu0 0.0
        %3705 = vmatpush.msra.mxu0 0.0
        %3706 = vmatpush.msra.mxu0 0.0
        %3707 = vmatpush.msra.mxu0 0.0
        %3708 = vmatpush.msra.mxu0 %v3671
        %3709 = vmatmul.f32.gmra.mxu0 %v3665
        %v3710 = vpop.f32.mrf.mxu0
        %v3711 = vadd.f32 0.0, %v3710
        %3712 = vdwg.mxu0
        %v3713 = vadd.f32 %v3418, %v3691
        %v3714 = vadd.f32 %v3438, %v3711
        %v3715 = vld [vmem:[#allocation3 + $0x2] sm:$0xff]
        %v3716 = vld [vmem:[#allocation3 + $0xa] sm:$0xff]
        %v3717 = vld [vmem:[#allocation3 + $0x1a] sm:$0xff]
        %v3718 = vld [vmem:[#allocation3 + $0x22] sm:$0xff]
        %v3719 = vld [vmem:[#allocation3 + $0x32] sm:$0xff]
        %v3720 = vld [vmem:[#allocation3 + $0x3a] sm:$0xff]
        %v3721 = vld [vmem:[#allocation3 + $0x4a] sm:$0xff]
        %v3722 = vld [vmem:[#allocation3 + $0x52] sm:$0xff]
        %v3723 = vrot.slane %v3719, 4
        %v3724 = vsel %vm357, %v3723, %v3715
        %v3725 = vrot.slane %v3715, 4
        %v3726 = vsel %vm357, %v3719, %v3725
        %v3728 = vunpack.c.l.s4 1983009808
        %v3729 = vunpack.c.0.s8 %v3728
        %v3730 = vperm.slane %v3724, %v3729
        %v3732 = vunpack.c.l.s4 1983009808
        %v3733 = vunpack.c.0.s8 %v3732
        %v3734 = vperm.slane %v3726, %v3733
        %v3735 = vrot.slane %v3721, 4
        %v3736 = vsel %vm357, %v3735, %v3717
        %v3737 = vrot.slane %v3717, 4
        %v3738 = vsel %vm357, %v3721, %v3737
        %v3740 = vunpack.c.l.s4 1983009808
        %v3741 = vunpack.c.0.s8 %v3740
        %v3742 = vperm.slane %v3736, %v3741
        %v3744 = vunpack.c.l.s4 1983009808
        %v3745 = vunpack.c.0.s8 %v3744
        %v3746 = vperm.slane %v3738, %v3745
        %v3747 = vrot.slane %v3742, 4
        %v3748 = vsel %vm357, %v3747, %v3730
        %v3749 = vrot.slane %v3730, 4
        %v3750 = vsel %vm357, %v3742, %v3749
        %v3752 = vunpack.c.l.s4 1934713408
        %v3753 = vunpack.c.0.s8 %v3752
        %v3754 = vperm.slane %v3748, %v3753
        %v3756 = vunpack.c.l.s4 1934713408
        %v3757 = vunpack.c.0.s8 %v3756
        %v3758 = vperm.slane %v3750, %v3757
        %v3759 = vrot.slane %v3746, 4
        %v3760 = vsel %vm357, %v3759, %v3734
        %v3761 = vrot.slane %v3734, 4
        %v3762 = vsel %vm357, %v3746, %v3761
        %v3764 = vunpack.c.l.s4 1934713408
        %v3765 = vunpack.c.0.s8 %v3764
        %v3766 = vperm.slane %v3760, %v3765
        %v3768 = vunpack.c.l.s4 1934713408
        %v3769 = vunpack.c.0.s8 %v3768
        %v3770 = vperm.slane %v3762, %v3769
        %v3771 = vrot.slane %v3754, 4
        %v3772 = vsel %vm357, 0.0, %v3771
        %v3773 = vrot.slane %v3758, 4
        %v3774 = vsel %vm357, 0.0, %v3773
        %v3775 = vrot.slane %v3766, 4
        %v3776 = vsel %vm357, 0.0, %v3775
        %v3777 = vrot.slane %v3770, 4
        %v3778 = vsel %vm357, 0.0, %v3777
        %v3779 = vrot.slane %v3720, 4
        %v3780 = vsel %vm357, %v3779, %v3716
        %v3781 = vrot.slane %v3716, 4
        %v3782 = vsel %vm357, %v3720, %v3781
        %v3784 = vunpack.c.l.s4 1983009808
        %v3785 = vunpack.c.0.s8 %v3784
        %v3786 = vperm.slane %v3780, %v3785
        %v3788 = vunpack.c.l.s4 1983009808
        %v3789 = vunpack.c.0.s8 %v3788
        %v3790 = vperm.slane %v3782, %v3789
        %v3791 = vrot.slane %v3722, 4
        %v3792 = vsel %vm357, %v3791, %v3718
        %v3793 = vrot.slane %v3718, 4
        %v3794 = vsel %vm357, %v3722, %v3793
        %v3796 = vunpack.c.l.s4 1983009808
        %v3797 = vunpack.c.0.s8 %v3796
        %v3798 = vperm.slane %v3792, %v3797
        %v3800 = vunpack.c.l.s4 1983009808
        %v3801 = vunpack.c.0.s8 %v3800
        %v3802 = vperm.slane %v3794, %v3801
        %v3803 = vrot.slane %v3798, 4
        %v3804 = vsel %vm357, %v3803, %v3786
        %v3805 = vrot.slane %v3786, 4
        %v3806 = vsel %vm357, %v3798, %v3805
        %v3808 = vunpack.c.l.s4 1934713408
        %v3809 = vunpack.c.0.s8 %v3808
        %v3810 = vperm.slane %v3804, %v3809
        %v3812 = vunpack.c.l.s4 1934713408
        %v3813 = vunpack.c.0.s8 %v3812
        %v3814 = vperm.slane %v3806, %v3813
        %v3815 = vrot.slane %v3802, 4
        %v3816 = vsel %vm357, %v3815, %v3790
        %v3817 = vrot.slane %v3790, 4
        %v3818 = vsel %vm357, %v3802, %v3817
        %v3820 = vunpack.c.l.s4 1934713408
        %v3821 = vunpack.c.0.s8 %v3820
        %v3822 = vperm.slane %v3816, %v3821
        %v3824 = vunpack.c.l.s4 1934713408
        %v3825 = vunpack.c.0.s8 %v3824
        %v3826 = vperm.slane %v3818, %v3825
        %v3827 = vrot.slane %v3810, 4
        %v3828 = vsel %vm357, 0.0, %v3827
        %v3829 = vrot.slane %v3814, 4
        %v3830 = vsel %vm357, 0.0, %v3829
        %v3831 = vrot.slane %v3822, 4
        %v3832 = vsel %vm357, 0.0, %v3831
        %v3833 = vrot.slane %v3826, 4
        %v3834 = vsel %vm357, 0.0, %v3833
        %3836 = vrot.lane.b32.xlu0 %v3772, 16
        %v3837 = vpop.permute.xlu0 %3836
        %3840 = vrot.lane.b32.xlu0 %v3758, 32
        %v3841 = vpop.permute.xlu0 %3840
        %3844 = vrot.lane.b32.xlu0 %v3774, 48
        %v3845 = vpop.permute.xlu0 %3844
        %3848 = vrot.lane.b32.xlu0 %v3766, 64
        %v3849 = vpop.permute.xlu0 %3848
        %3852 = vrot.lane.b32.xlu0 %v3776, 80
        %v3853 = vpop.permute.xlu0 %3852
        %3856 = vrot.lane.b32.xlu0 %v3770, 96
        %v3857 = vpop.permute.xlu0 %3856
        %3860 = vrot.lane.b32.xlu0 %v3778, 112
        %v3861 = vpop.permute.xlu0 %3860
        %3864 = vrot.lane.b32.xlu0 %v3828, 16
        %v3865 = vpop.permute.xlu0 %3864
        %3868 = vrot.lane.b32.xlu0 %v3814, 32
        %v3869 = vpop.permute.xlu0 %3868
        %3872 = vrot.lane.b32.xlu0 %v3830, 48
        %v3873 = vpop.permute.xlu0 %3872
        %3876 = vrot.lane.b32.xlu0 %v3822, 64
        %v3877 = vpop.permute.xlu0 %3876
        %3880 = vrot.lane.b32.xlu0 %v3832, 80
        %v3881 = vpop.permute.xlu0 %3880
        %3884 = vrot.lane.b32.xlu0 %v3826, 96
        %v3885 = vpop.permute.xlu0 %3884
        %3888 = vrot.lane.b32.xlu0 %v3834, 112
        %v3889 = vpop.permute.xlu0 %3888
        %v3891 = vsel %vm525, %v3754, %v3837
        %v3892 = vsel %vm527, %v3891, %v3841
        %v3893 = vsel %vm529, %v3892, %v3845
        %v3894 = vsel %vm531, %v3893, %v3849
        %v3895 = vsel %vm533, %v3894, %v3853
        %v3896 = vsel %vm535, %v3895, %v3857
        %v3897 = vsel %vm537, %v3896, %v3861
        %v3898 = vsel %vm525, %v3810, %v3865
        %v3899 = vsel %vm527, %v3898, %v3869
        %v3900 = vsel %vm529, %v3899, %v3873
        %v3901 = vsel %vm531, %v3900, %v3877
        %v3902 = vsel %vm533, %v3901, %v3881
        %v3903 = vsel %vm535, %v3902, %v3885
        %v3904 = vsel %vm537, %v3903, %v3889
        %s3905 = scalar_lea.vmem %s3, 12
        %v3906 = vld [vmem:[%s3905] sm:$0xf]
        %v3908 = vsel %vm763, %v3906, 0
        %v3911 = vsel %vm767, %v3897, 0
        %v3914 = vsel %vm767, %v3904, 0
        %3916 = vmatpush.msra.mxu0 0.0
        %3917 = vmatpush.msra.mxu0 0.0
        %3918 = vmatpush.msra.mxu0 0.0
        %3919 = vmatpush.msra.mxu0 0.0
        %3920 = vmatpush.msra.mxu0 0.0
        %3921 = vmatpush.msra.mxu0 0.0
        %3922 = vmatpush.msra.mxu0 0.0
        %3923 = vmatpush.msra.mxu0 0.0
        %3924 = vmatpush.msra.mxu0 0.0
        %3925 = vmatpush.msra.mxu0 0.0
        %3926 = vmatpush.msra.mxu0 0.0
        %3927 = vmatpush.msra.mxu0 0.0
        %3928 = vmatpush.msra.mxu0 0.0
        %3929 = vmatpush.msra.mxu0 0.0
        %3930 = vmatpush.msra.mxu0 0.0
        %3931 = vmatpush.msra.mxu0 %v3911
        %3932 = vmatmul.f32.gmra.mxu0 %v3908
        %v3933 = vpop.f32.mrf.mxu0
        %v3934 = vadd.f32 0.0, %v3933
        %3935 = vdwg.mxu0
        %3936 = vmatpush.msra.mxu0 0.0
        %3937 = vmatpush.msra.mxu0 0.0
        %3938 = vmatpush.msra.mxu0 0.0
        %3939 = vmatpush.msra.mxu0 0.0
        %3940 = vmatpush.msra.mxu0 0.0
        %3941 = vmatpush.msra.mxu0 0.0
        %3942 = vmatpush.msra.mxu0 0.0
        %3943 = vmatpush.msra.mxu0 0.0
        %3944 = vmatpush.msra.mxu0 0.0
        %3945 = vmatpush.msra.mxu0 0.0
        %3946 = vmatpush.msra.mxu0 0.0
        %3947 = vmatpush.msra.mxu0 0.0
        %3948 = vmatpush.msra.mxu0 0.0
        %3949 = vmatpush.msra.mxu0 0.0
        %3950 = vmatpush.msra.mxu0 0.0
        %3951 = vmatpush.msra.mxu0 %v3914
        %3952 = vmatmul.f32.gmra.mxu0 %v3908
        %v3953 = vpop.f32.mrf.mxu0
        %v3954 = vadd.f32 0.0, %v3953
        %3955 = vdwg.mxu0
        %v3956 = vadd.f32 %v3713, %v3934
        %v3957 = vadd.f32 %v3714, %v3954
        %v3958 = vld [vmem:[#allocation3 + $0x2] sm:$0xff]
        %v3959 = vld [vmem:[#allocation3 + $0xa] sm:$0xff]
        %v3960 = vld [vmem:[#allocation3 + $0x1a] sm:$0xff]
        %v3961 = vld [vmem:[#allocation3 + $0x22] sm:$0xff]
        %v3962 = vld [vmem:[#allocation3 + $0x32] sm:$0xff]
        %v3963 = vld [vmem:[#allocation3 + $0x3a] sm:$0xff]
        %v3964 = vld [vmem:[#allocation3 + $0x4a] sm:$0xff]
        %v3965 = vld [vmem:[#allocation3 + $0x52] sm:$0xff]
        %3974 = vrot.lane.b32.xlu0 %v3958, 126
        %v3975 = vpop.permute.xlu0 %3974
        %3976 = vrot.lane.b32.xlu0 %v3959, 126
        %v3977 = vpop.permute.xlu0 %3976
        %3978 = vrot.lane.b32.xlu0 %v3960, 126
        %v3979 = vpop.permute.xlu0 %3978
        %3980 = vrot.lane.b32.xlu0 %v3961, 126
        %v3981 = vpop.permute.xlu0 %3980
        %3982 = vrot.lane.b32.xlu0 %v3962, 126
        %v3983 = vpop.permute.xlu0 %3982
        %3984 = vrot.lane.b32.xlu0 %v3963, 126
        %v3985 = vpop.permute.xlu0 %3984
        %3986 = vrot.lane.b32.xlu0 %v3964, 126
        %v3987 = vpop.permute.xlu0 %3986
        %3988 = vrot.lane.b32.xlu0 %v3965, 126
        %v3989 = vpop.permute.xlu0 %3988
        %v3998 = vrot.slane %v3983, 4
        %v3999 = vsel %vm357, %v3998, %v3975
        %v4000 = vrot.slane %v3975, 4
        %v4001 = vsel %vm357, %v3983, %v4000
        %v4003 = vunpack.c.l.s4 1983009808
        %v4004 = vunpack.c.0.s8 %v4003
        %v4005 = vperm.slane %v3999, %v4004
        %v4007 = vunpack.c.l.s4 1983009808
        %v4008 = vunpack.c.0.s8 %v4007
        %v4009 = vperm.slane %v4001, %v4008
        %v4010 = vrot.slane %v3987, 4
        %v4011 = vsel %vm357, %v4010, %v3979
        %v4012 = vrot.slane %v3979, 4
        %v4013 = vsel %vm357, %v3987, %v4012
        %v4015 = vunpack.c.l.s4 1983009808
        %v4016 = vunpack.c.0.s8 %v4015
        %v4017 = vperm.slane %v4011, %v4016
        %v4019 = vunpack.c.l.s4 1983009808
        %v4020 = vunpack.c.0.s8 %v4019
        %v4021 = vperm.slane %v4013, %v4020
        %v4022 = vrot.slane %v4017, 4
        %v4023 = vsel %vm357, %v4022, %v4005
        %v4024 = vrot.slane %v4005, 4
        %v4025 = vsel %vm357, %v4017, %v4024
        %v4027 = vunpack.c.l.s4 1934713408
        %v4028 = vunpack.c.0.s8 %v4027
        %v4029 = vperm.slane %v4023, %v4028
        %v4031 = vunpack.c.l.s4 1934713408
        %v4032 = vunpack.c.0.s8 %v4031
        %v4033 = vperm.slane %v4025, %v4032
        %v4034 = vrot.slane %v4021, 4
        %v4035 = vsel %vm357, %v4034, %v4009
        %v4036 = vrot.slane %v4009, 4
        %v4037 = vsel %vm357, %v4021, %v4036
        %v4039 = vunpack.c.l.s4 1934713408
        %v4040 = vunpack.c.0.s8 %v4039
        %v4041 = vperm.slane %v4035, %v4040
        %v4043 = vunpack.c.l.s4 1934713408
        %v4044 = vunpack.c.0.s8 %v4043
        %v4045 = vperm.slane %v4037, %v4044
        %v4046 = vrot.slane %v4029, 4
        %v4047 = vsel %vm357, 0.0, %v4046
        %v4048 = vrot.slane %v4033, 4
        %v4049 = vsel %vm357, 0.0, %v4048
        %v4050 = vrot.slane %v4041, 4
        %v4051 = vsel %vm357, 0.0, %v4050
        %v4052 = vrot.slane %v4045, 4
        %v4053 = vsel %vm357, 0.0, %v4052
        %v4054 = vrot.slane %v3985, 4
        %v4055 = vsel %vm357, %v4054, %v3977
        %v4056 = vrot.slane %v3977, 4
        %v4057 = vsel %vm357, %v3985, %v4056
        %v4059 = vunpack.c.l.s4 1983009808
        %v4060 = vunpack.c.0.s8 %v4059
        %v4061 = vperm.slane %v4055, %v4060
        %v4063 = vunpack.c.l.s4 1983009808
        %v4064 = vunpack.c.0.s8 %v4063
        %v4065 = vperm.slane %v4057, %v4064
        %v4066 = vrot.slane %v3989, 4
        %v4067 = vsel %vm357, %v4066, %v3981
        %v4068 = vrot.slane %v3981, 4
        %v4069 = vsel %vm357, %v3989, %v4068
        %v4071 = vunpack.c.l.s4 1983009808
        %v4072 = vunpack.c.0.s8 %v4071
        %v4073 = vperm.slane %v4067, %v4072
        %v4075 = vunpack.c.l.s4 1983009808
        %v4076 = vunpack.c.0.s8 %v4075
        %v4077 = vperm.slane %v4069, %v4076
        %v4078 = vrot.slane %v4073, 4
        %v4079 = vsel %vm357, %v4078, %v4061
        %v4080 = vrot.slane %v4061, 4
        %v4081 = vsel %vm357, %v4073, %v4080
        %v4083 = vunpack.c.l.s4 1934713408
        %v4084 = vunpack.c.0.s8 %v4083
        %v4085 = vperm.slane %v4079, %v4084
        %v4087 = vunpack.c.l.s4 1934713408
        %v4088 = vunpack.c.0.s8 %v4087
        %v4089 = vperm.slane %v4081, %v4088
        %v4090 = vrot.slane %v4077, 4
        %v4091 = vsel %vm357, %v4090, %v4065
        %v4092 = vrot.slane %v4065, 4
        %v4093 = vsel %vm357, %v4077, %v4092
        %v4095 = vunpack.c.l.s4 1934713408
        %v4096 = vunpack.c.0.s8 %v4095
        %v4097 = vperm.slane %v4091, %v4096
        %v4099 = vunpack.c.l.s4 1934713408
        %v4100 = vunpack.c.0.s8 %v4099
        %v4101 = vperm.slane %v4093, %v4100
        %v4102 = vrot.slane %v4085, 4
        %v4103 = vsel %vm357, 0.0, %v4102
        %v4104 = vrot.slane %v4089, 4
        %v4105 = vsel %vm357, 0.0, %v4104
        %v4106 = vrot.slane %v4097, 4
        %v4107 = vsel %vm357, 0.0, %v4106
        %v4108 = vrot.slane %v4101, 4
        %v4109 = vsel %vm357, 0.0, %v4108
        %4111 = vrot.lane.b32.xlu0 %v4047, 16
        %v4112 = vpop.permute.xlu0 %4111
        %4115 = vrot.lane.b32.xlu0 %v4033, 32
        %v4116 = vpop.permute.xlu0 %4115
        %4119 = vrot.lane.b32.xlu0 %v4049, 48
        %v4120 = vpop.permute.xlu0 %4119
        %4123 = vrot.lane.b32.xlu0 %v4041, 64
        %v4124 = vpop.permute.xlu0 %4123
        %4127 = vrot.lane.b32.xlu0 %v4051, 80
        %v4128 = vpop.permute.xlu0 %4127
        %4131 = vrot.lane.b32.xlu0 %v4045, 96
        %v4132 = vpop.permute.xlu0 %4131
        %4135 = vrot.lane.b32.xlu0 %v4053, 112
        %v4136 = vpop.permute.xlu0 %4135
        %4139 = vrot.lane.b32.xlu0 %v4103, 16
        %v4140 = vpop.permute.xlu0 %4139
        %4143 = vrot.lane.b32.xlu0 %v4089, 32
        %v4144 = vpop.permute.xlu0 %4143
        %4147 = vrot.lane.b32.xlu0 %v4105, 48
        %v4148 = vpop.permute.xlu0 %4147
        %4151 = vrot.lane.b32.xlu0 %v4097, 64
        %v4152 = vpop.permute.xlu0 %4151
        %4155 = vrot.lane.b32.xlu0 %v4107, 80
        %v4156 = vpop.permute.xlu0 %4155
        %4159 = vrot.lane.b32.xlu0 %v4101, 96
        %v4160 = vpop.permute.xlu0 %4159
        %4163 = vrot.lane.b32.xlu0 %v4109, 112
        %v4164 = vpop.permute.xlu0 %4163
        %v4166 = vsel %vm525, %v4029, %v4112
        %v4167 = vsel %vm527, %v4166, %v4116
        %v4168 = vsel %vm529, %v4167, %v4120
        %v4169 = vsel %vm531, %v4168, %v4124
        %v4170 = vsel %vm533, %v4169, %v4128
        %v4171 = vsel %vm535, %v4170, %v4132
        %v4172 = vsel %vm537, %v4171, %v4136
        %v4173 = vsel %vm525, %v4085, %v4140
        %v4174 = vsel %vm527, %v4173, %v4144
        %v4175 = vsel %vm529, %v4174, %v4148
        %v4176 = vsel %vm531, %v4175, %v4152
        %v4177 = vsel %vm533, %v4176, %v4156
        %v4178 = vsel %vm535, %v4177, %v4160
        %v4179 = vsel %vm537, %v4178, %v4164
        %s4180 = scalar_lea.vmem %s3, 16
        %v4181 = vld [vmem:[%s4180] sm:$0xf]
        %v4183 = vsel %vm763, %v4181, 0
        %v4186 = vsel %vm767, %v4172, 0
        %v4189 = vsel %vm767, %v4179, 0
        %4191 = vmatpush.msra.mxu0 0.0
        %4192 = vmatpush.msra.mxu0 0.0
        %4193 = vmatpush.msra.mxu0 0.0
        %4194 = vmatpush.msra.mxu0 0.0
        %4195 = vmatpush.msra.mxu0 0.0
        %4196 = vmatpush.msra.mxu0 0.0
        %4197 = vmatpush.msra.mxu0 0.0
        %4198 = vmatpush.msra.mxu0 0.0
        %4199 = vmatpush.msra.mxu0 0.0
        %4200 = vmatpush.msra.mxu0 0.0
        %4201 = vmatpush.msra.mxu0 0.0
        %4202 = vmatpush.msra.mxu0 0.0
        %4203 = vmatpush.msra.mxu0 0.0
        %4204 = vmatpush.msra.mxu0 0.0
        %4205 = vmatpush.msra.mxu0 0.0
        %4206 = vmatpush.msra.mxu0 %v4186
        %4207 = vmatmul.f32.gmra.mxu0 %v4183
        %v4208 = vpop.f32.mrf.mxu0
        %v4209 = vadd.f32 0.0, %v4208
        %4210 = vdwg.mxu0
        %4211 = vmatpush.msra.mxu0 0.0
        %4212 = vmatpush.msra.mxu0 0.0
        %4213 = vmatpush.msra.mxu0 0.0
        %4214 = vmatpush.msra.mxu0 0.0
        %4215 = vmatpush.msra.mxu0 0.0
        %4216 = vmatpush.msra.mxu0 0.0
        %4217 = vmatpush.msra.mxu0 0.0
        %4218 = vmatpush.msra.mxu0 0.0
        %4219 = vmatpush.msra.mxu0 0.0
        %4220 = vmatpush.msra.mxu0 0.0
        %4221 = vmatpush.msra.mxu0 0.0
        %4222 = vmatpush.msra.mxu0 0.0
        %4223 = vmatpush.msra.mxu0 0.0
        %4224 = vmatpush.msra.mxu0 0.0
        %4225 = vmatpush.msra.mxu0 0.0
        %4226 = vmatpush.msra.mxu0 %v4189
        %4227 = vmatmul.f32.gmra.mxu0 %v4183
        %v4228 = vpop.f32.mrf.mxu0
        %v4229 = vadd.f32 0.0, %v4228
        %4230 = vdwg.mxu0
        %v4231 = vadd.f32 %v3956, %v4209
        %v4232 = vadd.f32 %v3957, %v4229
        %v4233 = vld [vmem:[#allocation3 + $0x2] sm:$0xff]
        %v4234 = vld [vmem:[#allocation3 + $0xa] sm:$0xff]
        %v4235 = vld [vmem:[#allocation3 + $0x1a] sm:$0xff]
        %v4236 = vld [vmem:[#allocation3 + $0x22] sm:$0xff]
        %v4237 = vld [vmem:[#allocation3 + $0x32] sm:$0xff]
        %v4238 = vld [vmem:[#allocation3 + $0x3a] sm:$0xff]
        %v4239 = vld [vmem:[#allocation3 + $0x4a] sm:$0xff]
        %v4240 = vld [vmem:[#allocation3 + $0x52] sm:$0xff]
        %4249 = vrot.lane.b32.xlu0 %v4233, 124
        %v4250 = vpop.permute.xlu0 %4249
        %4251 = vrot.lane.b32.xlu0 %v4234, 124
        %v4252 = vpop.permute.xlu0 %4251
        %4253 = vrot.lane.b32.xlu0 %v4235, 124
        %v4254 = vpop.permute.xlu0 %4253
        %4255 = vrot.lane.b32.xlu0 %v4236, 124
        %v4256 = vpop.permute.xlu0 %4255
        %4257 = vrot.lane.b32.xlu0 %v4237, 124
        %v4258 = vpop.permute.xlu0 %4257
        %4259 = vrot.lane.b32.xlu0 %v4238, 124
        %v4260 = vpop.permute.xlu0 %4259
        %4261 = vrot.lane.b32.xlu0 %v4239, 124
        %v4262 = vpop.permute.xlu0 %4261
        %4263 = vrot.lane.b32.xlu0 %v4240, 124
        %v4264 = vpop.permute.xlu0 %4263
        %v4273 = vrot.slane %v4258, 4
        %v4274 = vsel %vm357, %v4273, %v4250
        %v4275 = vrot.slane %v4250, 4
        %v4276 = vsel %vm357, %v4258, %v4275
        %v4278 = vunpack.c.l.s4 1983009808
        %v4279 = vunpack.c.0.s8 %v4278
        %v4280 = vperm.slane %v4274, %v4279
        %v4282 = vunpack.c.l.s4 1983009808
        %v4283 = vunpack.c.0.s8 %v4282
        %v4284 = vperm.slane %v4276, %v4283
        %v4285 = vrot.slane %v4262, 4
        %v4286 = vsel %vm357, %v4285, %v4254
        %v4287 = vrot.slane %v4254, 4
        %v4288 = vsel %vm357, %v4262, %v4287
        %v4290 = vunpack.c.l.s4 1983009808
        %v4291 = vunpack.c.0.s8 %v4290
        %v4292 = vperm.slane %v4286, %v4291
        %v4294 = vunpack.c.l.s4 1983009808
        %v4295 = vunpack.c.0.s8 %v4294
        %v4296 = vperm.slane %v4288, %v4295
        %v4297 = vrot.slane %v4292, 4
        %v4298 = vsel %vm357, %v4297, %v4280
        %v4299 = vrot.slane %v4280, 4
        %v4300 = vsel %vm357, %v4292, %v4299
        %v4302 = vunpack.c.l.s4 1934713408
        %v4303 = vunpack.c.0.s8 %v4302
        %v4304 = vperm.slane %v4298, %v4303
        %v4306 = vunpack.c.l.s4 1934713408
        %v4307 = vunpack.c.0.s8 %v4306
        %v4308 = vperm.slane %v4300, %v4307
        %v4309 = vrot.slane %v4296, 4
        %v4310 = vsel %vm357, %v4309, %v4284
        %v4311 = vrot.slane %v4284, 4
        %v4312 = vsel %vm357, %v4296, %v4311
        %v4314 = vunpack.c.l.s4 1934713408
        %v4315 = vunpack.c.0.s8 %v4314
        %v4316 = vperm.slane %v4310, %v4315
        %v4318 = vunpack.c.l.s4 1934713408
        %v4319 = vunpack.c.0.s8 %v4318
        %v4320 = vperm.slane %v4312, %v4319
        %v4321 = vrot.slane %v4304, 4
        %v4322 = vsel %vm357, 0.0, %v4321
        %v4323 = vrot.slane %v4308, 4
        %v4324 = vsel %vm357, 0.0, %v4323
        %v4325 = vrot.slane %v4316, 4
        %v4326 = vsel %vm357, 0.0, %v4325
        %v4327 = vrot.slane %v4320, 4
        %v4328 = vsel %vm357, 0.0, %v4327
        %v4329 = vrot.slane %v4260, 4
        %v4330 = vsel %vm357, %v4329, %v4252
        %v4331 = vrot.slane %v4252, 4
        %v4332 = vsel %vm357, %v4260, %v4331
        %v4334 = vunpack.c.l.s4 1983009808
        %v4335 = vunpack.c.0.s8 %v4334
        %v4336 = vperm.slane %v4330, %v4335
        %v4338 = vunpack.c.l.s4 1983009808
        %v4339 = vunpack.c.0.s8 %v4338
        %v4340 = vperm.slane %v4332, %v4339
        %v4341 = vrot.slane %v4264, 4
        %v4342 = vsel %vm357, %v4341, %v4256
        %v4343 = vrot.slane %v4256, 4
        %v4344 = vsel %vm357, %v4264, %v4343
        %v4346 = vunpack.c.l.s4 1983009808
        %v4347 = vunpack.c.0.s8 %v4346
        %v4348 = vperm.slane %v4342, %v4347
        %v4350 = vunpack.c.l.s4 1983009808
        %v4351 = vunpack.c.0.s8 %v4350
        %v4352 = vperm.slane %v4344, %v4351
        %v4353 = vrot.slane %v4348, 4
        %v4354 = vsel %vm357, %v4353, %v4336
        %v4355 = vrot.slane %v4336, 4
        %v4356 = vsel %vm357, %v4348, %v4355
        %v4358 = vunpack.c.l.s4 1934713408
        %v4359 = vunpack.c.0.s8 %v4358
        %v4360 = vperm.slane %v4354, %v4359
        %v4362 = vunpack.c.l.s4 1934713408
        %v4363 = vunpack.c.0.s8 %v4362
        %v4364 = vperm.slane %v4356, %v4363
        %v4365 = vrot.slane %v4352, 4
        %v4366 = vsel %vm357, %v4365, %v4340
        %v4367 = vrot.slane %v4340, 4
        %v4368 = vsel %vm357, %v4352, %v4367
        %v4370 = vunpack.c.l.s4 1934713408
        %v4371 = vunpack.c.0.s8 %v4370
        %v4372 = vperm.slane %v4366, %v4371
        %v4374 = vunpack.c.l.s4 1934713408
        %v4375 = vunpack.c.0.s8 %v4374
        %v4376 = vperm.slane %v4368, %v4375
        %v4377 = vrot.slane %v4360, 4
        %v4378 = vsel %vm357, 0.0, %v4377
        %v4379 = vrot.slane %v4364, 4
        %v4380 = vsel %vm357, 0.0, %v4379
        %v4381 = vrot.slane %v4372, 4
        %v4382 = vsel %vm357, 0.0, %v4381
        %v4383 = vrot.slane %v4376, 4
        %v4384 = vsel %vm357, 0.0, %v4383
        %4386 = vrot.lane.b32.xlu0 %v4322, 16
        %v4387 = vpop.permute.xlu0 %4386
        %4390 = vrot.lane.b32.xlu0 %v4308, 32
        %v4391 = vpop.permute.xlu0 %4390
        %4394 = vrot.lane.b32.xlu0 %v4324, 48
        %v4395 = vpop.permute.xlu0 %4394
        %4398 = vrot.lane.b32.xlu0 %v4316, 64
        %v4399 = vpop.permute.xlu0 %4398
        %4402 = vrot.lane.b32.xlu0 %v4326, 80
        %v4403 = vpop.permute.xlu0 %4402
        %4406 = vrot.lane.b32.xlu0 %v4320, 96
        %v4407 = vpop.permute.xlu0 %4406
        %4410 = vrot.lane.b32.xlu0 %v4328, 112
        %v4411 = vpop.permute.xlu0 %4410
        %4414 = vrot.lane.b32.xlu0 %v4378, 16
        %v4415 = vpop.permute.xlu0 %4414
        %4418 = vrot.lane.b32.xlu0 %v4364, 32
        %v4419 = vpop.permute.xlu0 %4418
        %4422 = vrot.lane.b32.xlu0 %v4380, 48
        %v4423 = vpop.permute.xlu0 %4422
        %4426 = vrot.lane.b32.xlu0 %v4372, 64
        %v4427 = vpop.permute.xlu0 %4426
        %4430 = vrot.lane.b32.xlu0 %v4382, 80
        %v4431 = vpop.permute.xlu0 %4430
        %4434 = vrot.lane.b32.xlu0 %v4376, 96
        %v4435 = vpop.permute.xlu0 %4434
        %4438 = vrot.lane.b32.xlu0 %v4384, 112
        %v4439 = vpop.permute.xlu0 %4438
        %v4441 = vsel %vm525, %v4304, %v4387
        %v4442 = vsel %vm527, %v4441, %v4391
        %v4443 = vsel %vm529, %v4442, %v4395
        %v4444 = vsel %vm531, %v4443, %v4399
        %v4445 = vsel %vm533, %v4444, %v4403
        %v4446 = vsel %vm535, %v4445, %v4407
        %v4447 = vsel %vm537, %v4446, %v4411
        %v4448 = vsel %vm525, %v4360, %v4415
        %v4449 = vsel %vm527, %v4448, %v4419
        %v4450 = vsel %vm529, %v4449, %v4423
        %v4451 = vsel %vm531, %v4450, %v4427
        %v4452 = vsel %vm533, %v4451, %v4431
        %v4453 = vsel %vm535, %v4452, %v4435
        %v4454 = vsel %vm537, %v4453, %v4439
        %s4455 = scalar_lea.vmem %s3, 20
        %v4456 = vld [vmem:[%s4455] sm:$0xf]
        %v4458 = vsel %vm763, %v4456, 0
        %v4461 = vsel %vm767, %v4447, 0
        %v4464 = vsel %vm767, %v4454, 0
        %4466 = vmatpush.msra.mxu0 0.0
        %4467 = vmatpush.msra.mxu0 0.0
        %4468 = vmatpush.msra.mxu0 0.0
        %4469 = vmatpush.msra.mxu0 0.0
        %4470 = vmatpush.msra.mxu0 0.0
        %4471 = vmatpush.msra.mxu0 0.0
        %4472 = vmatpush.msra.mxu0 0.0
        %4473 = vmatpush.msra.mxu0 0.0
        %4474 = vmatpush.msra.mxu0 0.0
        %4475 = vmatpush.msra.mxu0 0.0
        %4476 = vmatpush.msra.mxu0 0.0
        %4477 = vmatpush.msra.mxu0 0.0
        %4478 = vmatpush.msra.mxu0 0.0
        %4479 = vmatpush.msra.mxu0 0.0
        %4480 = vmatpush.msra.mxu0 0.0
        %4481 = vmatpush.msra.mxu0 %v4461
        %4482 = vmatmul.f32.gmra.mxu0 %v4458
        %v4483 = vpop.f32.mrf.mxu0
        %v4484 = vadd.f32 0.0, %v4483
        %4485 = vdwg.mxu0
        %4486 = vmatpush.msra.mxu0 0.0
        %4487 = vmatpush.msra.mxu0 0.0
        %4488 = vmatpush.msra.mxu0 0.0
        %4489 = vmatpush.msra.mxu0 0.0
        %4490 = vmatpush.msra.mxu0 0.0
        %4491 = vmatpush.msra.mxu0 0.0
        %4492 = vmatpush.msra.mxu0 0.0
        %4493 = vmatpush.msra.mxu0 0.0
        %4494 = vmatpush.msra.mxu0 0.0
        %4495 = vmatpush.msra.mxu0 0.0
        %4496 = vmatpush.msra.mxu0 0.0
        %4497 = vmatpush.msra.mxu0 0.0
        %4498 = vmatpush.msra.mxu0 0.0
        %4499 = vmatpush.msra.mxu0 0.0
        %4500 = vmatpush.msra.mxu0 0.0
        %4501 = vmatpush.msra.mxu0 %v4464
        %4502 = vmatmul.f32.gmra.mxu0 %v4458
        %v4503 = vpop.f32.mrf.mxu0
        %v4504 = vadd.f32 0.0, %v4503
        %4505 = vdwg.mxu0
        %v4506 = vadd.f32 %v4231, %v4484
        %v4507 = vadd.f32 %v4232, %v4504
        %v4508 = vld [vmem:[#allocation3 + $0x4] sm:$0xff]
        %v4509 = vld [vmem:[#allocation3 + $0xc] sm:$0xff]
        %v4510 = vld [vmem:[#allocation3 + $0x1c] sm:$0xff]
        %v4511 = vld [vmem:[#allocation3 + $0x24] sm:$0xff]
        %v4512 = vld [vmem:[#allocation3 + $0x34] sm:$0xff]
        %v4513 = vld [vmem:[#allocation3 + $0x3c] sm:$0xff]
        %v4514 = vld [vmem:[#allocation3 + $0x4c] sm:$0xff]
        %v4515 = vld [vmem:[#allocation3 + $0x54] sm:$0xff]
        %v4516 = vrot.slane %v4512, 4
        %v4517 = vsel %vm357, %v4516, %v4508
        %v4518 = vrot.slane %v4508, 4
        %v4519 = vsel %vm357, %v4512, %v4518
        %v4521 = vunpack.c.l.s4 1983009808
        %v4522 = vunpack.c.0.s8 %v4521
        %v4523 = vperm.slane %v4517, %v4522
        %v4525 = vunpack.c.l.s4 1983009808
        %v4526 = vunpack.c.0.s8 %v4525
        %v4527 = vperm.slane %v4519, %v4526
        %v4528 = vrot.slane %v4514, 4
        %v4529 = vsel %vm357, %v4528, %v4510
        %v4530 = vrot.slane %v4510, 4
        %v4531 = vsel %vm357, %v4514, %v4530
        %v4533 = vunpack.c.l.s4 1983009808
        %v4534 = vunpack.c.0.s8 %v4533
        %v4535 = vperm.slane %v4529, %v4534
        %v4537 = vunpack.c.l.s4 1983009808
        %v4538 = vunpack.c.0.s8 %v4537
        %v4539 = vperm.slane %v4531, %v4538
        %v4540 = vrot.slane %v4535, 4
        %v4541 = vsel %vm357, %v4540, %v4523
        %v4542 = vrot.slane %v4523, 4
        %v4543 = vsel %vm357, %v4535, %v4542
        %v4545 = vunpack.c.l.s4 1934713408
        %v4546 = vunpack.c.0.s8 %v4545
        %v4547 = vperm.slane %v4541, %v4546
        %v4549 = vunpack.c.l.s4 1934713408
        %v4550 = vunpack.c.0.s8 %v4549
        %v4551 = vperm.slane %v4543, %v4550
        %v4552 = vrot.slane %v4539, 4
        %v4553 = vsel %vm357, %v4552, %v4527
        %v4554 = vrot.slane %v4527, 4
        %v4555 = vsel %vm357, %v4539, %v4554
        %v4557 = vunpack.c.l.s4 1934713408
        %v4558 = vunpack.c.0.s8 %v4557
        %v4559 = vperm.slane %v4553, %v4558
        %v4561 = vunpack.c.l.s4 1934713408
        %v4562 = vunpack.c.0.s8 %v4561
        %v4563 = vperm.slane %v4555, %v4562
        %v4564 = vrot.slane %v4547, 4
        %v4565 = vsel %vm357, 0.0, %v4564
        %v4566 = vrot.slane %v4551, 4
        %v4567 = vsel %vm357, 0.0, %v4566
        %v4568 = vrot.slane %v4559, 4
        %v4569 = vsel %vm357, 0.0, %v4568
        %v4570 = vrot.slane %v4563, 4
        %v4571 = vsel %vm357, 0.0, %v4570
        %v4572 = vrot.slane %v4513, 4
        %v4573 = vsel %vm357, %v4572, %v4509
        %v4574 = vrot.slane %v4509, 4
        %v4575 = vsel %vm357, %v4513, %v4574
        %v4577 = vunpack.c.l.s4 1983009808
        %v4578 = vunpack.c.0.s8 %v4577
        %v4579 = vperm.slane %v4573, %v4578
        %v4581 = vunpack.c.l.s4 1983009808
        %v4582 = vunpack.c.0.s8 %v4581
        %v4583 = vperm.slane %v4575, %v4582
        %v4584 = vrot.slane %v4515, 4
        %v4585 = vsel %vm357, %v4584, %v4511
        %v4586 = vrot.slane %v4511, 4
        %v4587 = vsel %vm357, %v4515, %v4586
        %v4589 = vunpack.c.l.s4 1983009808
        %v4590 = vunpack.c.0.s8 %v4589
        %v4591 = vperm.slane %v4585, %v4590
        %v4593 = vunpack.c.l.s4 1983009808
        %v4594 = vunpack.c.0.s8 %v4593
        %v4595 = vperm.slane %v4587, %v4594
        %v4596 = vrot.slane %v4591, 4
        %v4597 = vsel %vm357, %v4596, %v4579
        %v4598 = vrot.slane %v4579, 4
        %v4599 = vsel %vm357, %v4591, %v4598
        %v4601 = vunpack.c.l.s4 1934713408
        %v4602 = vunpack.c.0.s8 %v4601
        %v4603 = vperm.slane %v4597, %v4602
        %v4605 = vunpack.c.l.s4 1934713408
        %v4606 = vunpack.c.0.s8 %v4605
        %v4607 = vperm.slane %v4599, %v4606
        %v4608 = vrot.slane %v4595, 4
        %v4609 = vsel %vm357, %v4608, %v4583
        %v4610 = vrot.slane %v4583, 4
        %v4611 = vsel %vm357, %v4595, %v4610
        %v4613 = vunpack.c.l.s4 1934713408
        %v4614 = vunpack.c.0.s8 %v4613
        %v4615 = vperm.slane %v4609, %v4614
        %v4617 = vunpack.c.l.s4 1934713408
        %v4618 = vunpack.c.0.s8 %v4617
        %v4619 = vperm.slane %v4611, %v4618
        %v4620 = vrot.slane %v4603, 4
        %v4621 = vsel %vm357, 0.0, %v4620
        %v4622 = vrot.slane %v4607, 4
        %v4623 = vsel %vm357, 0.0, %v4622
        %v4624 = vrot.slane %v4615, 4
        %v4625 = vsel %vm357, 0.0, %v4624
        %v4626 = vrot.slane %v4619, 4
        %v4627 = vsel %vm357, 0.0, %v4626
        %4629 = vrot.lane.b32.xlu0 %v4565, 16
        %v4630 = vpop.permute.xlu0 %4629
        %4633 = vrot.lane.b32.xlu0 %v4551, 32
        %v4634 = vpop.permute.xlu0 %4633
        %4637 = vrot.lane.b32.xlu0 %v4567, 48
        %v4638 = vpop.permute.xlu0 %4637
        %4641 = vrot.lane.b32.xlu0 %v4559, 64
        %v4642 = vpop.permute.xlu0 %4641
        %4645 = vrot.lane.b32.xlu0 %v4569, 80
        %v4646 = vpop.permute.xlu0 %4645
        %4649 = vrot.lane.b32.xlu0 %v4563, 96
        %v4650 = vpop.permute.xlu0 %4649
        %4653 = vrot.lane.b32.xlu0 %v4571, 112
        %v4654 = vpop.permute.xlu0 %4653
        %4657 = vrot.lane.b32.xlu0 %v4621, 16
        %v4658 = vpop.permute.xlu0 %4657
        %4661 = vrot.lane.b32.xlu0 %v4607, 32
        %v4662 = vpop.permute.xlu0 %4661
        %4665 = vrot.lane.b32.xlu0 %v4623, 48
        %v4666 = vpop.permute.xlu0 %4665
        %4669 = vrot.lane.b32.xlu0 %v4615, 64
        %v4670 = vpop.permute.xlu0 %4669
        %4673 = vrot.lane.b32.xlu0 %v4625, 80
        %v4674 = vpop.permute.xlu0 %4673
        %4677 = vrot.lane.b32.xlu0 %v4619, 96
        %v4678 = vpop.permute.xlu0 %4677
        %4681 = vrot.lane.b32.xlu0 %v4627, 112
        %v4682 = vpop.permute.xlu0 %4681
        %v4684 = vsel %vm525, %v4547, %v4630
        %v4685 = vsel %vm527, %v4684, %v4634
        %v4686 = vsel %vm529, %v4685, %v4638
        %v4687 = vsel %vm531, %v4686, %v4642
        %v4688 = vsel %vm533, %v4687, %v4646
        %v4689 = vsel %vm535, %v4688, %v4650
        %v4690 = vsel %vm537, %v4689, %v4654
        %v4691 = vsel %vm525, %v4603, %v4658
        %v4692 = vsel %vm527, %v4691, %v4662
        %v4693 = vsel %vm529, %v4692, %v4666
        %v4694 = vsel %vm531, %v4693, %v4670
        %v4695 = vsel %vm533, %v4694, %v4674
        %v4696 = vsel %vm535, %v4695, %v4678
        %v4697 = vsel %vm537, %v4696, %v4682
        %s4698 = scalar_lea.vmem %s3, 24
        %v4699 = vld [vmem:[%s4698] sm:$0xf]
        %v4701 = vsel %vm763, %v4699, 0
        %v4704 = vsel %vm767, %v4690, 0
        %v4707 = vsel %vm767, %v4697, 0
        %4709 = vmatpush.msra.mxu0 0.0
        %4710 = vmatpush.msra.mxu0 0.0
        %4711 = vmatpush.msra.mxu0 0.0
        %4712 = vmatpush.msra.mxu0 0.0
        %4713 = vmatpush.msra.mxu0 0.0
        %4714 = vmatpush.msra.mxu0 0.0
        %4715 = vmatpush.msra.mxu0 0.0
        %4716 = vmatpush.msra.mxu0 0.0
        %4717 = vmatpush.msra.mxu0 0.0
        %4718 = vmatpush.msra.mxu0 0.0
        %4719 = vmatpush.msra.mxu0 0.0
        %4720 = vmatpush.msra.mxu0 0.0
        %4721 = vmatpush.msra.mxu0 0.0
        %4722 = vmatpush.msra.mxu0 0.0
        %4723 = vmatpush.msra.mxu0 0.0
        %4724 = vmatpush.msra.mxu0 %v4704
        %4725 = vmatmul.f32.gmra.mxu0 %v4701
        %v4726 = vpop.f32.mrf.mxu0
        %v4727 = vadd.f32 0.0, %v4726
        %4728 = vdwg.mxu0
        %4729 = vmatpush.msra.mxu0 0.0
        %4730 = vmatpush.msra.mxu0 0.0
        %4731 = vmatpush.msra.mxu0 0.0
        %4732 = vmatpush.msra.mxu0 0.0
        %4733 = vmatpush.msra.mxu0 0.0
        %4734 = vmatpush.msra.mxu0 0.0
        %4735 = vmatpush.msra.mxu0 0.0
        %4736 = vmatpush.msra.mxu0 0.0
        %4737 = vmatpush.msra.mxu0 0.0
        %4738 = vmatpush.msra.mxu0 0.0
        %4739 = vmatpush.msra.mxu0 0.0
        %4740 = vmatpush.msra.mxu0 0.0
        %4741 = vmatpush.msra.mxu0 0.0
        %4742 = vmatpush.msra.mxu0 0.0
        %4743 = vmatpush.msra.mxu0 0.0
        %4744 = vmatpush.msra.mxu0 %v4707
        %4745 = vmatmul.f32.gmra.mxu0 %v4701
        %v4746 = vpop.f32.mrf.mxu0
        %v4747 = vadd.f32 0.0, %v4746
        %4748 = vdwg.mxu0
        %v4749 = vadd.f32 %v4506, %v4727
        %v4750 = vadd.f32 %v4507, %v4747
        %v4751 = vld [vmem:[#allocation3 + $0x4] sm:$0xff]
        %v4752 = vld [vmem:[#allocation3 + $0xc] sm:$0xff]
        %v4753 = vld [vmem:[#allocation3 + $0x1c] sm:$0xff]
        %v4754 = vld [vmem:[#allocation3 + $0x24] sm:$0xff]
        %v4755 = vld [vmem:[#allocation3 + $0x34] sm:$0xff]
        %v4756 = vld [vmem:[#allocation3 + $0x3c] sm:$0xff]
        %v4757 = vld [vmem:[#allocation3 + $0x4c] sm:$0xff]
        %v4758 = vld [vmem:[#allocation3 + $0x54] sm:$0xff]
        %4767 = vrot.lane.b32.xlu0 %v4751, 126
        %v4768 = vpop.permute.xlu0 %4767
        %4769 = vrot.lane.b32.xlu0 %v4752, 126
        %v4770 = vpop.permute.xlu0 %4769
        %4771 = vrot.lane.b32.xlu0 %v4753, 126
        %v4772 = vpop.permute.xlu0 %4771
        %4773 = vrot.lane.b32.xlu0 %v4754, 126
        %v4774 = vpop.permute.xlu0 %4773
        %4775 = vrot.lane.b32.xlu0 %v4755, 126
        %v4776 = vpop.permute.xlu0 %4775
        %4777 = vrot.lane.b32.xlu0 %v4756, 126
        %v4778 = vpop.permute.xlu0 %4777
        %4779 = vrot.lane.b32.xlu0 %v4757, 126
        %v4780 = vpop.permute.xlu0 %4779
        %4781 = vrot.lane.b32.xlu0 %v4758, 126
        %v4782 = vpop.permute.xlu0 %4781
        %v4791 = vrot.slane %v4776, 4
        %v4792 = vsel %vm357, %v4791, %v4768
        %v4793 = vrot.slane %v4768, 4
        %v4794 = vsel %vm357, %v4776, %v4793
        %v4796 = vunpack.c.l.s4 1983009808
        %v4797 = vunpack.c.0.s8 %v4796
        %v4798 = vperm.slane %v4792, %v4797
        %v4800 = vunpack.c.l.s4 1983009808
        %v4801 = vunpack.c.0.s8 %v4800
        %v4802 = vperm.slane %v4794, %v4801
        %v4803 = vrot.slane %v4780, 4
        %v4804 = vsel %vm357, %v4803, %v4772
        %v4805 = vrot.slane %v4772, 4
        %v4806 = vsel %vm357, %v4780, %v4805
        %v4808 = vunpack.c.l.s4 1983009808
        %v4809 = vunpack.c.0.s8 %v4808
        %v4810 = vperm.slane %v4804, %v4809
        %v4812 = vunpack.c.l.s4 1983009808
        %v4813 = vunpack.c.0.s8 %v4812
        %v4814 = vperm.slane %v4806, %v4813
        %v4815 = vrot.slane %v4810, 4
        %v4816 = vsel %vm357, %v4815, %v4798
        %v4817 = vrot.slane %v4798, 4
        %v4818 = vsel %vm357, %v4810, %v4817
        %v4820 = vunpack.c.l.s4 1934713408
        %v4821 = vunpack.c.0.s8 %v4820
        %v4822 = vperm.slane %v4816, %v4821
        %v4824 = vunpack.c.l.s4 1934713408
        %v4825 = vunpack.c.0.s8 %v4824
        %v4826 = vperm.slane %v4818, %v4825
        %v4827 = vrot.slane %v4814, 4
        %v4828 = vsel %vm357, %v4827, %v4802
        %v4829 = vrot.slane %v4802, 4
        %v4830 = vsel %vm357, %v4814, %v4829
        %v4832 = vunpack.c.l.s4 1934713408
        %v4833 = vunpack.c.0.s8 %v4832
        %v4834 = vperm.slane %v4828, %v4833
        %v4836 = vunpack.c.l.s4 1934713408
        %v4837 = vunpack.c.0.s8 %v4836
        %v4838 = vperm.slane %v4830, %v4837
        %v4839 = vrot.slane %v4822, 4
        %v4840 = vsel %vm357, 0.0, %v4839
        %v4841 = vrot.slane %v4826, 4
        %v4842 = vsel %vm357, 0.0, %v4841
        %v4843 = vrot.slane %v4834, 4
        %v4844 = vsel %vm357, 0.0, %v4843
        %v4845 = vrot.slane %v4838, 4
        %v4846 = vsel %vm357, 0.0, %v4845
        %v4847 = vrot.slane %v4778, 4
        %v4848 = vsel %vm357, %v4847, %v4770
        %v4849 = vrot.slane %v4770, 4
        %v4850 = vsel %vm357, %v4778, %v4849
        %v4852 = vunpack.c.l.s4 1983009808
        %v4853 = vunpack.c.0.s8 %v4852
        %v4854 = vperm.slane %v4848, %v4853
        %v4856 = vunpack.c.l.s4 1983009808
        %v4857 = vunpack.c.0.s8 %v4856
        %v4858 = vperm.slane %v4850, %v4857
        %v4859 = vrot.slane %v4782, 4
        %v4860 = vsel %vm357, %v4859, %v4774
        %v4861 = vrot.slane %v4774, 4
        %v4862 = vsel %vm357, %v4782, %v4861
        %v4864 = vunpack.c.l.s4 1983009808
        %v4865 = vunpack.c.0.s8 %v4864
        %v4866 = vperm.slane %v4860, %v4865
        %v4868 = vunpack.c.l.s4 1983009808
        %v4869 = vunpack.c.0.s8 %v4868
        %v4870 = vperm.slane %v4862, %v4869
        %v4871 = vrot.slane %v4866, 4
        %v4872 = vsel %vm357, %v4871, %v4854
        %v4873 = vrot.slane %v4854, 4
        %v4874 = vsel %vm357, %v4866, %v4873
        %v4876 = vunpack.c.l.s4 1934713408
        %v4877 = vunpack.c.0.s8 %v4876
        %v4878 = vperm.slane %v4872, %v4877
        %v4880 = vunpack.c.l.s4 1934713408
        %v4881 = vunpack.c.0.s8 %v4880
        %v4882 = vperm.slane %v4874, %v4881
        %v4883 = vrot.slane %v4870, 4
        %v4884 = vsel %vm357, %v4883, %v4858
        %v4885 = vrot.slane %v4858, 4
        %v4886 = vsel %vm357, %v4870, %v4885
        %v4888 = vunpack.c.l.s4 1934713408
        %v4889 = vunpack.c.0.s8 %v4888
        %v4890 = vperm.slane %v4884, %v4889
        %v4892 = vunpack.c.l.s4 1934713408
        %v4893 = vunpack.c.0.s8 %v4892
        %v4894 = vperm.slane %v4886, %v4893
        %v4895 = vrot.slane %v4878, 4
        %v4896 = vsel %vm357, 0.0, %v4895
        %v4897 = vrot.slane %v4882, 4
        %v4898 = vsel %vm357, 0.0, %v4897
        %v4899 = vrot.slane %v4890, 4
        %v4900 = vsel %vm357, 0.0, %v4899
        %v4901 = vrot.slane %v4894, 4
        %v4902 = vsel %vm357, 0.0, %v4901
        %4904 = vrot.lane.b32.xlu0 %v4840, 16
        %v4905 = vpop.permute.xlu0 %4904
        %4908 = vrot.lane.b32.xlu0 %v4826, 32
        %v4909 = vpop.permute.xlu0 %4908
        %4912 = vrot.lane.b32.xlu0 %v4842, 48
        %v4913 = vpop.permute.xlu0 %4912
        %4916 = vrot.lane.b32.xlu0 %v4834, 64
        %v4917 = vpop.permute.xlu0 %4916
        %4920 = vrot.lane.b32.xlu0 %v4844, 80
        %v4921 = vpop.permute.xlu0 %4920
        %4924 = vrot.lane.b32.xlu0 %v4838, 96
        %v4925 = vpop.permute.xlu0 %4924
        %4928 = vrot.lane.b32.xlu0 %v4846, 112
        %v4929 = vpop.permute.xlu0 %4928
        %4932 = vrot.lane.b32.xlu0 %v4896, 16
        %v4933 = vpop.permute.xlu0 %4932
        %4936 = vrot.lane.b32.xlu0 %v4882, 32
        %v4937 = vpop.permute.xlu0 %4936
        %4940 = vrot.lane.b32.xlu0 %v4898, 48
        %v4941 = vpop.permute.xlu0 %4940
        %4944 = vrot.lane.b32.xlu0 %v4890, 64
        %v4945 = vpop.permute.xlu0 %4944
        %4948 = vrot.lane.b32.xlu0 %v4900, 80
        %v4949 = vpop.permute.xlu0 %4948
        %4952 = vrot.lane.b32.xlu0 %v4894, 96
        %v4953 = vpop.permute.xlu0 %4952
        %4956 = vrot.lane.b32.xlu0 %v4902, 112
        %v4957 = vpop.permute.xlu0 %4956
        %v4959 = vsel %vm525, %v4822, %v4905
        %v4960 = vsel %vm527, %v4959, %v4909
        %v4961 = vsel %vm529, %v4960, %v4913
        %v4962 = vsel %vm531, %v4961, %v4917
        %v4963 = vsel %vm533, %v4962, %v4921
        %v4964 = vsel %vm535, %v4963, %v4925
        %v4965 = vsel %vm537, %v4964, %v4929
        %v4966 = vsel %vm525, %v4878, %v4933
        %v4967 = vsel %vm527, %v4966, %v4937
        %v4968 = vsel %vm529, %v4967, %v4941
        %v4969 = vsel %vm531, %v4968, %v4945
        %v4970 = vsel %vm533, %v4969, %v4949
        %v4971 = vsel %vm535, %v4970, %v4953
        %v4972 = vsel %vm537, %v4971, %v4957
        %s4973 = scalar_lea.vmem %s3, 28
        %v4974 = vld [vmem:[%s4973] sm:$0xf]
        %v4976 = vsel %vm763, %v4974, 0
        %v4979 = vsel %vm767, %v4965, 0
        %v4982 = vsel %vm767, %v4972, 0
        %4984 = vmatpush.msra.mxu0 0.0
        %4985 = vmatpush.msra.mxu0 0.0
        %4986 = vmatpush.msra.mxu0 0.0
        %4987 = vmatpush.msra.mxu0 0.0
        %4988 = vmatpush.msra.mxu0 0.0
        %4989 = vmatpush.msra.mxu0 0.0
        %4990 = vmatpush.msra.mxu0 0.0
        %4991 = vmatpush.msra.mxu0 0.0
        %4992 = vmatpush.msra.mxu0 0.0
        %4993 = vmatpush.msra.mxu0 0.0
        %4994 = vmatpush.msra.mxu0 0.0
        %4995 = vmatpush.msra.mxu0 0.0
        %4996 = vmatpush.msra.mxu0 0.0
        %4997 = vmatpush.msra.mxu0 0.0
        %4998 = vmatpush.msra.mxu0 0.0
        %4999 = vmatpush.msra.mxu0 %v4979
        %5000 = vmatmul.f32.gmra.mxu0 %v4976
        %v5001 = vpop.f32.mrf.mxu0
        %v5002 = vadd.f32 0.0, %v5001
        %5003 = vdwg.mxu0
        %5004 = vmatpush.msra.mxu0 0.0
        %5005 = vmatpush.msra.mxu0 0.0
        %5006 = vmatpush.msra.mxu0 0.0
        %5007 = vmatpush.msra.mxu0 0.0
        %5008 = vmatpush.msra.mxu0 0.0
        %5009 = vmatpush.msra.mxu0 0.0
        %5010 = vmatpush.msra.mxu0 0.0
        %5011 = vmatpush.msra.mxu0 0.0
        %5012 = vmatpush.msra.mxu0 0.0
        %5013 = vmatpush.msra.mxu0 0.0
        %5014 = vmatpush.msra.mxu0 0.0
        %5015 = vmatpush.msra.mxu0 0.0
        %5016 = vmatpush.msra.mxu0 0.0
        %5017 = vmatpush.msra.mxu0 0.0
        %5018 = vmatpush.msra.mxu0 0.0
        %5019 = vmatpush.msra.mxu0 %v4982
        %5020 = vmatmul.f32.gmra.mxu0 %v4976
        %v5021 = vpop.f32.mrf.mxu0
        %v5022 = vadd.f32 0.0, %v5021
        %5023 = vdwg.mxu0
        %v5024 = vadd.f32 %v4749, %v5002
        %v5025 = vadd.f32 %v4750, %v5022
        %v5026 = vld [vmem:[#allocation3 + $0x4] sm:$0xff]
        %v5027 = vld [vmem:[#allocation3 + $0xc] sm:$0xff]
        %v5028 = vld [vmem:[#allocation3 + $0x1c] sm:$0xff]
        %v5029 = vld [vmem:[#allocation3 + $0x24] sm:$0xff]
        %v5030 = vld [vmem:[#allocation3 + $0x34] sm:$0xff]
        %v5031 = vld [vmem:[#allocation3 + $0x3c] sm:$0xff]
        %v5032 = vld [vmem:[#allocation3 + $0x4c] sm:$0xff]
        %v5033 = vld [vmem:[#allocation3 + $0x54] sm:$0xff]
        %5042 = vrot.lane.b32.xlu0 %v5026, 124
        %v5043 = vpop.permute.xlu0 %5042
        %5044 = vrot.lane.b32.xlu0 %v5027, 124
        %v5045 = vpop.permute.xlu0 %5044
        %5046 = vrot.lane.b32.xlu0 %v5028, 124
        %v5047 = vpop.permute.xlu0 %5046
        %5048 = vrot.lane.b32.xlu0 %v5029, 124
        %v5049 = vpop.permute.xlu0 %5048
        %5050 = vrot.lane.b32.xlu0 %v5030, 124
        %v5051 = vpop.permute.xlu0 %5050
        %5052 = vrot.lane.b32.xlu0 %v5031, 124
        %v5053 = vpop.permute.xlu0 %5052
        %5054 = vrot.lane.b32.xlu0 %v5032, 124
        %v5055 = vpop.permute.xlu0 %5054
        %5056 = vrot.lane.b32.xlu0 %v5033, 124
        %v5057 = vpop.permute.xlu0 %5056
        %v5066 = vrot.slane %v5051, 4
        %v5067 = vsel %vm357, %v5066, %v5043
        %v5068 = vrot.slane %v5043, 4
        %v5069 = vsel %vm357, %v5051, %v5068
        %v5071 = vunpack.c.l.s4 1983009808
        %v5072 = vunpack.c.0.s8 %v5071
        %v5073 = vperm.slane %v5067, %v5072
        %v5075 = vunpack.c.l.s4 1983009808
        %v5076 = vunpack.c.0.s8 %v5075
        %v5077 = vperm.slane %v5069, %v5076
        %v5078 = vrot.slane %v5055, 4
        %v5079 = vsel %vm357, %v5078, %v5047
        %v5080 = vrot.slane %v5047, 4
        %v5081 = vsel %vm357, %v5055, %v5080
        %v5083 = vunpack.c.l.s4 1983009808
        %v5084 = vunpack.c.0.s8 %v5083
        %v5085 = vperm.slane %v5079, %v5084
        %v5087 = vunpack.c.l.s4 1983009808
        %v5088 = vunpack.c.0.s8 %v5087
        %v5089 = vperm.slane %v5081, %v5088
        %v5090 = vrot.slane %v5085, 4
        %v5091 = vsel %vm357, %v5090, %v5073
        %v5092 = vrot.slane %v5073, 4
        %v5093 = vsel %vm357, %v5085, %v5092
        %v5095 = vunpack.c.l.s4 1934713408
        %v5096 = vunpack.c.0.s8 %v5095
        %v5097 = vperm.slane %v5091, %v5096
        %v5099 = vunpack.c.l.s4 1934713408
        %v5100 = vunpack.c.0.s8 %v5099
        %v5101 = vperm.slane %v5093, %v5100
        %v5102 = vrot.slane %v5089, 4
        %v5103 = vsel %vm357, %v5102, %v5077
        %v5104 = vrot.slane %v5077, 4
        %v5105 = vsel %vm357, %v5089, %v5104
        %v5107 = vunpack.c.l.s4 1934713408
        %v5108 = vunpack.c.0.s8 %v5107
        %v5109 = vperm.slane %v5103, %v5108
        %v5111 = vunpack.c.l.s4 1934713408
        %v5112 = vunpack.c.0.s8 %v5111
        %v5113 = vperm.slane %v5105, %v5112
        %v5114 = vrot.slane %v5097, 4
        %v5115 = vsel %vm357, 0.0, %v5114
        %v5116 = vrot.slane %v5101, 4
        %v5117 = vsel %vm357, 0.0, %v5116
        %v5118 = vrot.slane %v5109, 4
        %v5119 = vsel %vm357, 0.0, %v5118
        %v5120 = vrot.slane %v5113, 4
        %v5121 = vsel %vm357, 0.0, %v5120
        %v5122 = vrot.slane %v5053, 4
        %v5123 = vsel %vm357, %v5122, %v5045
        %v5124 = vrot.slane %v5045, 4
        %v5125 = vsel %vm357, %v5053, %v5124
        %v5127 = vunpack.c.l.s4 1983009808
        %v5128 = vunpack.c.0.s8 %v5127
        %v5129 = vperm.slane %v5123, %v5128
        %v5131 = vunpack.c.l.s4 1983009808
        %v5132 = vunpack.c.0.s8 %v5131
        %v5133 = vperm.slane %v5125, %v5132
        %v5134 = vrot.slane %v5057, 4
        %v5135 = vsel %vm357, %v5134, %v5049
        %v5136 = vrot.slane %v5049, 4
        %v5137 = vsel %vm357, %v5057, %v5136
        %v5139 = vunpack.c.l.s4 1983009808
        %v5140 = vunpack.c.0.s8 %v5139
        %v5141 = vperm.slane %v5135, %v5140
        %v5143 = vunpack.c.l.s4 1983009808
        %v5144 = vunpack.c.0.s8 %v5143
        %v5145 = vperm.slane %v5137, %v5144
        %v5146 = vrot.slane %v5141, 4
        %v5147 = vsel %vm357, %v5146, %v5129
        %v5148 = vrot.slane %v5129, 4
        %v5149 = vsel %vm357, %v5141, %v5148
        %v5151 = vunpack.c.l.s4 1934713408
        %v5152 = vunpack.c.0.s8 %v5151
        %v5153 = vperm.slane %v5147, %v5152
        %v5155 = vunpack.c.l.s4 1934713408
        %v5156 = vunpack.c.0.s8 %v5155
        %v5157 = vperm.slane %v5149, %v5156
        %v5158 = vrot.slane %v5145, 4
        %v5159 = vsel %vm357, %v5158, %v5133
        %v5160 = vrot.slane %v5133, 4
        %v5161 = vsel %vm357, %v5145, %v5160
        %v5163 = vunpack.c.l.s4 1934713408
        %v5164 = vunpack.c.0.s8 %v5163
        %v5165 = vperm.slane %v5159, %v5164
        %v5167 = vunpack.c.l.s4 1934713408
        %v5168 = vunpack.c.0.s8 %v5167
        %v5169 = vperm.slane %v5161, %v5168
        %v5170 = vrot.slane %v5153, 4
        %v5171 = vsel %vm357, 0.0, %v5170
        %v5172 = vrot.slane %v5157, 4
        %v5173 = vsel %vm357, 0.0, %v5172
        %v5174 = vrot.slane %v5165, 4
        %v5175 = vsel %vm357, 0.0, %v5174
        %v5176 = vrot.slane %v5169, 4
        %v5177 = vsel %vm357, 0.0, %v5176
        %5179 = vrot.lane.b32.xlu0 %v5115, 16
        %v5180 = vpop.permute.xlu0 %5179
        %5183 = vrot.lane.b32.xlu0 %v5101, 32
        %v5184 = vpop.permute.xlu0 %5183
        %5187 = vrot.lane.b32.xlu0 %v5117, 48
        %v5188 = vpop.permute.xlu0 %5187
        %5191 = vrot.lane.b32.xlu0 %v5109, 64
        %v5192 = vpop.permute.xlu0 %5191
        %5195 = vrot.lane.b32.xlu0 %v5119, 80
        %v5196 = vpop.permute.xlu0 %5195
        %5199 = vrot.lane.b32.xlu0 %v5113, 96
        %v5200 = vpop.permute.xlu0 %5199
        %5203 = vrot.lane.b32.xlu0 %v5121, 112
        %v5204 = vpop.permute.xlu0 %5203
        %5207 = vrot.lane.b32.xlu0 %v5171, 16
        %v5208 = vpop.permute.xlu0 %5207
        %5211 = vrot.lane.b32.xlu0 %v5157, 32
        %v5212 = vpop.permute.xlu0 %5211
        %5215 = vrot.lane.b32.xlu0 %v5173, 48
        %v5216 = vpop.permute.xlu0 %5215
        %5219 = vrot.lane.b32.xlu0 %v5165, 64
        %v5220 = vpop.permute.xlu0 %5219
        %5223 = vrot.lane.b32.xlu0 %v5175, 80
        %v5224 = vpop.permute.xlu0 %5223
        %5227 = vrot.lane.b32.xlu0 %v5169, 96
        %v5228 = vpop.permute.xlu0 %5227
        %5231 = vrot.lane.b32.xlu0 %v5177, 112
        %v5232 = vpop.permute.xlu0 %5231
        %v5234 = vsel %vm525, %v5097, %v5180
        %v5235 = vsel %vm527, %v5234, %v5184
        %v5236 = vsel %vm529, %v5235, %v5188
        %v5237 = vsel %vm531, %v5236, %v5192
        %v5238 = vsel %vm533, %v5237, %v5196
        %v5239 = vsel %vm535, %v5238, %v5200
        %v5240 = vsel %vm537, %v5239, %v5204
        %v5241 = vsel %vm525, %v5153, %v5208
        %v5242 = vsel %vm527, %v5241, %v5212
        %v5243 = vsel %vm529, %v5242, %v5216
        %v5244 = vsel %vm531, %v5243, %v5220
        %v5245 = vsel %vm533, %v5244, %v5224
        %v5246 = vsel %vm535, %v5245, %v5228
        %v5247 = vsel %vm537, %v5246, %v5232
        %s5248 = scalar_lea.vmem %s3, 32
        %v5249 = vld [vmem:[%s5248] sm:$0xf]
        %v5251 = vsel %vm763, %v5249, 0
        %v5254 = vsel %vm767, %v5240, 0
        %v5257 = vsel %vm767, %v5247, 0
        %5259 = vmatpush.msra.mxu0 0.0
        %5260 = vmatpush.msra.mxu0 0.0
        %5261 = vmatpush.msra.mxu0 0.0
        %5262 = vmatpush.msra.mxu0 0.0
        %5263 = vmatpush.msra.mxu0 0.0
        %5264 = vmatpush.msra.mxu0 0.0
        %5265 = vmatpush.msra.mxu0 0.0
        %5266 = vmatpush.msra.mxu0 0.0
        %5267 = vmatpush.msra.mxu0 0.0
        %5268 = vmatpush.msra.mxu0 0.0
        %5269 = vmatpush.msra.mxu0 0.0
        %5270 = vmatpush.msra.mxu0 0.0
        %5271 = vmatpush.msra.mxu0 0.0
        %5272 = vmatpush.msra.mxu0 0.0
        %5273 = vmatpush.msra.mxu0 0.0
        %5274 = vmatpush.msra.mxu0 %v5254
        %5275 = vmatmul.f32.gmra.mxu0 %v5251
        %v5276 = vpop.f32.mrf.mxu0
        %v5277 = vadd.f32 0.0, %v5276
        %5278 = vdwg.mxu0
        %5279 = vmatpush.msra.mxu0 0.0
        %5280 = vmatpush.msra.mxu0 0.0
        %5281 = vmatpush.msra.mxu0 0.0
        %5282 = vmatpush.msra.mxu0 0.0
        %5283 = vmatpush.msra.mxu0 0.0
        %5284 = vmatpush.msra.mxu0 0.0
        %5285 = vmatpush.msra.mxu0 0.0
        %5286 = vmatpush.msra.mxu0 0.0
        %5287 = vmatpush.msra.mxu0 0.0
        %5288 = vmatpush.msra.mxu0 0.0
        %5289 = vmatpush.msra.mxu0 0.0
        %5290 = vmatpush.msra.mxu0 0.0
        %5291 = vmatpush.msra.mxu0 0.0
        %5292 = vmatpush.msra.mxu0 0.0
        %5293 = vmatpush.msra.mxu0 0.0
        %5294 = vmatpush.msra.mxu0 %v5257
        %5295 = vmatmul.f32.gmra.mxu0 %v5251
        %v5296 = vpop.f32.mrf.mxu0
        %v5297 = vadd.f32 0.0, %v5296
        %5298 = vdwg.mxu0
        %v5299 = vadd.f32 %v5024, %v5277
        %v5300 = vadd.f32 %v5025, %v5297
        %v5301 = vld [vmem:[%s4] sm:$0xf]
        %5303 = vset.pattern.permute.xlu0 0
        %5304 = vperm.xlu0 %5303, %v5301
        %v5305 = vpop.permute.xlu0 %5304
        %v5307 = vadd.f32 %v5299, %v5305
        %v5308 = vadd.f32 %v5300, %v5305
        %v5309 = vrot.slane %v303, 4
        %v5310 = vsel %vm357, %v5309, %v299
        %v5311 = vrot.slane %v299, 4
        %v5312 = vsel %vm357, %v303, %v5311
        %v5314 = vunpack.c.l.s4 1983009808
        %v5315 = vunpack.c.0.s8 %v5314
        %v5316 = vperm.slane %v5310, %v5315
        %v5318 = vunpack.c.l.s4 1983009808
        %v5319 = vunpack.c.0.s8 %v5318
        %v5320 = vperm.slane %v5312, %v5319
        %v5321 = vrot.slane %v305, 4
        %v5322 = vsel %vm357, %v5321, %v301
        %v5323 = vrot.slane %v301, 4
        %v5324 = vsel %vm357, %v305, %v5323
        %v5326 = vunpack.c.l.s4 1983009808
        %v5327 = vunpack.c.0.s8 %v5326
        %v5328 = vperm.slane %v5322, %v5327
        %v5330 = vunpack.c.l.s4 1983009808
        %v5331 = vunpack.c.0.s8 %v5330
        %v5332 = vperm.slane %v5324, %v5331
        %v5333 = vrot.slane %v5328, 4
        %v5334 = vsel %vm357, %v5333, %v5316
        %v5335 = vrot.slane %v5316, 4
        %v5336 = vsel %vm357, %v5328, %v5335
        %v5338 = vunpack.c.l.s4 1934713408
        %v5339 = vunpack.c.0.s8 %v5338
        %v5340 = vperm.slane %v5334, %v5339
        %v5342 = vunpack.c.l.s4 1934713408
        %v5343 = vunpack.c.0.s8 %v5342
        %v5344 = vperm.slane %v5336, %v5343
        %v5345 = vrot.slane %v5332, 4
        %v5346 = vsel %vm357, %v5345, %v5320
        %v5347 = vrot.slane %v5320, 4
        %v5348 = vsel %vm357, %v5332, %v5347
        %v5350 = vunpack.c.l.s4 1934713408
        %v5351 = vunpack.c.0.s8 %v5350
        %v5352 = vperm.slane %v5346, %v5351
        %v5354 = vunpack.c.l.s4 1934713408
        %v5355 = vunpack.c.0.s8 %v5354
        %v5356 = vperm.slane %v5348, %v5355
        %v5357 = vrot.slane %v5340, 4
        %v5358 = vsel %vm357, 0.0, %v5357
        %v5359 = vrot.slane %v5344, 4
        %v5360 = vsel %vm357, 0.0, %v5359
        %v5361 = vrot.slane %v5352, 4
        %v5362 = vsel %vm357, 0.0, %v5361
        %v5363 = vrot.slane %v5356, 4
        %v5364 = vsel %vm357, 0.0, %v5363
        %v5365 = vrot.slane %v304, 4
        %v5366 = vsel %vm357, %v5365, %v300
        %v5367 = vrot.slane %v300, 4
        %v5368 = vsel %vm357, %v304, %v5367
        %v5370 = vunpack.c.l.s4 1983009808
        %v5371 = vunpack.c.0.s8 %v5370
        %v5372 = vperm.slane %v5366, %v5371
        %v5374 = vunpack.c.l.s4 1983009808
        %v5375 = vunpack.c.0.s8 %v5374
        %v5376 = vperm.slane %v5368, %v5375
        %v5377 = vrot.slane %v306, 4
        %v5378 = vsel %vm357, %v5377, %v302
        %v5379 = vrot.slane %v302, 4
        %v5380 = vsel %vm357, %v306, %v5379
        %v5382 = vunpack.c.l.s4 1983009808
        %v5383 = vunpack.c.0.s8 %v5382
        %v5384 = vperm.slane %v5378, %v5383
        %v5386 = vunpack.c.l.s4 1983009808
        %v5387 = vunpack.c.0.s8 %v5386
        %v5388 = vperm.slane %v5380, %v5387
        %v5389 = vrot.slane %v5384, 4
        %v5390 = vsel %vm357, %v5389, %v5372
        %v5391 = vrot.slane %v5372, 4
        %v5392 = vsel %vm357, %v5384, %v5391
        %v5394 = vunpack.c.l.s4 1934713408
        %v5395 = vunpack.c.0.s8 %v5394
        %v5396 = vperm.slane %v5390, %v5395
        %v5398 = vunpack.c.l.s4 1934713408
        %v5399 = vunpack.c.0.s8 %v5398
        %v5400 = vperm.slane %v5392, %v5399
        %v5401 = vrot.slane %v5388, 4
        %v5402 = vsel %vm357, %v5401, %v5376
        %v5403 = vrot.slane %v5376, 4
        %v5404 = vsel %vm357, %v5388, %v5403
        %v5406 = vunpack.c.l.s4 1934713408
        %v5407 = vunpack.c.0.s8 %v5406
        %v5408 = vperm.slane %v5402, %v5407
        %v5410 = vunpack.c.l.s4 1934713408
        %v5411 = vunpack.c.0.s8 %v5410
        %v5412 = vperm.slane %v5404, %v5411
        %v5413 = vrot.slane %v5396, 4
        %v5414 = vsel %vm357, 0.0, %v5413
        %v5415 = vrot.slane %v5400, 4
        %v5416 = vsel %vm357, 0.0, %v5415
        %v5417 = vrot.slane %v5408, 4
        %v5418 = vsel %vm357, 0.0, %v5417
        %v5419 = vrot.slane %v5412, 4
        %v5420 = vsel %vm357, 0.0, %v5419
        %5422 = vrot.lane.b32.xlu0 %v5358, 16
        %v5423 = vpop.permute.xlu0 %5422
        %5426 = vrot.lane.b32.xlu0 %v5344, 32
        %v5427 = vpop.permute.xlu0 %5426
        %5430 = vrot.lane.b32.xlu0 %v5360, 48
        %v5431 = vpop.permute.xlu0 %5430
        %5434 = vrot.lane.b32.xlu0 %v5352, 64
        %v5435 = vpop.permute.xlu0 %5434
        %5438 = vrot.lane.b32.xlu0 %v5362, 80
        %v5439 = vpop.permute.xlu0 %5438
        %5442 = vrot.lane.b32.xlu0 %v5356, 96
        %v5443 = vpop.permute.xlu0 %5442
        %5446 = vrot.lane.b32.xlu0 %v5364, 112
        %v5447 = vpop.permute.xlu0 %5446
        %5450 = vrot.lane.b32.xlu0 %v5414, 16
        %v5451 = vpop.permute.xlu0 %5450
        %5454 = vrot.lane.b32.xlu0 %v5400, 32
        %v5455 = vpop.permute.xlu0 %5454
        %5458 = vrot.lane.b32.xlu0 %v5416, 48
        %v5459 = vpop.permute.xlu0 %5458
        %5462 = vrot.lane.b32.xlu0 %v5408, 64
        %v5463 = vpop.permute.xlu0 %5462
        %5466 = vrot.lane.b32.xlu0 %v5418, 80
        %v5467 = vpop.permute.xlu0 %5466
        %5470 = vrot.lane.b32.xlu0 %v5412, 96
        %v5471 = vpop.permute.xlu0 %5470
        %5474 = vrot.lane.b32.xlu0 %v5420, 112
        %v5475 = vpop.permute.xlu0 %5474
        %v5477 = vsel %vm525, %v5340, %v5423
        %v5478 = vsel %vm527, %v5477, %v5427
        %v5479 = vsel %vm529, %v5478, %v5431
        %v5480 = vsel %vm531, %v5479, %v5435
        %v5481 = vsel %vm533, %v5480, %v5439
        %v5482 = vsel %vm535, %v5481, %v5443
        %v5483 = vsel %vm537, %v5482, %v5447
        %v5484 = vsel %vm525, %v5396, %v5451
        %v5485 = vsel %vm527, %v5484, %v5455
        %v5486 = vsel %vm529, %v5485, %v5459
        %v5487 = vsel %vm531, %v5486, %v5463
        %v5488 = vsel %vm533, %v5487, %v5467
        %v5489 = vsel %vm535, %v5488, %v5471
        %v5490 = vsel %vm537, %v5489, %v5475
        %v5491 = vadd.f32 %v5307, %v5483
        %v5492 = vadd.f32 %v5308, %v5490
        %v5495 = vrot.slane %v5492, 4
        %v5496 = vsel %vm767, %v5491, %v5495
        %5498 = vst [vmem:[%s244] sm:$0xff] %v5496
        %s5499 = sand.u32 %s140, 1
        %s5500 = scalar_lea.sflag [#allocation6], %s5499
        %s5501 = sand.u32 %s140, 1
        %s5502 = smul.addr %s5501, 8
        %s5503 = scalar_lea.vmem [#allocation7], %s5502
        // Predicated region
        $region45: #{tpu_custom_call.1} parent=39 // pred_check
          %p5504 = pneg %p150
        $region46: #{tpu_custom_call.1} parent=39 // pred_check_branch
          %5506 = sbr.rel (%p5504) target = $region48
        $region47: #{tpu_custom_call.1} parent=39 // pred_region
          %5508 = vsyncadd %s5500, 0
          %s5509 = smul.addr %s22, 2
          %s5510 = smul.addr %s5509, 4
          %s5511 = scalar_lea.hbm %s5, %s5510
          %s5513 = sshll.u32 %s5503, 4
          %s5514 = int_to_ptr.vmem [resolvable:$true] %s5513
          %s5515 = sshll.u32 %s5511, 4
          %s5516 = int_to_ptr.hbm [resolvable:$true] %s5515
          %5518 = dma.vmem_to_hbm [thread:$0]  %s5514, 128, %s5516, %s5500
        $region48: #{tpu_custom_call.1} parent=39 // pred_fallthru
          _
      $region40: #{tpu_custom_call.1} parent=5 // pred_fallthru
        _
      %p5519 = scmp.le.s32.totalorder 2, %s17
      // Predicated region
      $region49: #{tpu_custom_call.1} parent=5 // pred_check
        %p5520 = pneg %p5519
      $region50: #{tpu_custom_call.1} parent=5 // pred_check_branch
        %5522 = sbr.rel (%p5520) target = $region52
      $region51: #{tpu_custom_call.1} parent=5 // pred_region
        %s5523 = ssub.s32 %s17, 2
        // Predicated region
        $region53: #{tpu_custom_call.1} parent=51 // pred_check
          %p5524 = pneg %p156
        $region54: #{tpu_custom_call.1} parent=51 // pred_check_branch
          %5526 = sbr.rel (%p5524) target = $region56
        $region55: #{tpu_custom_call.1} parent=51 // pred_region
          %s5527 = sand.u32 %s141, 1
          %s5528 = scalar_lea.sflag [#allocation6], %s5527
          %s5529 = sand.u32 %s141, 1
          %s5530 = smul.addr %s5529, 8
          %s5531 = scalar_lea.vmem [#allocation7], %s5530
          %5533 = dma.done %s5528, 128
        $region56: #{tpu_custom_call.1} parent=51 // pred_fallthru
          _
      $region52: #{tpu_custom_call.1} parent=5 // pred_fallthru
        _
    $region6: #{tpu_custom_call.1} parent=1 // loop_footer
      %s21 = sadd.s32 1, %s17
    $region7: #{tpu_custom_call.1} parent=1 // loop_footer_branch
      %16 = sbr.rel target = $region3
    $region8: #{tpu_custom_call.1} parent=1 // loop_exit
      _
    %5534 = vsyncpa [#allocation5], 1
    %s5535 = scalar_lea.sflag [#allocation5], 1
    %5536 = vsyncpa %s5535, 1
    %5537 = vsyncpa [#allocation6], 1
    %s5538 = scalar_lea.sflag [#allocation6], 1
    %5539 = vsyncpa %s5538, 1

</llo_original>
